<compile_context>
chip_gen: v7x
topology: tpu7x:2x2x1
jax: 0.10.0
libtpu: 0.0.40
codegen_flags: <defaults>
</compile_context>

<pallas_src>
import functools

import jax
import jax.numpy as jnp
from jax.experimental import pallas as pl
from jax.experimental.pallas import tpu as pltpu

LN_EPS = 1e-5   # PyTorch nn.LayerNorm default


# ---------------------------------------------------------------------------
# Generation-aware configuration
# ---------------------------------------------------------------------------
def _round_up(x, m):
    return (x + m - 1) // m * m


@functools.lru_cache(maxsize=None)
def _device_kind():
    try:
        return jax.devices()[0].device_kind.lower()
    except Exception:
        return ""


@functools.lru_cache(maxsize=None)
def _vmem_limit_bytes():
    """Scoped-VMEM limit with ~25% headroom; safe on v5e/v6e (128 MiB) and v7x (64 MiB)."""
    cap = None
    try:
        cap = int(pltpu.get_tpu_info().vmem_capacity_bytes)
    except Exception:
        cap = None
    if cap is None:
        kind = _device_kind()
        if "v7" in kind or "7x" in kind:
            cap = 64 << 20
        elif "v5" in kind or "v6" in kind:
            cap = 128 << 20
        else:
            cap = 64 << 20          # conservative fallback: never exceeds physical VMEM
    return int(min(cap * 3 // 4, 100 << 20))


@functools.lru_cache(maxsize=None)
def _default_block_rows():
    # v5e MXU is 4x128x128 (128-row tiles already fill it, 1 vst slot);
    # v6e/v7x have a 256x256 MXU -> 256-row tiles for occupancy.
    return 128 if "v5" in _device_kind() else 256


def _pick_seq_tile(n, pref):
    """Largest tile <= pref that divides n (multiple of 8), else the full extent."""
    if n <= pref:
        return n
    t = (pref // 8) * 8
    while t >= 8:
        if n % t == 0:
            return t
        t -= 8
    return n


def _layernorm_f32(x, w, b):
    mean = jnp.mean(x, axis=-1, keepdims=True)
    xc = x - mean
    var = jnp.mean(xc * xc, axis=-1, keepdims=True)
    return xc * jax.lax.rsqrt(var + LN_EPS) * w + b


# ---------------------------------------------------------------------------
# Attention, kernel A: fused LayerNorm + QKV projection -> head-major q, k, v
# grid = (B, seq tiles); q is pre-scaled; outputs are bf16 (MXU feeds).
# ---------------------------------------------------------------------------
def _qkv_kernel(x_ref, ln_w_ref, ln_b_ref, wqkv_ref, q_ref, k_ref, v_ref, *,
                heads, dim_head, scale):
    x = x_ref[...].astype(jnp.float32)                               # (ts, D)
    xn = _layernorm_f32(x, ln_w_ref[...].astype(jnp.float32),
                        ln_b_ref[...].astype(jnp.float32))
    h = jnp.dot(xn.astype(jnp.bfloat16), wqkv_ref[...],
                preferred_element_type=jnp.float32)                  # (ts, 3*inner)
    inner = heads * dim_head
    # Head-major (heads, ts, dh) layout via static lane slices, so the flash
    # kernel can run one batched-over-heads contraction (no per-head matmuls).
    for hd in range(heads):
        lo = hd * dim_head
        q_ref[hd] = (h[:, lo:lo + dim_head] * scale).astype(q_ref.dtype)
        k_ref[hd] = h[:, inner + lo:inner + lo + dim_head].astype(k_ref.dtype)
        v_ref[hd] = h[:, 2 * inner + lo:2 * inner + lo + dim_head].astype(v_ref.dtype)


def _qkv_project(x, p, *, heads, dim_head, seq_block):
    B, S, D = x.shape
    inner = heads * dim_head
    ts = _pick_seq_tile(S, seq_block)
    ln_w = p["ln_w"].reshape(1, D)
    ln_b = p["ln_b"].reshape(1, D)
    kernel = functools.partial(_qkv_kernel, heads=heads, dim_head=dim_head,
                               scale=float(dim_head) ** -0.5)
    qkv_shape = jax.ShapeDtypeStruct((B, heads, S, dim_head), jnp.bfloat16)

    flops = 2 * B * S * D * 3 * inner
    bytes_accessed = (B * S * D * 4 + 3 * B * S * inner * 2
                      + D * 3 * inner * 2 + 2 * D * 4)

    return pl.pallas_call(
        kernel,
        out_shape=(qkv_shape, qkv_shape, qkv_shape),
        grid_spec=pltpu.PrefetchScalarGridSpec(
            num_scalar_prefetch=0,
            grid=(B, S // ts),
            in_specs=[
                pl.BlockSpec((None, ts, D), lambda b, i: (b, i, 0)),   # x rows
                pl.BlockSpec((1, D), lambda b, i: (0, 0)),             # ln weight
                pl.BlockSpec((1, D), lambda b, i: (0, 0)),             # ln bias
                # TODO(synk): for very large dims, tile the 3*inner output
                # columns of W_qkv so it is never fully resident (v7x VMEM).
                pl.BlockSpec((D, 3 * inner), lambda b, i: (0, 0)),     # W_qkv bf16
            ],
            out_specs=(
                pl.BlockSpec((None, heads, ts, dim_head), lambda b, i: (b, 0, i, 0)),
                pl.BlockSpec((None, heads, ts, dim_head), lambda b, i: (b, 0, i, 0)),
                pl.BlockSpec((None, heads, ts, dim_head), lambda b, i: (b, 0, i, 0)),
            ),
        ),
        compiler_params=pltpu.CompilerParams(
            dimension_semantics=("parallel", "parallel"),
            vmem_limit_bytes=_vmem_limit_bytes(),
        ),
        cost_estimate=pl.CostEstimate(flops=flops, transcendentals=B * S,
                                      bytes_accessed=bytes_accessed),
    )(x, ln_w, ln_b, p["w_qkv"])


# ---------------------------------------------------------------------------
# Attention, kernel B: flash attention (online softmax over KV tiles) fused
# with the output projection and the residual add.
# grid = (B, q tiles, kv tiles); kv axis is the reduction ("arbitrary").
# ---------------------------------------------------------------------------
def _flash_attn_kernel(q_ref, k_ref, v_ref, x_ref, wo_ref, o_ref,
                       m_ref, l_ref, acc_ref, slab_ref, *, heads, dim_head):
    ki = pl.program_id(2)

    @pl.when(ki == 0)
    def _():
        m_ref[...] = jnp.full_like(m_ref, -jnp.inf)
        l_ref[...] = jnp.zeros_like(l_ref)
        acc_ref[...] = jnp.zeros_like(acc_ref)

    # Head-batched scores: (heads, tq, dh) x (heads, tk, dh) -> (heads, tq, tk).
    s = jnp.einsum("hqd,hkd->hqk", q_ref[...], k_ref[...],
                   preferred_element_type=jnp.float32)
    m_prev = m_ref[...]
    m_new = jnp.maximum(m_prev, jnp.max(s, axis=-1, keepdims=True))
    alpha = jnp.exp(m_prev - m_new)
    p = jnp.exp(s - m_new)
    l_ref[...] = alpha * l_ref[...] + jnp.sum(p, axis=-1, keepdims=True)
    acc_ref[...] = alpha * acc_ref[...] + jnp.einsum(
        "hqk,hkd->hqd", p.astype(v_ref.dtype), v_ref[...],
        preferred_element_type=jnp.float32)
    m_ref[...] = m_new

    @pl.when(ki == pl.num_programs(2) - 1)
    def _():
        # Softmax denominator via EUP reciprocal (frees the VALU divide).
        ao = acc_ref[...] * pl.reciprocal(l_ref[...], approx=True)   # (heads, tq, dh)
        # Head merge: write into a lane-dense (tq, inner) slab (no concatenate).
        for hd in range(heads):
            slab_ref[:, hd * dim_head:(hd + 1) * dim_head] = ao[hd].astype(slab_ref.dtype)
        y = jnp.dot(slab_ref[...], wo_ref[...], preferred_element_type=jnp.float32)
        o_ref[...] = (y + x_ref[...].astype(jnp.float32)).astype(o_ref.dtype)


def _flash_attention(q, k, v, x, w_out, *, heads, dim_head, q_block, kv_block):
    B, S, D = x.shape
    inner = heads * dim_head
    tq = _pick_seq_tile(S, q_block)
    tk = _pick_seq_tile(S, kv_block)
    kernel = functools.partial(_flash_attn_kernel, heads=heads, dim_head=dim_head)

    flops = 4 * B * heads * S * S * dim_head + 2 * B * S * inner * D
    bytes_accessed = 3 * B * S * inner * 2 + 2 * B * S * D * 4 + inner * D * 2

    return pl.pallas_call(
        kernel,
        out_shape=jax.ShapeDtypeStruct((B, S, D), x.dtype),
        grid_spec=pltpu.PrefetchScalarGridSpec(
            num_scalar_prefetch=0,
            grid=(B, S // tq, S // tk),
            in_specs=[
                pl.BlockSpec((None, heads, tq, dim_head),
                             lambda b, qi, ki: (b, 0, qi, 0)),          # q tile
                pl.BlockSpec((None, heads, tk, dim_head),
                             lambda b, qi, ki: (b, 0, ki, 0)),          # k tile
                pl.BlockSpec((None, heads, tk, dim_head),
                             lambda b, qi, ki: (b, 0, ki, 0)),          # v tile
                pl.BlockSpec((None, tq, D), lambda b, qi, ki: (b, qi, 0)),  # residual x
                # TODO(synk): tile W_out rows for very large inner/D (v7x VMEM).
                pl.BlockSpec((inner, D), lambda b, qi, ki: (0, 0)),     # W_out bf16
            ],
            out_specs=pl.BlockSpec((None, tq, D), lambda b, qi, ki: (b, qi, 0)),
            scratch_shapes=[
                pltpu.VMEM((heads, tq, 1), jnp.float32),          # running max
                pltpu.VMEM((heads, tq, 1), jnp.float32),          # running denom
                pltpu.VMEM((heads, tq, dim_head), jnp.float32),   # f32 accumulator
                pltpu.VMEM((tq, inner), jnp.bfloat16),            # merged-head slab
            ],
        ),
        compiler_params=pltpu.CompilerParams(
            dimension_semantics=("parallel", "parallel", "arbitrary"),
            vmem_limit_bytes=_vmem_limit_bytes(),
        ),
        cost_estimate=pl.CostEstimate(flops=flops,
                                      transcendentals=B * heads * S * S,
                                      bytes_accessed=bytes_accessed),
    )(q, k, v, x, w_out)


def attention_block(x, p, *, heads, dim_head, q_block=256, kv_block=512):
    q, k, v = _qkv_project(x, p, heads=heads, dim_head=dim_head, seq_block=q_block)
    return _flash_attention(q, k, v, x, p["w_out"], heads=heads, dim_head=dim_head,
                            q_block=q_block, kv_block=kv_block)


# ---------------------------------------------------------------------------
# FeedForward block: LN -> Linear -> GELU -> Linear -> +residual
# Grid: (row tiles, hidden tiles); hidden axis is the reduction ("arbitrary").
# ---------------------------------------------------------------------------
def _ffn_kernel(x_ref, ln_w_ref, ln_b_ref, w1_ref, b1_ref, w2_ref, b2_ref,
                o_ref, xn_ref, acc_ref):
    j = pl.program_id(1)

    @pl.when(j == 0)
    def _():
        x = x_ref[...].astype(jnp.float32)
        xn = _layernorm_f32(x, ln_w_ref[...].astype(jnp.float32),
                            ln_b_ref[...].astype(jnp.float32))
        xn_ref[...] = xn.astype(xn_ref.dtype)        # cache LN(x) as bf16 for the MXU
        acc_ref[...] = jnp.zeros_like(acc_ref)

    h = jnp.dot(xn_ref[...], w1_ref[...], preferred_element_type=jnp.float32)
    h = h + b1_ref[...].astype(jnp.float32)
    # exact (erf) GELU, matching PyTorch nn.GELU() default
    h = 0.5 * h * (1.0 + jax.lax.erf(h * (2.0 ** -0.5)))
    acc_ref[...] += jnp.dot(h.astype(w2_ref.dtype), w2_ref[...],
                            preferred_element_type=jnp.float32)

    @pl.when(j == pl.num_programs(1) - 1)
    def _():
        y = acc_ref[...] + b2_ref[...].astype(jnp.float32) \
            + x_ref[...].astype(jnp.float32)          # fused residual add
        o_ref[...] = y.astype(o_ref.dtype)


def ffn_block(x, p, *, block_rows=None, block_hidden=512):
    B, S, D = x.shape
    H = p["w1"].shape[1]
    M = B * S

    if block_rows is None:
        block_rows = _default_block_rows()
    tm = min(block_rows, _round_up(M, 8))
    M_pad = _round_up(M, tm)
    th = min(block_hidden, H)
    if H % th != 0 or (th != H and th % 128 != 0):
        th = H                                       # fall back to un-tiled hidden dim

    x2 = x.reshape(M, D)                             # contiguous: free reshape
    if M_pad != M:                                   # no-op whenever M is tile-aligned
        x2 = jnp.pad(x2, ((0, M_pad - M), (0, 0)))

    ln_w = p["ln_w"].reshape(1, D)
    ln_b = p["ln_b"].reshape(1, D)
    b1 = p["b1"].reshape(1, H)
    b2 = p["b2"].reshape(1, D)

    flops = 4 * M_pad * D * H
    bytes_accessed = 2 * M_pad * D * 4 + 2 * D * H * 2 + (2 * D + H + D) * 4

    out = pl.pallas_call(
        _ffn_kernel,
        out_shape=jax.ShapeDtypeStruct((M_pad, D), x.dtype),
        grid_spec=pltpu.PrefetchScalarGridSpec(
            num_scalar_prefetch=0,
            grid=(M_pad // tm, H // th),
            in_specs=[
                pl.BlockSpec((tm, D), lambda i, j: (i, 0)),   # x row tile
                pl.BlockSpec((1, D), lambda i, j: (0, 0)),    # ln weight
                pl.BlockSpec((1, D), lambda i, j: (0, 0)),    # ln bias
                pl.BlockSpec((D, th), lambda i, j: (0, j)),   # W1 hidden tile (bf16)
                pl.BlockSpec((1, th), lambda i, j: (0, j)),   # b1 hidden tile
                pl.BlockSpec((th, D), lambda i, j: (j, 0)),   # W2 hidden tile (bf16)
                pl.BlockSpec((1, D), lambda i, j: (0, 0)),    # b2
            ],
            out_specs=pl.BlockSpec((tm, D), lambda i, j: (i, 0)),
            scratch_shapes=[
                pltpu.VMEM((tm, D), jnp.bfloat16),   # cached LN(x)
                pltpu.VMEM((tm, D), jnp.float32),    # f32 accumulator
            ],
        ),
        compiler_params=pltpu.CompilerParams(
            dimension_semantics=("parallel", "arbitrary"),
            vmem_limit_bytes=_vmem_limit_bytes(),
        ),
        cost_estimate=pl.CostEstimate(
            flops=flops,
            transcendentals=M_pad * H,
            bytes_accessed=bytes_accessed,
        ),
    )(x2, ln_w, ln_b, p["w1"], b1, p["w2"], b2)

    if M_pad != M:
        out = out[:M]
    return out.reshape(B, S, D)


# ---------------------------------------------------------------------------
# Final LayerNorm (memory-bound -> large row tiles)
# ---------------------------------------------------------------------------
def _ln_kernel(x_ref, w_ref, b_ref, o_ref):
    x = x_ref[...].astype(jnp.float32)
    o_ref[...] = _layernorm_f32(x, w_ref[...].astype(jnp.float32),
                                b_ref[...].astype(jnp.float32)).astype(o_ref.dtype)


def layernorm(x, w, b, *, block_rows=512):
    B, S, D = x.shape
    M = B * S
    tm = min(block_rows, _round_up(M, 8))
    M_pad = _round_up(M, tm)
    x2 = x.reshape(M, D)
    if M_pad != M:
        x2 = jnp.pad(x2, ((0, M_pad - M), (0, 0)))

    out = pl.pallas_call(
        _ln_kernel,
        out_shape=jax.ShapeDtypeStruct((M_pad, D), x.dtype),
        grid_spec=pltpu.PrefetchScalarGridSpec(
            num_scalar_prefetch=0,
            grid=(M_pad // tm,),
            in_specs=[
                pl.BlockSpec((tm, D), lambda i: (i, 0)),
                pl.BlockSpec((1, D), lambda i: (0, 0)),
                pl.BlockSpec((1, D), lambda i: (0, 0)),
            ],
            out_specs=pl.BlockSpec((tm, D), lambda i: (i, 0)),
        ),
        compiler_params=pltpu.CompilerParams(
            dimension_semantics=("parallel",),
            vmem_limit_bytes=_vmem_limit_bytes(),
        ),
    )(x2, w.reshape(1, D), b.reshape(1, D))

    if M_pad != M:
        out = out[:M]
    return out.reshape(B, S, D)


# ---------------------------------------------------------------------------
# Full Transformer forward
# ---------------------------------------------------------------------------
@functools.partial(jax.jit, static_argnames=(
    "heads", "dim_head", "block_rows", "block_hidden",
    "q_block", "kv_block", "ln_block_rows"))
def transformer_forward(x, params, *, heads, dim_head, block_rows=None,
                        block_hidden=512, q_block=256, kv_block=512,
                        ln_block_rows=512):
    for layer in params["layers"]:
        x = attention_block(x, layer["attn"], heads=heads, dim_head=dim_head,
                            q_block=q_block, kv_block=kv_block)
        x = ffn_block(x, layer["ffn"], block_rows=block_rows,
                      block_hidden=block_hidden)
    return layernorm(x, params["ln_w"], params["ln_b"], block_rows=ln_block_rows)


def init_params(key, dim, depth, heads, dim_head, mlp_dim):
    inner = heads * dim_head
    layers = []
    for _ in range(depth):
        key, k1, k2, k3, k4, k5, k6 = jax.random.split(key, 7)
        layers.append({
            "attn": {
                "ln_w": jnp.ones((dim,), jnp.float32),
                "ln_b": jnp.zeros((dim,), jnp.float32),
                # nn.Linear weights stored as (in, out); bf16 for the MXU.
                "w_qkv": jax.random.uniform(k1, (dim, 3 * inner), jnp.float32,
                                            -dim ** -0.5, dim ** -0.5
                                            ).astype(jnp.bfloat16),
                "w_out": jax.random.uniform(k2, (inner, dim), jnp.float32,
                                            -inner ** -0.5, inner ** -0.5
                                            ).astype(jnp.bfloat16),
            },
            "ffn": {
                "ln_w": jnp.ones((dim,), jnp.float32),
                "ln_b": jnp.zeros((dim,), jnp.float32),
                "w1": jax.random.uniform(k3, (dim, mlp_dim), jnp.float32,
                                         -dim ** -0.5, dim ** -0.5
                                         ).astype(jnp.bfloat16),
                "b1": jax.random.uniform(k4, (mlp_dim,), jnp.float32,
                                         -dim ** -0.5, dim ** -0.5),
                "w2": jax.random.uniform(k5, (mlp_dim, dim), jnp.float32,
                                         -mlp_dim ** -0.5, mlp_dim ** -0.5
                                         ).astype(jnp.bfloat16),
                "b2": jax.random.uniform(k6, (dim,), jnp.float32,
                                         -mlp_dim ** -0.5, mlp_dim ** -0.5),
            },
        })
    return {
        "layers": layers,
        "ln_w": jnp.ones((dim,), jnp.float32),
        "ln_b": jnp.zeros((dim,), jnp.float32),
    }


# ---------------------------------------------------------------------------
# Pure-JAX reference (mirrors the kernels' bf16-matmul / f32-accumulate policy)
# ---------------------------------------------------------------------------
def _bf16_mm(a, b):
    return jnp.dot(a.astype(jnp.bfloat16), b.astype(jnp.bfloat16),
                   preferred_element_type=jnp.float32)


def _ref_forward(x, params, heads, dim_head):
    B, S, D = x.shape
    inner = heads * dim_head
    scale = float(dim_head) ** -0.5
    for layer in params["layers"]:
        a = layer["attn"]
        xn = _layernorm_f32(x, a["ln_w"], a["ln_b"])
        qkv = _bf16_mm(xn, a["w_qkv"])
        q, k, v = jnp.split(qkv, 3, axis=-1)
        split = lambda t: t.reshape(B, S, heads, dim_head).transpose(0, 2, 1, 3)
        q, k, v = split(q), split(k), split(v)
        dots = jnp.einsum("bhqd,bhkd->bhqk",
                          (q * scale).astype(jnp.bfloat16), k.astype(jnp.bfloat16),
                          preferred_element_type=jnp.float32)
        dots = dots - jnp.max(dots, axis=-1, keepdims=True)
        p = jnp.exp(dots)
        attn = p / jnp.sum(p, axis=-1, keepdims=True)
        out = jnp.einsum("bhqk,bhkd->bhqd", attn.astype(jnp.bfloat16),
                         v.astype(jnp.bfloat16), preferred_element_type=jnp.float32)
        out = out.transpose(0, 2, 1, 3).reshape(B, S, inner)
        x = _bf16_mm(out, a["w_out"]) + x

        f = layer["ffn"]
        xn = _layernorm_f32(x, f["ln_w"], f["ln_b"])
        h = _bf16_mm(xn, f["w1"]) + f["b1"]
        h = 0.5 * h * (1.0 + jax.lax.erf(h * (2.0 ** -0.5)))
        x = _bf16_mm(h, f["w2"]) + f["b2"] + x
    return _layernorm_f32(x, params["ln_w"], params["ln_b"])


if __name__ == "__main__":
    key = jax.random.PRNGKey(0)
    kx, kp = jax.random.split(key)

    # Small but lane-dense shapes: dim=128 (=> inner=heads*dim_head=128), mlp=256.
    B, S = 2, 8
    dim, depth, heads, dim_head, mlp_dim = 128, 2, 4, 32, 256

    x = jax.random.normal(kx, (B, S, dim), jnp.float32)
    params = init_params(kp, dim, depth, heads, dim_head, mlp_dim)

    y = transformer_forward(x, params, heads=heads, dim_head=dim_head)
    y = jax.block_until_ready(y)

    y_ref = _ref_forward(x, params, heads, dim_head)
    assert y.shape == (B, S, dim)
    max_err = float(jnp.max(jnp.abs(y - y_ref)))
    assert jnp.allclose(y, y_ref, atol=5e-2, rtol=5e-2), \
        f"mismatch vs reference (max abs err {max_err})"

    print("KERNEL_OK")
</pallas_src>

<mosaic_0001>
module attributes {stable_mosaic.version = 11 : i64} {
  func.func @_qkv_kernel(%arg0: i32, %arg1: i32, %arg2: memref<1x8x128xf32, #tpu.memory_space<vmem>>, %arg3: memref<1x128xf32, #tpu.memory_space<vmem>>, %arg4: memref<1x128xf32, #tpu.memory_space<vmem>>, %arg5: memref<128x384xbf16, #tpu.memory_space<vmem>>, %arg6: memref<1x4x8x32xbf16, #tpu.memory_space<vmem>>, %arg7: memref<1x4x8x32xbf16, #tpu.memory_space<vmem>>, %arg8: memref<1x4x8x32xbf16, #tpu.memory_space<vmem>>) attributes {dimension_semantics = [#tpu.dimension_semantics<parallel>, #tpu.dimension_semantics<parallel>], iteration_bounds = array<i64: 2, 1>, scalar_prefetch = 0 : i64, scratch_operands = 0 : i64, tpu.core_type = #tpu.core_type<tc>, window_params = [{transform_indices = @transform_0, window_bounds = array<i64: 1, 8, 128>}, {pipeline_mode = #tpu.pipeline_mode<synchronous>, transform_indices = @transform_1, window_bounds = array<i64: 1, 128>}, {pipeline_mode = #tpu.pipeline_mode<synchronous>, transform_indices = @transform_2, window_bounds = array<i64: 1, 128>}, {pipeline_mode = #tpu.pipeline_mode<synchronous>, transform_indices = @transform_3, window_bounds = array<i64: 128, 384>}, {transform_indices = @transform_4, window_bounds = array<i64: 1, 4, 8, 32>}, {transform_indices = @transform_5, window_bounds = array<i64: 1, 4, 8, 32>}, {transform_indices = @transform_6, window_bounds = array<i64: 1, 4, 8, 32>}]} {
    %c0 = arith.constant 0 : index
    %c0_0 = arith.constant 0 : index
    %c0_1 = arith.constant 0 : index
    %0 = vector.load %arg2[%c0, %c0_0, %c0_1] : memref<1x8x128xf32, #tpu.memory_space<vmem>>, vector<1x8x128xf32>
    %1 = vector.shape_cast %0 : vector<1x8x128xf32> to vector<8x128xf32>
    %c0_2 = arith.constant 0 : index
    %c0_3 = arith.constant 0 : index
    %2 = vector.load %arg3[%c0_2, %c0_3] : memref<1x128xf32, #tpu.memory_space<vmem>>, vector<1x128xf32>
    %c0_4 = arith.constant 0 : index
    %c0_5 = arith.constant 0 : index
    %3 = vector.load %arg4[%c0_4, %c0_5] : memref<1x128xf32, #tpu.memory_space<vmem>>, vector<1x128xf32>
    %cst = arith.constant dense<0.000000e+00> : vector<8xf32>
    %4 = vector.multi_reduction <add>, %1, %cst [1] : vector<8x128xf32> to vector<8xf32>
    %5 = vector.shape_cast %4 : vector<8xf32> to vector<8x1xf32>
    %cst_6 = arith.constant 1.280000e+02 : f32
    %6 = vector.broadcast %cst_6 : f32 to vector<8x1xf32>
    %7 = arith.divf %5, %6 : vector<8x1xf32>
    %8 = vector.broadcast %7 : vector<8x1xf32> to vector<8x128xf32>
    %9 = arith.subf %1, %8 : vector<8x128xf32>
    %10 = arith.mulf %9, %9 : vector<8x128xf32>
    %cst_7 = arith.constant dense<0.000000e+00> : vector<8xf32>
    %11 = vector.multi_reduction <add>, %10, %cst_7 [1] : vector<8x128xf32> to vector<8xf32>
    %12 = vector.shape_cast %11 : vector<8xf32> to vector<8x1xf32>
    %cst_8 = arith.constant 1.280000e+02 : f32
    %13 = vector.broadcast %cst_8 : f32 to vector<8x1xf32>
    %14 = arith.divf %12, %13 : vector<8x1xf32>
    %cst_9 = arith.constant 9.99999974E-6 : f32
    %15 = vector.broadcast %cst_9 : f32 to vector<8x1xf32>
    %16 = arith.addf %14, %15 : vector<8x1xf32>
    %17 = math.rsqrt %16 : vector<8x1xf32>
    %18 = vector.broadcast %17 : vector<8x1xf32> to vector<8x128xf32>
    %19 = arith.mulf %9, %18 : vector<8x128xf32>
    %20 = vector.broadcast %2 : vector<1x128xf32> to vector<8x128xf32>
    %21 = arith.mulf %19, %20 : vector<8x128xf32>
    %22 = vector.broadcast %3 : vector<1x128xf32> to vector<8x128xf32>
    %23 = arith.addf %21, %22 : vector<8x128xf32>
    %24 = arith.truncf %23 : vector<8x128xf32> to vector<8x128xbf16>
    %c0_10 = arith.constant 0 : index
    %c0_11 = arith.constant 0 : index
    %25 = vector.load %arg5[%c0_10, %c0_11] : memref<128x384xbf16, #tpu.memory_space<vmem>>, vector<128x384xbf16>
    %cst_12 = arith.constant dense<0.000000e+00> : vector<8x384xf32>
    %26 = tpu.matmul %24, %25, %cst_12 {dimension_numbers = #tpu.dot_dimension_numbers<[1], [0], [0], [1], [0, 0, 1, 1], [], []>} : vector<8x128xbf16>, vector<128x384xbf16>, vector<8x384xf32> -> vector<8x384xf32>
    %27 = vector.extract_strided_slice %26 {offsets = [0, 0], sizes = [8, 32], strides = [1, 1]} : vector<8x384xf32> to vector<8x32xf32>
    %cst_13 = arith.constant 0.176776692 : f32
    %28 = vector.broadcast %cst_13 : f32 to vector<8x32xf32>
    %29 = arith.mulf %27, %28 : vector<8x32xf32>
    %30 = arith.truncf %29 : vector<8x32xf32> to vector<8x32xbf16>
    %c0_14 = arith.constant 0 : index
    %c0_15 = arith.constant 0 : index
    %c0_16 = arith.constant 0 : index
    %c0_17 = arith.constant 0 : index
    %31 = vector.load %arg6[%c0_14, %c0_15, %c0_16, %c0_17] : memref<1x4x8x32xbf16, #tpu.memory_space<vmem>>, vector<1x1x8x32xbf16>
    %32 = vector.shape_cast %31 : vector<1x1x8x32xbf16> to vector<8x32xbf16>
    %33 = vector.shape_cast %30 : vector<8x32xbf16> to vector<1x1x8x32xbf16>
    tpu.vector_store %arg6[%c0_14, %c0_15, %c0_16, %c0_17], %33 {strides = array<i32>} : memref<1x4x8x32xbf16, #tpu.memory_space<vmem>>, vector<1x1x8x32xbf16>,
    %34 = vector.extract_strided_slice %26 {offsets = [0, 128], sizes = [8, 32], strides = [1, 1]} : vector<8x384xf32> to vector<8x32xf32>
    %35 = arith.truncf %34 : vector<8x32xf32> to vector<8x32xbf16>
    %c0_18 = arith.constant 0 : index
    %c0_19 = arith.constant 0 : index
    %c0_20 = arith.constant 0 : index
    %c0_21 = arith.constant 0 : index
    %36 = vector.load %arg7[%c0_18, %c0_19, %c0_20, %c0_21] : memref<1x4x8x32xbf16, #tpu.memory_space<vmem>>, vector<1x1x8x32xbf16>
    %37 = vector.shape_cast %36 : vector<1x1x8x32xbf16> to vector<8x32xbf16>
    %38 = vector.shape_cast %35 : vector<8x32xbf16> to vector<1x1x8x32xbf16>
    tpu.vector_store %arg7[%c0_18, %c0_19, %c0_20, %c0_21], %38 {strides = array<i32>} : memref<1x4x8x32xbf16, #tpu.memory_space<vmem>>, vector<1x1x8x32xbf16>,
    %39 = vector.extract_strided_slice %26 {offsets = [0, 256], sizes = [8, 32], strides = [1, 1]} : vector<8x384xf32> to vector<8x32xf32>
    %40 = arith.truncf %39 : vector<8x32xf32> to vector<8x32xbf16>
    %c0_22 = arith.constant 0 : index
    %c0_23 = arith.constant 0 : index
    %c0_24 = arith.constant 0 : index
    %c0_25 = arith.constant 0 : index
    %41 = vector.load %arg8[%c0_22, %c0_23, %c0_24, %c0_25] : memref<1x4x8x32xbf16, #tpu.memory_space<vmem>>, vector<1x1x8x32xbf16>
    %42 = vector.shape_cast %41 : vector<1x1x8x32xbf16> to vector<8x32xbf16>
    %43 = vector.shape_cast %40 : vector<8x32xbf16> to vector<1x1x8x32xbf16>
    tpu.vector_store %arg8[%c0_22, %c0_23, %c0_24, %c0_25], %43 {strides = array<i32>} : memref<1x4x8x32xbf16, #tpu.memory_space<vmem>>, vector<1x1x8x32xbf16>,
    %44 = vector.extract_strided_slice %26 {offsets = [0, 32], sizes = [8, 32], strides = [1, 1]} : vector<8x384xf32> to vector<8x32xf32>
    %cst_26 = arith.constant 0.176776692 : f32
    %45 = vector.broadcast %cst_26 : f32 to vector<8x32xf32>
    %46 = arith.mulf %44, %45 : vector<8x32xf32>
    %47 = arith.truncf %46 : vector<8x32xf32> to vector<8x32xbf16>
    %c0_27 = arith.constant 0 : index
    %c1 = arith.constant 1 : index
    %c0_28 = arith.constant 0 : index
    %c0_29 = arith.constant 0 : index
    %48 = vector.load %arg6[%c0_27, %c1, %c0_28, %c0_29] : memref<1x4x8x32xbf16, #tpu.memory_space<vmem>>, vector<1x1x8x32xbf16>
    %49 = vector.shape_cast %48 : vector<1x1x8x32xbf16> to vector<8x32xbf16>
    %50 = vector.shape_cast %47 : vector<8x32xbf16> to vector<1x1x8x32xbf16>
    tpu.vector_store %arg6[%c0_27, %c1, %c0_28, %c0_29], %50 {strides = array<i32>} : memref<1x4x8x32xbf16, #tpu.memory_space<vmem>>, vector<1x1x8x32xbf16>,
    %51 = vector.extract_strided_slice %26 {offsets = [0, 160], sizes = [8, 32], strides = [1, 1]} : vector<8x384xf32> to vector<8x32xf32>
    %52 = arith.truncf %51 : vector<8x32xf32> to vector<8x32xbf16>
    %c0_30 = arith.constant 0 : index
    %c1_31 = arith.constant 1 : index
    %c0_32 = arith.constant 0 : index
    %c0_33 = arith.constant 0 : index
    %53 = vector.load %arg7[%c0_30, %c1_31, %c0_32, %c0_33] : memref<1x4x8x32xbf16, #tpu.memory_space<vmem>>, vector<1x1x8x32xbf16>
    %54 = vector.shape_cast %53 : vector<1x1x8x32xbf16> to vector<8x32xbf16>
    %55 = vector.shape_cast %52 : vector<8x32xbf16> to vector<1x1x8x32xbf16>
    tpu.vector_store %arg7[%c0_30, %c1_31, %c0_32, %c0_33], %55 {strides = array<i32>} : memref<1x4x8x32xbf16, #tpu.memory_space<vmem>>, vector<1x1x8x32xbf16>,
    %56 = vector.extract_strided_slice %26 {offsets = [0, 288], sizes = [8, 32], strides = [1, 1]} : vector<8x384xf32> to vector<8x32xf32>
    %57 = arith.truncf %56 : vector<8x32xf32> to vector<8x32xbf16>
    %c0_34 = arith.constant 0 : index
    %c1_35 = arith.constant 1 : index
    %c0_36 = arith.constant 0 : index
    %c0_37 = arith.constant 0 : index
    %58 = vector.load %arg8[%c0_34, %c1_35, %c0_36, %c0_37] : memref<1x4x8x32xbf16, #tpu.memory_space<vmem>>, vector<1x1x8x32xbf16>
    %59 = vector.shape_cast %58 : vector<1x1x8x32xbf16> to vector<8x32xbf16>
    %60 = vector.shape_cast %57 : vector<8x32xbf16> to vector<1x1x8x32xbf16>
    tpu.vector_store %arg8[%c0_34, %c1_35, %c0_36, %c0_37], %60 {strides = array<i32>} : memref<1x4x8x32xbf16, #tpu.memory_space<vmem>>, vector<1x1x8x32xbf16>,
    %61 = vector.extract_strided_slice %26 {offsets = [0, 64], sizes = [8, 32], strides = [1, 1]} : vector<8x384xf32> to vector<8x32xf32>
    %cst_38 = arith.constant 0.176776692 : f32
    %62 = vector.broadcast %cst_38 : f32 to vector<8x32xf32>
    %63 = arith.mulf %61, %62 : vector<8x32xf32>
    %64 = arith.truncf %63 : vector<8x32xf32> to vector<8x32xbf16>
    %c0_39 = arith.constant 0 : index
    %c2 = arith.constant 2 : index
    %c0_40 = arith.constant 0 : index
    %c0_41 = arith.constant 0 : index
    %65 = vector.load %arg6[%c0_39, %c2, %c0_40, %c0_41] : memref<1x4x8x32xbf16, #tpu.memory_space<vmem>>, vector<1x1x8x32xbf16>
    %66 = vector.shape_cast %65 : vector<1x1x8x32xbf16> to vector<8x32xbf16>
    %67 = vector.shape_cast %64 : vector<8x32xbf16> to vector<1x1x8x32xbf16>
    tpu.vector_store %arg6[%c0_39, %c2, %c0_40, %c0_41], %67 {strides = array<i32>} : memref<1x4x8x32xbf16, #tpu.memory_space<vmem>>, vector<1x1x8x32xbf16>,
    %68 = vector.extract_strided_slice %26 {offsets = [0, 192], sizes = [8, 32], strides = [1, 1]} : vector<8x384xf32> to vector<8x32xf32>
    %69 = arith.truncf %68 : vector<8x32xf32> to vector<8x32xbf16>
    %c0_42 = arith.constant 0 : index
    %c2_43 = arith.constant 2 : index
    %c0_44 = arith.constant 0 : index
    %c0_45 = arith.constant 0 : index
    %70 = vector.load %arg7[%c0_42, %c2_43, %c0_44, %c0_45] : memref<1x4x8x32xbf16, #tpu.memory_space<vmem>>, vector<1x1x8x32xbf16>
    %71 = vector.shape_cast %70 : vector<1x1x8x32xbf16> to vector<8x32xbf16>
    %72 = vector.shape_cast %69 : vector<8x32xbf16> to vector<1x1x8x32xbf16>
    tpu.vector_store %arg7[%c0_42, %c2_43, %c0_44, %c0_45], %72 {strides = array<i32>} : memref<1x4x8x32xbf16, #tpu.memory_space<vmem>>, vector<1x1x8x32xbf16>,
    %73 = vector.extract_strided_slice %26 {offsets = [0, 320], sizes = [8, 32], strides = [1, 1]} : vector<8x384xf32> to vector<8x32xf32>
    %74 = arith.truncf %73 : vector<8x32xf32> to vector<8x32xbf16>
    %c0_46 = arith.constant 0 : index
    %c2_47 = arith.constant 2 : index
    %c0_48 = arith.constant 0 : index
    %c0_49 = arith.constant 0 : index
    %75 = vector.load %arg8[%c0_46, %c2_47, %c0_48, %c0_49] : memref<1x4x8x32xbf16, #tpu.memory_space<vmem>>, vector<1x1x8x32xbf16>
    %76 = vector.shape_cast %75 : vector<1x1x8x32xbf16> to vector<8x32xbf16>
    %77 = vector.shape_cast %74 : vector<8x32xbf16> to vector<1x1x8x32xbf16>
    tpu.vector_store %arg8[%c0_46, %c2_47, %c0_48, %c0_49], %77 {strides = array<i32>} : memref<1x4x8x32xbf16, #tpu.memory_space<vmem>>, vector<1x1x8x32xbf16>,
    %78 = vector.extract_strided_slice %26 {offsets = [0, 96], sizes = [8, 32], strides = [1, 1]} : vector<8x384xf32> to vector<8x32xf32>
    %cst_50 = arith.constant 0.176776692 : f32
    %79 = vector.broadcast %cst_50 : f32 to vector<8x32xf32>
    %80 = arith.mulf %78, %79 : vector<8x32xf32>
    %81 = arith.truncf %80 : vector<8x32xf32> to vector<8x32xbf16>
    %c0_51 = arith.constant 0 : index
    %c3 = arith.constant 3 : index
    %c0_52 = arith.constant 0 : index
    %c0_53 = arith.constant 0 : index
    %82 = vector.load %arg6[%c0_51, %c3, %c0_52, %c0_53] : memref<1x4x8x32xbf16, #tpu.memory_space<vmem>>, vector<1x1x8x32xbf16>
    %83 = vector.shape_cast %82 : vector<1x1x8x32xbf16> to vector<8x32xbf16>
    %84 = vector.shape_cast %81 : vector<8x32xbf16> to vector<1x1x8x32xbf16>
    tpu.vector_store %arg6[%c0_51, %c3, %c0_52, %c0_53], %84 {strides = array<i32>} : memref<1x4x8x32xbf16, #tpu.memory_space<vmem>>, vector<1x1x8x32xbf16>,
    %85 = vector.extract_strided_slice %26 {offsets = [0, 224], sizes = [8, 32], strides = [1, 1]} : vector<8x384xf32> to vector<8x32xf32>
    %86 = arith.truncf %85 : vector<8x32xf32> to vector<8x32xbf16>
    %c0_54 = arith.constant 0 : index
    %c3_55 = arith.constant 3 : index
    %c0_56 = arith.constant 0 : index
    %c0_57 = arith.constant 0 : index
    %87 = vector.load %arg7[%c0_54, %c3_55, %c0_56, %c0_57] : memref<1x4x8x32xbf16, #tpu.memory_space<vmem>>, vector<1x1x8x32xbf16>
    %88 = vector.shape_cast %87 : vector<1x1x8x32xbf16> to vector<8x32xbf16>
    %89 = vector.shape_cast %86 : vector<8x32xbf16> to vector<1x1x8x32xbf16>
    tpu.vector_store %arg7[%c0_54, %c3_55, %c0_56, %c0_57], %89 {strides = array<i32>} : memref<1x4x8x32xbf16, #tpu.memory_space<vmem>>, vector<1x1x8x32xbf16>,
    %90 = vector.extract_strided_slice %26 {offsets = [0, 352], sizes = [8, 32], strides = [1, 1]} : vector<8x384xf32> to vector<8x32xf32>
    %91 = arith.truncf %90 : vector<8x32xf32> to vector<8x32xbf16>
    %c0_58 = arith.constant 0 : index
    %c3_59 = arith.constant 3 : index
    %c0_60 = arith.constant 0 : index
    %c0_61 = arith.constant 0 : index
    %92 = vector.load %arg8[%c0_58, %c3_59, %c0_60, %c0_61] : memref<1x4x8x32xbf16, #tpu.memory_space<vmem>>, vector<1x1x8x32xbf16>
    %93 = vector.shape_cast %92 : vector<1x1x8x32xbf16> to vector<8x32xbf16>
    %94 = vector.shape_cast %91 : vector<8x32xbf16> to vector<1x1x8x32xbf16>
    tpu.vector_store %arg8[%c0_58, %c3_59, %c0_60, %c0_61], %94 {strides = array<i32>} : memref<1x4x8x32xbf16, #tpu.memory_space<vmem>>, vector<1x1x8x32xbf16>,
    return
  }
  func.func @transform_0(%arg0: i32, %arg1: i32) -> (i32, i32, i32) {
    %c0_i32 = arith.constant 0 : i32
    %c0_i32_0 = arith.constant 0 : i32
    return %arg0, %arg1, %c0_i32 : i32, i32, i32
  }
  func.func @transform_1(%arg0: i32, %arg1: i32) -> (i32, i32) {
    %c0_i32 = arith.constant 0 : i32
    %c0_i32_0 = arith.constant 0 : i32
    %c0_i32_1 = arith.constant 0 : i32
    return %c0_i32, %c0_i32_0 : i32, i32
  }
  func.func @transform_2(%arg0: i32, %arg1: i32) -> (i32, i32) {
    %c0_i32 = arith.constant 0 : i32
    %c0_i32_0 = arith.constant 0 : i32
    %c0_i32_1 = arith.constant 0 : i32
    return %c0_i32, %c0_i32_0 : i32, i32
  }
  func.func @transform_3(%arg0: i32, %arg1: i32) -> (i32, i32) {
    %c0_i32 = arith.constant 0 : i32
    %c0_i32_0 = arith.constant 0 : i32
    %c0_i32_1 = arith.constant 0 : i32
    return %c0_i32, %c0_i32_0 : i32, i32
  }
  func.func @transform_4(%arg0: i32, %arg1: i32) -> (i32, i32, i32, i32) {
    %c0_i32 = arith.constant 0 : i32
    %c0_i32_0 = arith.constant 0 : i32
    %c0_i32_1 = arith.constant 0 : i32
    return %arg0, %c0_i32, %arg1, %c0_i32_0 : i32, i32, i32, i32
  }
  func.func @transform_5(%arg0: i32, %arg1: i32) -> (i32, i32, i32, i32) {
    %c0_i32 = arith.constant 0 : i32
    %c0_i32_0 = arith.constant 0 : i32
    %c0_i32_1 = arith.constant 0 : i32
    return %arg0, %c0_i32, %arg1, %c0_i32_0 : i32, i32, i32, i32
  }
  func.func @transform_6(%arg0: i32, %arg1: i32) -> (i32, i32, i32, i32) {
    %c0_i32 = arith.constant 0 : i32
    %c0_i32_0 = arith.constant 0 : i32
    %c0_i32_1 = arith.constant 0 : i32
    return %arg0, %c0_i32, %arg1, %c0_i32_0 : i32, i32, i32, i32
  }
}

module attributes {stable_mosaic.version = 11 : i64} {
  func.func @_qkv_kernel(%arg0: i32, %arg1: i32, %arg2: memref<1x8x128xf32, #tpu.memory_space<vmem>>, %arg3: memref<1x128xf32, #tpu.memory_space<vmem>>, %arg4: memref<1x128xf32, #tpu.memory_space<vmem>>, %arg5: memref<128x384xbf16, #tpu.memory_space<vmem>>, %arg6: memref<1x4x8x32xbf16, #tpu.memory_space<vmem>>, %arg7: memref<1x4x8x32xbf16, #tpu.memory_space<vmem>>, %arg8: memref<1x4x8x32xbf16, #tpu.memory_space<vmem>>) attributes {dimension_semantics = [#tpu.dimension_semantics<parallel>, #tpu.dimension_semantics<parallel>], iteration_bounds = array<i64: 2, 1>, scalar_prefetch = 0 : i64, scratch_operands = 0 : i64, tpu.core_type = #tpu.core_type<tc>, window_params = [{transform_indices = @transform_0, window_bounds = array<i64: 1, 8, 128>}, {pipeline_mode = #tpu.pipeline_mode<synchronous>, transform_indices = @transform_1, window_bounds = array<i64: 1, 128>}, {pipeline_mode = #tpu.pipeline_mode<synchronous>, transform_indices = @transform_2, window_bounds = array<i64: 1, 128>}, {pipeline_mode = #tpu.pipeline_mode<synchronous>, transform_indices = @transform_3, window_bounds = array<i64: 128, 384>}, {transform_indices = @transform_4, window_bounds = array<i64: 1, 4, 8, 32>}, {transform_indices = @transform_5, window_bounds = array<i64: 1, 4, 8, 32>}, {transform_indices = @transform_6, window_bounds = array<i64: 1, 4, 8, 32>}]} {
    %c0 = arith.constant 0 : index
    %c0_0 = arith.constant 0 : index
    %c0_1 = arith.constant 0 : index
    %0 = vector.load %arg2[%c0, %c0_0, %c0_1] : memref<1x8x128xf32, #tpu.memory_space<vmem>>, vector<1x8x128xf32>
    %1 = vector.shape_cast %0 : vector<1x8x128xf32> to vector<8x128xf32>
    %c0_2 = arith.constant 0 : index
    %c0_3 = arith.constant 0 : index
    %2 = vector.load %arg3[%c0_2, %c0_3] : memref<1x128xf32, #tpu.memory_space<vmem>>, vector<1x128xf32>
    %c0_4 = arith.constant 0 : index
    %c0_5 = arith.constant 0 : index
    %3 = vector.load %arg4[%c0_4, %c0_5] : memref<1x128xf32, #tpu.memory_space<vmem>>, vector<1x128xf32>
    %cst = arith.constant dense<0.000000e+00> : vector<8xf32>
    %4 = vector.multi_reduction <add>, %1, %cst [1] : vector<8x128xf32> to vector<8xf32>
    %5 = vector.shape_cast %4 : vector<8xf32> to vector<8x1xf32>
    %cst_6 = arith.constant 1.280000e+02 : f32
    %6 = vector.broadcast %cst_6 : f32 to vector<8x1xf32>
    %7 = arith.divf %5, %6 : vector<8x1xf32>
    %8 = vector.broadcast %7 : vector<8x1xf32> to vector<8x128xf32>
    %9 = arith.subf %1, %8 : vector<8x128xf32>
    %10 = arith.mulf %9, %9 : vector<8x128xf32>
    %cst_7 = arith.constant dense<0.000000e+00> : vector<8xf32>
    %11 = vector.multi_reduction <add>, %10, %cst_7 [1] : vector<8x128xf32> to vector<8xf32>
    %12 = vector.shape_cast %11 : vector<8xf32> to vector<8x1xf32>
    %cst_8 = arith.constant 1.280000e+02 : f32
    %13 = vector.broadcast %cst_8 : f32 to vector<8x1xf32>
    %14 = arith.divf %12, %13 : vector<8x1xf32>
    %cst_9 = arith.constant 9.99999974E-6 : f32
    %15 = vector.broadcast %cst_9 : f32 to vector<8x1xf32>
    %16 = arith.addf %14, %15 : vector<8x1xf32>
    %17 = math.rsqrt %16 : vector<8x1xf32>
    %18 = vector.broadcast %17 : vector<8x1xf32> to vector<8x128xf32>
    %19 = arith.mulf %9, %18 : vector<8x128xf32>
    %20 = vector.broadcast %2 : vector<1x128xf32> to vector<8x128xf32>
    %21 = arith.mulf %19, %20 : vector<8x128xf32>
    %22 = vector.broadcast %3 : vector<1x128xf32> to vector<8x128xf32>
    %23 = arith.addf %21, %22 : vector<8x128xf32>
    %24 = arith.truncf %23 : vector<8x128xf32> to vector<8x128xbf16>
    %c0_10 = arith.constant 0 : index
    %c0_11 = arith.constant 0 : index
    %25 = vector.load %arg5[%c0_10, %c0_11] : memref<128x384xbf16, #tpu.memory_space<vmem>>, vector<128x384xbf16>
    %cst_12 = arith.constant dense<0.000000e+00> : vector<8x384xf32>
    %26 = tpu.matmul %24, %25, %cst_12 {dimension_numbers = #tpu.dot_dimension_numbers<[1], [0], [0], [1], [0, 0, 1, 1], [], []>} : vector<8x128xbf16>, vector<128x384xbf16>, vector<8x384xf32> -> vector<8x384xf32>
    %27 = vector.extract_strided_slice %26 {offsets = [0, 0], sizes = [8, 32], strides = [1, 1]} : vector<8x384xf32> to vector<8x32xf32>
    %cst_13 = arith.constant 0.176776692 : f32
    %28 = vector.broadcast %cst_13 : f32 to vector<8x32xf32>
    %29 = arith.mulf %27, %28 : vector<8x32xf32>
    %30 = arith.truncf %29 : vector<8x32xf32> to vector<8x32xbf16>
    %c0_14 = arith.constant 0 : index
    %c0_15 = arith.constant 0 : index
    %c0_16 = arith.constant 0 : index
    %c0_17 = arith.constant 0 : index
    %31 = vector.load %arg6[%c0_14, %c0_15, %c0_16, %c0_17] : memref<1x4x8x32xbf16, #tpu.memory_space<vmem>>, vector<1x1x8x32xbf16>
    %32 = vector.shape_cast %31 : vector<1x1x8x32xbf16> to vector<8x32xbf16>
    %33 = vector.shape_cast %30 : vector<8x32xbf16> to vector<1x1x8x32xbf16>
    tpu.vector_store %arg6[%c0_14, %c0_15, %c0_16, %c0_17], %33 {strides = array<i32>} : memref<1x4x8x32xbf16, #tpu.memory_space<vmem>>, vector<1x1x8x32xbf16>,
    %34 = vector.extract_strided_slice %26 {offsets = [0, 128], sizes = [8, 32], strides = [1, 1]} : vector<8x384xf32> to vector<8x32xf32>
    %35 = arith.truncf %34 : vector<8x32xf32> to vector<8x32xbf16>
    %c0_18 = arith.constant 0 : index
    %c0_19 = arith.constant 0 : index
    %c0_20 = arith.constant 0 : index
    %c0_21 = arith.constant 0 : index
    %36 = vector.load %arg7[%c0_18, %c0_19, %c0_20, %c0_21] : memref<1x4x8x32xbf16, #tpu.memory_space<vmem>>, vector<1x1x8x32xbf16>
    %37 = vector.shape_cast %36 : vector<1x1x8x32xbf16> to vector<8x32xbf16>
    %38 = vector.shape_cast %35 : vector<8x32xbf16> to vector<1x1x8x32xbf16>
    tpu.vector_store %arg7[%c0_18, %c0_19, %c0_20, %c0_21], %38 {strides = array<i32>} : memref<1x4x8x32xbf16, #tpu.memory_space<vmem>>, vector<1x1x8x32xbf16>,
    %39 = vector.extract_strided_slice %26 {offsets = [0, 256], sizes = [8, 32], strides = [1, 1]} : vector<8x384xf32> to vector<8x32xf32>
    %40 = arith.truncf %39 : vector<8x32xf32> to vector<8x32xbf16>
    %c0_22 = arith.constant 0 : index
    %c0_23 = arith.constant 0 : index
    %c0_24 = arith.constant 0 : index
    %c0_25 = arith.constant 0 : index
    %41 = vector.load %arg8[%c0_22, %c0_23, %c0_24, %c0_25] : memref<1x4x8x32xbf16, #tpu.memory_space<vmem>>, vector<1x1x8x32xbf16>
    %42 = vector.shape_cast %41 : vector<1x1x8x32xbf16> to vector<8x32xbf16>
    %43 = vector.shape_cast %40 : vector<8x32xbf16> to vector<1x1x8x32xbf16>
    tpu.vector_store %arg8[%c0_22, %c0_23, %c0_24, %c0_25], %43 {strides = array<i32>} : memref<1x4x8x32xbf16, #tpu.memory_space<vmem>>, vector<1x1x8x32xbf16>,
    %44 = vector.extract_strided_slice %26 {offsets = [0, 32], sizes = [8, 32], strides = [1, 1]} : vector<8x384xf32> to vector<8x32xf32>
    %cst_26 = arith.constant 0.176776692 : f32
    %45 = vector.broadcast %cst_26 : f32 to vector<8x32xf32>
    %46 = arith.mulf %44, %45 : vector<8x32xf32>
    %47 = arith.truncf %46 : vector<8x32xf32> to vector<8x32xbf16>
    %c0_27 = arith.constant 0 : index
    %c1 = arith.constant 1 : index
    %c0_28 = arith.constant 0 : index
    %c0_29 = arith.constant 0 : index
    %48 = vector.load %arg6[%c0_27, %c1, %c0_28, %c0_29] : memref<1x4x8x32xbf16, #tpu.memory_space<vmem>>, vector<1x1x8x32xbf16>
    %49 = vector.shape_cast %48 : vector<1x1x8x32xbf16> to vector<8x32xbf16>
    %50 = vector.shape_cast %47 : vector<8x32xbf16> to vector<1x1x8x32xbf16>
    tpu.vector_store %arg6[%c0_27, %c1, %c0_28, %c0_29], %50 {strides = array<i32>} : memref<1x4x8x32xbf16, #tpu.memory_space<vmem>>, vector<1x1x8x32xbf16>,
    %51 = vector.extract_strided_slice %26 {offsets = [0, 160], sizes = [8, 32], strides = [1, 1]} : vector<8x384xf32> to vector<8x32xf32>
    %52 = arith.truncf %51 : vector<8x32xf32> to vector<8x32xbf16>
    %c0_30 = arith.constant 0 : index
    %c1_31 = arith.constant 1 : index
    %c0_32 = arith.constant 0 : index
    %c0_33 = arith.constant 0 : index
    %53 = vector.load %arg7[%c0_30, %c1_31, %c0_32, %c0_33] : memref<1x4x8x32xbf16, #tpu.memory_space<vmem>>, vector<1x1x8x32xbf16>
    %54 = vector.shape_cast %53 : vector<1x1x8x32xbf16> to vector<8x32xbf16>
    %55 = vector.shape_cast %52 : vector<8x32xbf16> to vector<1x1x8x32xbf16>
    tpu.vector_store %arg7[%c0_30, %c1_31, %c0_32, %c0_33], %55 {strides = array<i32>} : memref<1x4x8x32xbf16, #tpu.memory_space<vmem>>, vector<1x1x8x32xbf16>,
    %56 = vector.extract_strided_slice %26 {offsets = [0, 288], sizes = [8, 32], strides = [1, 1]} : vector<8x384xf32> to vector<8x32xf32>
    %57 = arith.truncf %56 : vector<8x32xf32> to vector<8x32xbf16>
    %c0_34 = arith.constant 0 : index
    %c1_35 = arith.constant 1 : index
    %c0_36 = arith.constant 0 : index
    %c0_37 = arith.constant 0 : index
    %58 = vector.load %arg8[%c0_34, %c1_35, %c0_36, %c0_37] : memref<1x4x8x32xbf16, #tpu.memory_space<vmem>>, vector<1x1x8x32xbf16>
    %59 = vector.shape_cast %58 : vector<1x1x8x32xbf16> to vector<8x32xbf16>
    %60 = vector.shape_cast %57 : vector<8x32xbf16> to vector<1x1x8x32xbf16>
    tpu.vector_store %arg8[%c0_34, %c1_35, %c0_36, %c0_37], %60 {strides = array<i32>} : memref<1x4x8x32xbf16, #tpu.memory_space<vmem>>, vector<1x1x8x32xbf16>,
    %61 = vector.extract_strided_slice %26 {offsets = [0, 64], sizes = [8, 32], strides = [1, 1]} : vector<8x384xf32> to vector<8x32xf32>
    %cst_38 = arith.constant 0.176776692 : f32
    %62 = vector.broadcast %cst_38 : f32 to vector<8x32xf32>
    %63 = arith.mulf %61, %62 : vector<8x32xf32>
    %64 = arith.truncf %63 : vector<8x32xf32> to vector<8x32xbf16>
    %c0_39 = arith.constant 0 : index
    %c2 = arith.constant 2 : index
    %c0_40 = arith.constant 0 : index
    %c0_41 = arith.constant 0 : index
    %65 = vector.load %arg6[%c0_39, %c2, %c0_40, %c0_41] : memref<1x4x8x32xbf16, #tpu.memory_space<vmem>>, vector<1x1x8x32xbf16>
    %66 = vector.shape_cast %65 : vector<1x1x8x32xbf16> to vector<8x32xbf16>
    %67 = vector.shape_cast %64 : vector<8x32xbf16> to vector<1x1x8x32xbf16>
    tpu.vector_store %arg6[%c0_39, %c2, %c0_40, %c0_41], %67 {strides = array<i32>} : memref<1x4x8x32xbf16, #tpu.memory_space<vmem>>, vector<1x1x8x32xbf16>,
    %68 = vector.extract_strided_slice %26 {offsets = [0, 192], sizes = [8, 32], strides = [1, 1]} : vector<8x384xf32> to vector<8x32xf32>
    %69 = arith.truncf %68 : vector<8x32xf32> to vector<8x32xbf16>
    %c0_42 = arith.constant 0 : index
    %c2_43 = arith.constant 2 : index
    %c0_44 = arith.constant 0 : index
    %c0_45 = arith.constant 0 : index
    %70 = vector.load %arg7[%c0_42, %c2_43, %c0_44, %c0_45] : memref<1x4x8x32xbf16, #tpu.memory_space<vmem>>, vector<1x1x8x32xbf16>
    %71 = vector.shape_cast %70 : vector<1x1x8x32xbf16> to vector<8x32xbf16>
    %72 = vector.shape_cast %69 : vector<8x32xbf16> to vector<1x1x8x32xbf16>
    tpu.vector_store %arg7[%c0_42, %c2_43, %c0_44, %c0_45], %72 {strides = array<i32>} : memref<1x4x8x32xbf16, #tpu.memory_space<vmem>>, vector<1x1x8x32xbf16>,
    %73 = vector.extract_strided_slice %26 {offsets = [0, 320], sizes = [8, 32], strides = [1, 1]} : vector<8x384xf32> to vector<8x32xf32>
    %74 = arith.truncf %73 : vector<8x32xf32> to vector<8x32xbf16>
    %c0_46 = arith.constant 0 : index
    %c2_47 = arith.constant 2 : index
    %c0_48 = arith.constant 0 : index
    %c0_49 = arith.constant 0 : index
    %75 = vector.load %arg8[%c0_46, %c2_47, %c0_48, %c0_49] : memref<1x4x8x32xbf16, #tpu.memory_space<vmem>>, vector<1x1x8x32xbf16>
    %76 = vector.shape_cast %75 : vector<1x1x8x32xbf16> to vector<8x32xbf16>
    %77 = vector.shape_cast %74 : vector<8x32xbf16> to vector<1x1x8x32xbf16>
    tpu.vector_store %arg8[%c0_46, %c2_47, %c0_48, %c0_49], %77 {strides = array<i32>} : memref<1x4x8x32xbf16, #tpu.memory_space<vmem>>, vector<1x1x8x32xbf16>,
    %78 = vector.extract_strided_slice %26 {offsets = [0, 96], sizes = [8, 32], strides = [1, 1]} : vector<8x384xf32> to vector<8x32xf32>
    %cst_50 = arith.constant 0.176776692 : f32
    %79 = vector.broadcast %cst_50 : f32 to vector<8x32xf32>
    %80 = arith.mulf %78, %79 : vector<8x32xf32>
    %81 = arith.truncf %80 : vector<8x32xf32> to vector<8x32xbf16>
    %c0_51 = arith.constant 0 : index
    %c3 = arith.constant 3 : index
    %c0_52 = arith.constant 0 : index
    %c0_53 = arith.constant 0 : index
    %82 = vector.load %arg6[%c0_51, %c3, %c0_52, %c0_53] : memref<1x4x8x32xbf16, #tpu.memory_space<vmem>>, vector<1x1x8x32xbf16>
    %83 = vector.shape_cast %82 : vector<1x1x8x32xbf16> to vector<8x32xbf16>
    %84 = vector.shape_cast %81 : vector<8x32xbf16> to vector<1x1x8x32xbf16>
    tpu.vector_store %arg6[%c0_51, %c3, %c0_52, %c0_53], %84 {strides = array<i32>} : memref<1x4x8x32xbf16, #tpu.memory_space<vmem>>, vector<1x1x8x32xbf16>,
    %85 = vector.extract_strided_slice %26 {offsets = [0, 224], sizes = [8, 32], strides = [1, 1]} : vector<8x384xf32> to vector<8x32xf32>
    %86 = arith.truncf %85 : vector<8x32xf32> to vector<8x32xbf16>
    %c0_54 = arith.constant 0 : index
    %c3_55 = arith.constant 3 : index
    %c0_56 = arith.constant 0 : index
    %c0_57 = arith.constant 0 : index
    %87 = vector.load %arg7[%c0_54, %c3_55, %c0_56, %c0_57] : memref<1x4x8x32xbf16, #tpu.memory_space<vmem>>, vector<1x1x8x32xbf16>
    %88 = vector.shape_cast %87 : vector<1x1x8x32xbf16> to vector<8x32xbf16>
    %89 = vector.shape_cast %86 : vector<8x32xbf16> to vector<1x1x8x32xbf16>
    tpu.vector_store %arg7[%c0_54, %c3_55, %c0_56, %c0_57], %89 {strides = array<i32>} : memref<1x4x8x32xbf16, #tpu.memory_space<vmem>>, vector<1x1x8x32xbf16>,
    %90 = vector.extract_strided_slice %26 {offsets = [0, 352], sizes = [8, 32], strides = [1, 1]} : vector<8x384xf32> to vector<8x32xf32>
    %91 = arith.truncf %90 : vector<8x32xf32> to vector<8x32xbf16>
    %c0_58 = arith.constant 0 : index
    %c3_59 = arith.constant 3 : index
    %c0_60 = arith.constant 0 : index
    %c0_61 = arith.constant 0 : index
    %92 = vector.load %arg8[%c0_58, %c3_59, %c0_60, %c0_61] : memref<1x4x8x32xbf16, #tpu.memory_space<vmem>>, vector<1x1x8x32xbf16>
    %93 = vector.shape_cast %92 : vector<1x1x8x32xbf16> to vector<8x32xbf16>
    %94 = vector.shape_cast %91 : vector<8x32xbf16> to vector<1x1x8x32xbf16>
    tpu.vector_store %arg8[%c0_58, %c3_59, %c0_60, %c0_61], %94 {strides = array<i32>} : memref<1x4x8x32xbf16, #tpu.memory_space<vmem>>, vector<1x1x8x32xbf16>,
    return
  }
  func.func @transform_0(%arg0: i32, %arg1: i32) -> (i32, i32, i32) {
    %c0_i32 = arith.constant 0 : i32
    %c0_i32_0 = arith.constant 0 : i32
    return %arg0, %arg1, %c0_i32 : i32, i32, i32
  }
  func.func @transform_1(%arg0: i32, %arg1: i32) -> (i32, i32) {
    %c0_i32 = arith.constant 0 : i32
    %c0_i32_0 = arith.constant 0 : i32
    %c0_i32_1 = arith.constant 0 : i32
    return %c0_i32, %c0_i32_0 : i32, i32
  }
  func.func @transform_2(%arg0: i32, %arg1: i32) -> (i32, i32) {
    %c0_i32 = arith.constant 0 : i32
    %c0_i32_0 = arith.constant 0 : i32
    %c0_i32_1 = arith.constant 0 : i32
    return %c0_i32, %c0_i32_0 : i32, i32
  }
  func.func @transform_3(%arg0: i32, %arg1: i32) -> (i32, i32) {
    %c0_i32 = arith.constant 0 : i32
    %c0_i32_0 = arith.constant 0 : i32
    %c0_i32_1 = arith.constant 0 : i32
    return %c0_i32, %c0_i32_0 : i32, i32
  }
  func.func @transform_4(%arg0: i32, %arg1: i32) -> (i32, i32, i32, i32) {
    %c0_i32 = arith.constant 0 : i32
    %c0_i32_0 = arith.constant 0 : i32
    %c0_i32_1 = arith.constant 0 : i32
    return %arg0, %c0_i32, %arg1, %c0_i32_0 : i32, i32, i32, i32
  }
  func.func @transform_5(%arg0: i32, %arg1: i32) -> (i32, i32, i32, i32) {
    %c0_i32 = arith.constant 0 : i32
    %c0_i32_0 = arith.constant 0 : i32
    %c0_i32_1 = arith.constant 0 : i32
    return %arg0, %c0_i32, %arg1, %c0_i32_0 : i32, i32, i32, i32
  }
  func.func @transform_6(%arg0: i32, %arg1: i32) -> (i32, i32, i32, i32) {
    %c0_i32 = arith.constant 0 : i32
    %c0_i32_0 = arith.constant 0 : i32
    %c0_i32_1 = arith.constant 0 : i32
    return %arg0, %c0_i32, %arg1, %c0_i32_0 : i32, i32, i32, i32
  }
}

module attributes {stable_mosaic.version = 11 : i64} {
  func.func @_ffn_kernel(%arg0: i32, %arg1: i32, %arg2: memref<16x128xf32, #tpu.memory_space<vmem>>, %arg3: memref<1x128xf32, #tpu.memory_space<vmem>>, %arg4: memref<1x128xf32, #tpu.memory_space<vmem>>, %arg5: memref<128x256xbf16, #tpu.memory_space<vmem>>, %arg6: memref<1x256xf32, #tpu.memory_space<vmem>>, %arg7: memref<256x128xbf16, #tpu.memory_space<vmem>>, %arg8: memref<1x128xf32, #tpu.memory_space<vmem>>, %arg9: memref<16x128xf32, #tpu.memory_space<vmem>>, %arg10: memref<16x128xbf16, #tpu.memory_space<vmem>>, %arg11: memref<16x128xf32, #tpu.memory_space<vmem>>) attributes {dimension_semantics = [#tpu.dimension_semantics<parallel>, #tpu.dimension_semantics<arbitrary>], iteration_bounds = array<i64: 1, 1>, scalar_prefetch = 0 : i64, scratch_operands = 2 : i64, tpu.core_type = #tpu.core_type<tc>, window_params = [{transform_indices = @transform_0, window_bounds = array<i64: 16, 128>}, {pipeline_mode = #tpu.pipeline_mode<synchronous>, transform_indices = @transform_1, window_bounds = array<i64: 1, 128>}, {pipeline_mode = #tpu.pipeline_mode<synchronous>, transform_indices = @transform_2, window_bounds = array<i64: 1, 128>}, {transform_indices = @transform_3, window_bounds = array<i64: 128, 256>}, {transform_indices = @transform_4, window_bounds = array<i64: 1, 256>}, {transform_indices = @transform_5, window_bounds = array<i64: 256, 128>}, {pipeline_mode = #tpu.pipeline_mode<synchronous>, transform_indices = @transform_6, window_bounds = array<i64: 1, 128>}, {transform_indices = @transform_7, window_bounds = array<i64: 16, 128>}]} {
    %c0_i32 = arith.constant 0 : i32
    %0 = arith.cmpi eq, %arg1, %c0_i32 : i32
    %1 = arith.extui %0 : i1 to i32
    %c0_i32_0 = arith.constant 0 : i32
    %2 = arith.cmpi ne, %1, %c0_i32_0 : i32
    scf.if %2 {
      %c0_18 = arith.constant 0 : index
      %c0_19 = arith.constant 0 : index
      %26 = vector.load %arg2[%c0_18, %c0_19] : memref<16x128xf32, #tpu.memory_space<vmem>>, vector<16x128xf32>
      %c0_20 = arith.constant 0 : index
      %c0_21 = arith.constant 0 : index
      %27 = vector.load %arg3[%c0_20, %c0_21] : memref<1x128xf32, #tpu.memory_space<vmem>>, vector<1x128xf32>
      %c0_22 = arith.constant 0 : index
      %c0_23 = arith.constant 0 : index
      %28 = vector.load %arg4[%c0_22, %c0_23] : memref<1x128xf32, #tpu.memory_space<vmem>>, vector<1x128xf32>
      %cst_24 = arith.constant dense<0.000000e+00> : vector<16xf32>
      %29 = vector.multi_reduction <add>, %26, %cst_24 [1] : vector<16x128xf32> to vector<16xf32>
      %30 = vector.shape_cast %29 : vector<16xf32> to vector<16x1xf32>
      %cst_25 = arith.constant 1.280000e+02 : f32
      %31 = vector.broadcast %cst_25 : f32 to vector<16x1xf32>
      %32 = arith.divf %30, %31 : vector<16x1xf32>
      %33 = vector.broadcast %32 : vector<16x1xf32> to vector<16x128xf32>
      %34 = arith.subf %26, %33 : vector<16x128xf32>
      %35 = arith.mulf %34, %34 : vector<16x128xf32>
      %cst_26 = arith.constant dense<0.000000e+00> : vector<16xf32>
      %36 = vector.multi_reduction <add>, %35, %cst_26 [1] : vector<16x128xf32> to vector<16xf32>
      %37 = vector.shape_cast %36 : vector<16xf32> to vector<16x1xf32>
      %cst_27 = arith.constant 1.280000e+02 : f32
      %38 = vector.broadcast %cst_27 : f32 to vector<16x1xf32>
      %39 = arith.divf %37, %38 : vector<16x1xf32>
      %cst_28 = arith.constant 9.99999974E-6 : f32
      %40 = vector.broadcast %cst_28 : f32 to vector<16x1xf32>
      %41 = arith.addf %39, %40 : vector<16x1xf32>
      %42 = math.rsqrt %41 : vector<16x1xf32>
      %43 = vector.broadcast %42 : vector<16x1xf32> to vector<16x128xf32>
      %44 = arith.mulf %34, %43 : vector<16x128xf32>
      %45 = vector.broadcast %27 : vector<1x128xf32> to vector<16x128xf32>
      %46 = arith.mulf %44, %45 : vector<16x128xf32>
      %47 = vector.broadcast %28 : vector<1x128xf32> to vector<16x128xf32>
      %48 = arith.addf %46, %47 : vector<16x128xf32>
      %49 = arith.truncf %48 : vector<16x128xf32> to vector<16x128xbf16>
      %c0_29 = arith.constant 0 : index
      %c0_30 = arith.constant 0 : index
      %50 = vector.load %arg10[%c0_29, %c0_30] : memref<16x128xbf16, #tpu.memory_space<vmem>>, vector<16x128xbf16>
      tpu.vector_store %arg10[%c0_29, %c0_30], %49 {strides = array<i32>} : memref<16x128xbf16, #tpu.memory_space<vmem>>, vector<16x128xbf16>,
      %cst_31 = arith.constant 0.000000e+00 : f32
      %51 = vector.broadcast %cst_31 : f32 to vector<16x128xf32>
      %c0_32 = arith.constant 0 : index
      %c0_33 = arith.constant 0 : index
      %52 = vector.load %arg11[%c0_32, %c0_33] : memref<16x128xf32, #tpu.memory_space<vmem>>, vector<16x128xf32>
      tpu.vector_store %arg11[%c0_32, %c0_33], %51 {strides = array<i32>} : memref<16x128xf32, #tpu.memory_space<vmem>>, vector<16x128xf32>,
    } else {
    }
    %c0 = arith.constant 0 : index
    %c0_1 = arith.constant 0 : index
    %3 = vector.load %arg10[%c0, %c0_1] : memref<16x128xbf16, #tpu.memory_space<vmem>>, vector<16x128xbf16>
    %c0_2 = arith.constant 0 : index
    %c0_3 = arith.constant 0 : index
    %4 = vector.load %arg5[%c0_2, %c0_3] : memref<128x256xbf16, #tpu.memory_space<vmem>>, vector<128x256xbf16>
    %cst = arith.constant dense<0.000000e+00> : vector<16x256xf32>
    %5 = tpu.matmul %3, %4, %cst {dimension_numbers = #tpu.dot_dimension_numbers<[1], [0], [0], [1], [0, 0, 1, 1], [], []>} : vector<16x128xbf16>, vector<128x256xbf16>, vector<16x256xf32> -> vector<16x256xf32>
    %c0_4 = arith.constant 0 : index
    %c0_5 = arith.constant 0 : index
    %6 = vector.load %arg6[%c0_4, %c0_5] : memref<1x256xf32, #tpu.memory_space<vmem>>, vector<1x256xf32>
    %7 = vector.broadcast %6 : vector<1x256xf32> to vector<16x256xf32>
    %8 = arith.addf %5, %7 : vector<16x256xf32>
    %cst_6 = arith.constant 5.000000e-01 : f32
    %9 = vector.broadcast %cst_6 : f32 to vector<16x256xf32>
    %10 = arith.mulf %9, %8 : vector<16x256xf32>
    %cst_7 = arith.constant 0.707106769 : f32
    %11 = vector.broadcast %cst_7 : f32 to vector<16x256xf32>
    %12 = arith.mulf %8, %11 : vector<16x256xf32>
    %13 = math.erf %12 : vector<16x256xf32>
    %cst_8 = arith.constant 1.000000e+00 : f32
    %14 = vector.broadcast %cst_8 : f32 to vector<16x256xf32>
    %15 = arith.addf %14, %13 : vector<16x256xf32>
    %16 = arith.mulf %10, %15 : vector<16x256xf32>
    %c0_9 = arith.constant 0 : index
    %c0_10 = arith.constant 0 : index
    %17 = vector.load %arg11[%c0_9, %c0_10] : memref<16x128xf32, #tpu.memory_space<vmem>>, vector<16x128xf32>
    %18 = arith.truncf %16 : vector<16x256xf32> to vector<16x256xbf16>
    %c0_11 = arith.constant 0 : index
    %c0_12 = arith.constant 0 : index
    %19 = vector.load %arg7[%c0_11, %c0_12] : memref<256x128xbf16, #tpu.memory_space<vmem>>, vector<256x128xbf16>
    %cst_13 = arith.constant dense<0.000000e+00> : vector<16x128xf32>
    %20 = tpu.matmul %18, %19, %cst_13 {dimension_numbers = #tpu.dot_dimension_numbers<[1], [0], [0], [1], [0, 0, 1, 1], [], []>} : vector<16x256xbf16>, vector<256x128xbf16>, vector<16x128xf32> -> vector<16x128xf32>
    %21 = arith.addf %17, %20 : vector<16x128xf32>
    %c0_14 = arith.constant 0 : index
    %c0_15 = arith.constant 0 : index
    %22 = vector.load %arg11[%c0_14, %c0_15] : memref<16x128xf32, #tpu.memory_space<vmem>>, vector<16x128xf32>
    tpu.vector_store %arg11[%c0_14, %c0_15], %21 {strides = array<i32>} : memref<16x128xf32, #tpu.memory_space<vmem>>, vector<16x128xf32>,
    %c0_i32_16 = arith.constant 0 : i32
    %23 = arith.cmpi eq, %arg1, %c0_i32_16 : i32
    %24 = arith.extui %23 : i1 to i32
    %c0_i32_17 = arith.constant 0 : i32
    %25 = arith.cmpi ne, %24, %c0_i32_17 : i32
    scf.if %25 {
      %c0_18 = arith.constant 0 : index
      %c0_19 = arith.constant 0 : index
      %26 = vector.load %arg11[%c0_18, %c0_19] : memref<16x128xf32, #tpu.memory_space<vmem>>, vector<16x128xf32>
      %c0_20 = arith.constant 0 : index
      %c0_21 = arith.constant 0 : index
      %27 = vector.load %arg8[%c0_20, %c0_21] : memref<1x128xf32, #tpu.memory_space<vmem>>, vector<1x128xf32>
      %28 = vector.broadcast %27 : vector<1x128xf32> to vector<16x128xf32>
      %29 = arith.addf %26, %28 : vector<16x128xf32>
      %c0_22 = arith.constant 0 : index
      %c0_23 = arith.constant 0 : index
      %30 = vector.load %arg2[%c0_22, %c0_23] : memref<16x128xf32, #tpu.memory_space<vmem>>, vector<16x128xf32>
      %31 = arith.addf %29, %30 : vector<16x128xf32>
      %c0_24 = arith.constant 0 : index
      %c0_25 = arith.constant 0 : index
      %32 = vector.load %arg9[%c0_24, %c0_25] : memref<16x128xf32, #tpu.memory_space<vmem>>, vector<16x128xf32>
      tpu.vector_store %arg9[%c0_24, %c0_25], %31 {strides = array<i32>} : memref<16x128xf32, #tpu.memory_space<vmem>>, vector<16x128xf32>,
    } else {
    }
    return
  }
  func.func @transform_0(%arg0: i32, %arg1: i32) -> (i32, i32) {
    %c0_i32 = arith.constant 0 : i32
    %c0_i32_0 = arith.constant 0 : i32
    return %arg0, %c0_i32 : i32, i32
  }
  func.func @transform_1(%arg0: i32, %arg1: i32) -> (i32, i32) {
    %c0_i32 = arith.constant 0 : i32
    %c0_i32_0 = arith.constant 0 : i32
    %c0_i32_1 = arith.constant 0 : i32
    return %c0_i32, %c0_i32_0 : i32, i32
  }
  func.func @transform_2(%arg0: i32, %arg1: i32) -> (i32, i32) {
    %c0_i32 = arith.constant 0 : i32
    %c0_i32_0 = arith.constant 0 : i32
    %c0_i32_1 = arith.constant 0 : i32
    return %c0_i32, %c0_i32_0 : i32, i32
  }
  func.func @transform_3(%arg0: i32, %arg1: i32) -> (i32, i32) {
    %c0_i32 = arith.constant 0 : i32
    %c0_i32_0 = arith.constant 0 : i32
    return %c0_i32, %arg1 : i32, i32
  }
  func.func @transform_4(%arg0: i32, %arg1: i32) -> (i32, i32) {
    %c0_i32 = arith.constant 0 : i32
    %c0_i32_0 = arith.constant 0 : i32
    return %c0_i32, %arg1 : i32, i32
  }
  func.func @transform_5(%arg0: i32, %arg1: i32) -> (i32, i32) {
    %c0_i32 = arith.constant 0 : i32
    %c0_i32_0 = arith.constant 0 : i32
    return %arg1, %c0_i32 : i32, i32
  }
  func.func @transform_6(%arg0: i32, %arg1: i32) -> (i32, i32) {
    %c0_i32 = arith.constant 0 : i32
    %c0_i32_0 = arith.constant 0 : i32
    %c0_i32_1 = arith.constant 0 : i32
    return %c0_i32, %c0_i32_0 : i32, i32
  }
  func.func @transform_7(%arg0: i32, %arg1: i32) -> (i32, i32) {
    %c0_i32 = arith.constant 0 : i32
    %c0_i32_0 = arith.constant 0 : i32
    return %arg0, %c0_i32 : i32, i32
  }
}

module attributes {stable_mosaic.version = 11 : i64} {
  func.func @_flash_attn_kernel(%arg0: i32, %arg1: i32, %arg2: i32, %arg3: memref<1x4x8x32xbf16, #tpu.memory_space<vmem>>, %arg4: memref<1x4x8x32xbf16, #tpu.memory_space<vmem>>, %arg5: memref<1x4x8x32xbf16, #tpu.memory_space<vmem>>, %arg6: memref<1x8x128xf32, #tpu.memory_space<vmem>>, %arg7: memref<128x128xbf16, #tpu.memory_space<vmem>>, %arg8: memref<1x8x128xf32, #tpu.memory_space<vmem>>, %arg9: memref<4x8x1xf32, #tpu.memory_space<vmem>>, %arg10: memref<4x8x1xf32, #tpu.memory_space<vmem>>, %arg11: memref<4x8x32xf32, #tpu.memory_space<vmem>>, %arg12: memref<8x128xbf16, #tpu.memory_space<vmem>>) attributes {dimension_semantics = [#tpu.dimension_semantics<parallel>, #tpu.dimension_semantics<parallel>, #tpu.dimension_semantics<arbitrary>], iteration_bounds = array<i64: 2, 1, 1>, scalar_prefetch = 0 : i64, scratch_operands = 4 : i64, tpu.core_type = #tpu.core_type<tc>, window_params = [{transform_indices = @transform_0, window_bounds = array<i64: 1, 4, 8, 32>}, {transform_indices = @transform_1, window_bounds = array<i64: 1, 4, 8, 32>}, {transform_indices = @transform_2, window_bounds = array<i64: 1, 4, 8, 32>}, {transform_indices = @transform_3, window_bounds = array<i64: 1, 8, 128>}, {pipeline_mode = #tpu.pipeline_mode<synchronous>, transform_indices = @transform_4, window_bounds = array<i64: 128, 128>}, {transform_indices = @transform_5, window_bounds = array<i64: 1, 8, 128>}]} {
    %c0_i32 = arith.constant 0 : i32
    %0 = arith.cmpi eq, %arg2, %c0_i32 : i32
    %1 = arith.extui %0 : i1 to i32
    %c0_i32_0 = arith.constant 0 : i32
    %2 = arith.cmpi ne, %1, %c0_i32_0 : i32
    scf.if %2 {
      %cst_35 = arith.constant 0xFF800000 : f32
      %36 = vector.broadcast %cst_35 : f32 to vector<4x8x1xf32>
      %c0_36 = arith.constant 0 : index
      %c0_37 = arith.constant 0 : index
      %c0_38 = arith.constant 0 : index
      %37 = vector.load %arg9[%c0_36, %c0_37, %c0_38] : memref<4x8x1xf32, #tpu.memory_space<vmem>>, vector<4x8x1xf32>
      tpu.vector_store %arg9[%c0_36, %c0_37, %c0_38], %36 {strides = array<i32>} : memref<4x8x1xf32, #tpu.memory_space<vmem>>, vector<4x8x1xf32>,
      %cst_39 = arith.constant 0.000000e+00 : f32
      %38 = vector.broadcast %cst_39 : f32 to vector<4x8x1xf32>
      %c0_40 = arith.constant 0 : index
      %c0_41 = arith.constant 0 : index
      %c0_42 = arith.constant 0 : index
      %39 = vector.load %arg10[%c0_40, %c0_41, %c0_42] : memref<4x8x1xf32, #tpu.memory_space<vmem>>, vector<4x8x1xf32>
      tpu.vector_store %arg10[%c0_40, %c0_41, %c0_42], %38 {strides = array<i32>} : memref<4x8x1xf32, #tpu.memory_space<vmem>>, vector<4x8x1xf32>,
      %cst_43 = arith.constant 0.000000e+00 : f32
      %40 = vector.broadcast %cst_43 : f32 to vector<4x8x32xf32>
      %c0_44 = arith.constant 0 : index
      %c0_45 = arith.constant 0 : index
      %c0_46 = arith.constant 0 : index
      %41 = vector.load %arg11[%c0_44, %c0_45, %c0_46] : memref<4x8x32xf32, #tpu.memory_space<vmem>>, vector<4x8x32xf32>
      tpu.vector_store %arg11[%c0_44, %c0_45, %c0_46], %40 {strides = array<i32>} : memref<4x8x32xf32, #tpu.memory_space<vmem>>, vector<4x8x32xf32>,
    } else {
    }
    %c0 = arith.constant 0 : index
    %c0_1 = arith.constant 0 : index
    %c0_2 = arith.constant 0 : index
    %c0_3 = arith.constant 0 : index
    %3 = vector.load %arg3[%c0, %c0_1, %c0_2, %c0_3] : memref<1x4x8x32xbf16, #tpu.memory_space<vmem>>, vector<1x4x8x32xbf16>
    %4 = vector.shape_cast %3 : vector<1x4x8x32xbf16> to vector<4x8x32xbf16>
    %c0_4 = arith.constant 0 : index
    %c0_5 = arith.constant 0 : index
    %c0_6 = arith.constant 0 : index
    %c0_7 = arith.constant 0 : index
    %5 = vector.load %arg4[%c0_4, %c0_5, %c0_6, %c0_7] : memref<1x4x8x32xbf16, #tpu.memory_space<vmem>>, vector<1x4x8x32xbf16>
    %6 = vector.shape_cast %5 : vector<1x4x8x32xbf16> to vector<4x8x32xbf16>
    "tpu.trace_start"() <{level = 10 : i32, message = "hqd,hkd->hqk"}> : () -> ()
    %cst = arith.constant dense<0.000000e+00> : vector<4x8x8xf32>
    %7 = tpu.matmul %4, %6, %cst {dimension_numbers = #tpu.dot_dimension_numbers<[2], [2], [1], [1], [0, 0, 0, 1, 1, 1], [0], [0]>} : vector<4x8x32xbf16>, vector<4x8x32xbf16>, vector<4x8x8xf32> -> vector<4x8x8xf32>
    "tpu.trace_stop"() : () -> ()
    %c0_8 = arith.constant 0 : index
    %c0_9 = arith.constant 0 : index
    %c0_10 = arith.constant 0 : index
    %8 = vector.load %arg9[%c0_8, %c0_9, %c0_10] : memref<4x8x1xf32, #tpu.memory_space<vmem>>, vector<4x8x1xf32>
    %cst_11 = arith.constant dense<0xFF800000> : vector<4x8xf32>
    %9 = vector.multi_reduction <maximumf>, %7, %cst_11 [2] : vector<4x8x8xf32> to vector<4x8xf32>
    %10 = vector.shape_cast %9 : vector<4x8xf32> to vector<4x8x1xf32>
    %11 = arith.maximumf %8, %10 : vector<4x8x1xf32>
    %12 = arith.subf %8, %11 : vector<4x8x1xf32>
    %13 = math.exp %12 : vector<4x8x1xf32>
    %14 = vector.broadcast %11 : vector<4x8x1xf32> to vector<4x8x8xf32>
    %15 = arith.subf %7, %14 : vector<4x8x8xf32>
    %16 = math.exp %15 : vector<4x8x8xf32>
    %c0_12 = arith.constant 0 : index
    %c0_13 = arith.constant 0 : index
    %c0_14 = arith.constant 0 : index
    %17 = vector.load %arg10[%c0_12, %c0_13, %c0_14] : memref<4x8x1xf32, #tpu.memory_space<vmem>>, vector<4x8x1xf32>
    %18 = arith.mulf %13, %17 : vector<4x8x1xf32>
    %cst_15 = arith.constant dense<0.000000e+00> : vector<4x8xf32>
    %19 = vector.multi_reduction <add>, %16, %cst_15 [2] : vector<4x8x8xf32> to vector<4x8xf32>
    %20 = vector.shape_cast %19 : vector<4x8xf32> to vector<4x8x1xf32>
    %21 = arith.addf %18, %20 : vector<4x8x1xf32>
    %c0_16 = arith.constant 0 : index
    %c0_17 = arith.constant 0 : index
    %c0_18 = arith.constant 0 : index
    %22 = vector.load %arg10[%c0_16, %c0_17, %c0_18] : memref<4x8x1xf32, #tpu.memory_space<vmem>>, vector<4x8x1xf32>
    tpu.vector_store %arg10[%c0_16, %c0_17, %c0_18], %21 {strides = array<i32>} : memref<4x8x1xf32, #tpu.memory_space<vmem>>, vector<4x8x1xf32>,
    %c0_19 = arith.constant 0 : index
    %c0_20 = arith.constant 0 : index
    %c0_21 = arith.constant 0 : index
    %23 = vector.load %arg11[%c0_19, %c0_20, %c0_21] : memref<4x8x32xf32, #tpu.memory_space<vmem>>, vector<4x8x32xf32>
    %24 = vector.broadcast %13 : vector<4x8x1xf32> to vector<4x8x32xf32>
    %25 = arith.mulf %24, %23 : vector<4x8x32xf32>
    %26 = arith.truncf %16 : vector<4x8x8xf32> to vector<4x8x8xbf16>
    %c0_22 = arith.constant 0 : index
    %c0_23 = arith.constant 0 : index
    %c0_24 = arith.constant 0 : index
    %c0_25 = arith.constant 0 : index
    %27 = vector.load %arg5[%c0_22, %c0_23, %c0_24, %c0_25] : memref<1x4x8x32xbf16, #tpu.memory_space<vmem>>, vector<1x4x8x32xbf16>
    %28 = vector.shape_cast %27 : vector<1x4x8x32xbf16> to vector<4x8x32xbf16>
    "tpu.trace_start"() <{level = 10 : i32, message = "hqk,hkd->hqd"}> : () -> ()
    %cst_26 = arith.constant dense<0.000000e+00> : vector<4x8x32xf32>
    %29 = tpu.matmul %26, %28, %cst_26 {dimension_numbers = #tpu.dot_dimension_numbers<[2], [1], [1], [2], [0, 0, 0, 1, 1, 2], [0], [0]>} : vector<4x8x8xbf16>, vector<4x8x32xbf16>, vector<4x8x32xf32> -> vector<4x8x32xf32>
    "tpu.trace_stop"() : () -> ()
    %30 = arith.addf %25, %29 : vector<4x8x32xf32>
    %c0_27 = arith.constant 0 : index
    %c0_28 = arith.constant 0 : index
    %c0_29 = arith.constant 0 : index
    %31 = vector.load %arg11[%c0_27, %c0_28, %c0_29] : memref<4x8x32xf32, #tpu.memory_space<vmem>>, vector<4x8x32xf32>
    tpu.vector_store %arg11[%c0_27, %c0_28, %c0_29], %30 {strides = array<i32>} : memref<4x8x32xf32, #tpu.memory_space<vmem>>, vector<4x8x32xf32>,
    %c0_30 = arith.constant 0 : index
    %c0_31 = arith.constant 0 : index
    %c0_32 = arith.constant 0 : index
    %32 = vector.load %arg9[%c0_30, %c0_31, %c0_32] : memref<4x8x1xf32, #tpu.memory_space<vmem>>, vector<4x8x1xf32>
    tpu.vector_store %arg9[%c0_30, %c0_31, %c0_32], %11 {strides = array<i32>} : memref<4x8x1xf32, #tpu.memory_space<vmem>>, vector<4x8x1xf32>,
    %c0_i32_33 = arith.constant 0 : i32
    %33 = arith.cmpi eq, %arg2, %c0_i32_33 : i32
    %34 = arith.extui %33 : i1 to i32
    %c0_i32_34 = arith.constant 0 : i32
    %35 = arith.cmpi ne, %34, %c0_i32_34 : i32
    scf.if %35 {
      %c0_35 = arith.constant 0 : index
      %c0_36 = arith.constant 0 : index
      %c0_37 = arith.constant 0 : index
      %36 = vector.load %arg11[%c0_35, %c0_36, %c0_37] : memref<4x8x32xf32, #tpu.memory_space<vmem>>, vector<4x8x32xf32>
      %c0_38 = arith.constant 0 : index
      %c0_39 = arith.constant 0 : index
      %c0_40 = arith.constant 0 : index
      %37 = vector.load %arg10[%c0_38, %c0_39, %c0_40] : memref<4x8x1xf32, #tpu.memory_space<vmem>>, vector<4x8x1xf32>
      %38 = tpu.reciprocal %37 {approx = true} : vector<4x8x1xf32> -> vector<4x8x1xf32>
      %39 = vector.broadcast %38 : vector<4x8x1xf32> to vector<4x8x32xf32>
      %40 = arith.mulf %36, %39 : vector<4x8x32xf32>
      %41 = vector.extract_strided_slice %40 {offsets = [0, 0, 0], sizes = [1, 8, 32], strides = [1, 1, 1]} : vector<4x8x32xf32> to vector<1x8x32xf32>
      %42 = vector.shape_cast %41 : vector<1x8x32xf32> to vector<8x32xf32>
      %43 = arith.truncf %42 : vector<8x32xf32> to vector<8x32xbf16>
      %c0_41 = arith.constant 0 : index
      %c0_42 = arith.constant 0 : index
      %44 = vector.load %arg12[%c0_41, %c0_42] : memref<8x128xbf16, #tpu.memory_space<vmem>>, vector<8x32xbf16>
      tpu.vector_store %arg12[%c0_41, %c0_42], %43 {strides = array<i32>} : memref<8x128xbf16, #tpu.memory_space<vmem>>, vector<8x32xbf16>,
      %45 = vector.extract_strided_slice %40 {offsets = [1, 0, 0], sizes = [1, 8, 32], strides = [1, 1, 1]} : vector<4x8x32xf32> to vector<1x8x32xf32>
      %46 = vector.shape_cast %45 : vector<1x8x32xf32> to vector<8x32xf32>
      %47 = arith.truncf %46 : vector<8x32xf32> to vector<8x32xbf16>
      %c0_43 = arith.constant 0 : index
      %c32 = arith.constant 32 : index
      %48 = vector.load %arg12[%c0_43, %c32] : memref<8x128xbf16, #tpu.memory_space<vmem>>, vector<8x32xbf16>
      tpu.vector_store %arg12[%c0_43, %c32], %47 {strides = array<i32>} : memref<8x128xbf16, #tpu.memory_space<vmem>>, vector<8x32xbf16>,
      %49 = vector.extract_strided_slice %40 {offsets = [2, 0, 0], sizes = [1, 8, 32], strides = [1, 1, 1]} : vector<4x8x32xf32> to vector<1x8x32xf32>
      %50 = vector.shape_cast %49 : vector<1x8x32xf32> to vector<8x32xf32>
      %51 = arith.truncf %50 : vector<8x32xf32> to vector<8x32xbf16>
      %c0_44 = arith.constant 0 : index
      %c64 = arith.constant 64 : index
      %52 = vector.load %arg12[%c0_44, %c64] : memref<8x128xbf16, #tpu.memory_space<vmem>>, vector<8x32xbf16>
      tpu.vector_store %arg12[%c0_44, %c64], %51 {strides = array<i32>} : memref<8x128xbf16, #tpu.memory_space<vmem>>, vector<8x32xbf16>,
      %53 = vector.extract_strided_slice %40 {offsets = [3, 0, 0], sizes = [1, 8, 32], strides = [1, 1, 1]} : vector<4x8x32xf32> to vector<1x8x32xf32>
      %54 = vector.shape_cast %53 : vector<1x8x32xf32> to vector<8x32xf32>
      %55 = arith.truncf %54 : vector<8x32xf32> to vector<8x32xbf16>
      %c0_45 = arith.constant 0 : index
      %c96 = arith.constant 96 : index
      %56 = vector.load %arg12[%c0_45, %c96] : memref<8x128xbf16, #tpu.memory_space<vmem>>, vector<8x32xbf16>
      tpu.vector_store %arg12[%c0_45, %c96], %55 {strides = array<i32>} : memref<8x128xbf16, #tpu.memory_space<vmem>>, vector<8x32xbf16>,
      %c0_46 = arith.constant 0 : index
      %c0_47 = arith.constant 0 : index
      %57 = vector.load %arg12[%c0_46, %c0_47] : memref<8x128xbf16, #tpu.memory_space<vmem>>, vector<8x128xbf16>
      %c0_48 = arith.constant 0 : index
      %c0_49 = arith.constant 0 : index
      %58 = vector.load %arg7[%c0_48, %c0_49] : memref<128x128xbf16, #tpu.memory_space<vmem>>, vector<128x128xbf16>
      %cst_50 = arith.constant dense<0.000000e+00> : vector<8x128xf32>
      %59 = tpu.matmul %57, %58, %cst_50 {dimension_numbers = #tpu.dot_dimension_numbers<[1], [0], [0], [1], [0, 0, 1, 1], [], []>} : vector<8x128xbf16>, vector<128x128xbf16>, vector<8x128xf32> -> vector<8x128xf32>
      %c0_51 = arith.constant 0 : index
      %c0_52 = arith.constant 0 : index
      %c0_53 = arith.constant 0 : index
      %60 = vector.load %arg6[%c0_51, %c0_52, %c0_53] : memref<1x8x128xf32, #tpu.memory_space<vmem>>, vector<1x8x128xf32>
      %61 = vector.shape_cast %60 : vector<1x8x128xf32> to vector<8x128xf32>
      %62 = arith.addf %59, %61 : vector<8x128xf32>
      %c0_54 = arith.constant 0 : index
      %c0_55 = arith.constant 0 : index
      %c0_56 = arith.constant 0 : index
      %63 = vector.load %arg8[%c0_54, %c0_55, %c0_56] : memref<1x8x128xf32, #tpu.memory_space<vmem>>, vector<1x8x128xf32>
      %64 = vector.shape_cast %63 : vector<1x8x128xf32> to vector<8x128xf32>
      %65 = vector.shape_cast %62 : vector<8x128xf32> to vector<1x8x128xf32>
      tpu.vector_store %arg8[%c0_54, %c0_55, %c0_56], %65 {strides = array<i32>} : memref<1x8x128xf32, #tpu.memory_space<vmem>>, vector<1x8x128xf32>,
    } else {
    }
    return
  }
  func.func @transform_0(%arg0: i32, %arg1: i32, %arg2: i32) -> (i32, i32, i32, i32) {
    %c0_i32 = arith.constant 0 : i32
    %c0_i32_0 = arith.constant 0 : i32
    %c0_i32_1 = arith.constant 0 : i32
    return %arg0, %c0_i32, %arg1, %c0_i32_0 : i32, i32, i32, i32
  }
  func.func @transform_1(%arg0: i32, %arg1: i32, %arg2: i32) -> (i32, i32, i32, i32) {
    %c0_i32 = arith.constant 0 : i32
    %c0_i32_0 = arith.constant 0 : i32
    %c0_i32_1 = arith.constant 0 : i32
    return %arg0, %c0_i32, %arg2, %c0_i32_0 : i32, i32, i32, i32
  }
  func.func @transform_2(%arg0: i32, %arg1: i32, %arg2: i32) -> (i32, i32, i32, i32) {
    %c0_i32 = arith.constant 0 : i32
    %c0_i32_0 = arith.constant 0 : i32
    %c0_i32_1 = arith.constant 0 : i32
    return %arg0, %c0_i32, %arg2, %c0_i32_0 : i32, i32, i32, i32
  }
  func.func @transform_3(%arg0: i32, %arg1: i32, %arg2: i32) -> (i32, i32, i32) {
    %c0_i32 = arith.constant 0 : i32
    %c0_i32_0 = arith.constant 0 : i32
    return %arg0, %arg1, %c0_i32 : i32, i32, i32
  }
  func.func @transform_4(%arg0: i32, %arg1: i32, %arg2: i32) -> (i32, i32) {
    %c0_i32 = arith.constant 0 : i32
    %c0_i32_0 = arith.constant 0 : i32
    %c0_i32_1 = arith.constant 0 : i32
    return %c0_i32, %c0_i32_0 : i32, i32
  }
  func.func @transform_5(%arg0: i32, %arg1: i32, %arg2: i32) -> (i32, i32, i32) {
    %c0_i32 = arith.constant 0 : i32
    %c0_i32_0 = arith.constant 0 : i32
    return %arg0, %arg1, %c0_i32 : i32, i32, i32
  }
}

module attributes {stable_mosaic.version = 11 : i64} {
  func.func @_ln_kernel(%arg0: i32, %arg1: memref<16x128xf32, #tpu.memory_space<vmem>>, %arg2: memref<1x128xf32, #tpu.memory_space<vmem>>, %arg3: memref<1x128xf32, #tpu.memory_space<vmem>>, %arg4: memref<16x128xf32, #tpu.memory_space<vmem>>) attributes {dimension_semantics = [#tpu.dimension_semantics<parallel>], iteration_bounds = array<i64: 1>, scalar_prefetch = 0 : i64, scratch_operands = 0 : i64, tpu.core_type = #tpu.core_type<tc>, window_params = [{transform_indices = @transform_0, window_bounds = array<i64: 16, 128>}, {pipeline_mode = #tpu.pipeline_mode<synchronous>, transform_indices = @transform_1, window_bounds = array<i64: 1, 128>}, {pipeline_mode = #tpu.pipeline_mode<synchronous>, transform_indices = @transform_2, window_bounds = array<i64: 1, 128>}, {transform_indices = @transform_3, window_bounds = array<i64: 16, 128>}]} {
    %c0 = arith.constant 0 : index
    %c0_0 = arith.constant 0 : index
    %0 = vector.load %arg1[%c0, %c0_0] : memref<16x128xf32, #tpu.memory_space<vmem>>, vector<16x128xf32>
    %c0_1 = arith.constant 0 : index
    %c0_2 = arith.constant 0 : index
    %1 = vector.load %arg2[%c0_1, %c0_2] : memref<1x128xf32, #tpu.memory_space<vmem>>, vector<1x128xf32>
    %c0_3 = arith.constant 0 : index
    %c0_4 = arith.constant 0 : index
    %2 = vector.load %arg3[%c0_3, %c0_4] : memref<1x128xf32, #tpu.memory_space<vmem>>, vector<1x128xf32>
    %cst = arith.constant dense<0.000000e+00> : vector<16xf32>
    %3 = vector.multi_reduction <add>, %0, %cst [1] : vector<16x128xf32> to vector<16xf32>
    %4 = vector.shape_cast %3 : vector<16xf32> to vector<16x1xf32>
    %cst_5 = arith.constant 1.280000e+02 : f32
    %5 = vector.broadcast %cst_5 : f32 to vector<16x1xf32>
    %6 = arith.divf %4, %5 : vector<16x1xf32>
    %7 = vector.broadcast %6 : vector<16x1xf32> to vector<16x128xf32>
    %8 = arith.subf %0, %7 : vector<16x128xf32>
    %9 = arith.mulf %8, %8 : vector<16x128xf32>
    %cst_6 = arith.constant dense<0.000000e+00> : vector<16xf32>
    %10 = vector.multi_reduction <add>, %9, %cst_6 [1] : vector<16x128xf32> to vector<16xf32>
    %11 = vector.shape_cast %10 : vector<16xf32> to vector<16x1xf32>
    %cst_7 = arith.constant 1.280000e+02 : f32
    %12 = vector.broadcast %cst_7 : f32 to vector<16x1xf32>
    %13 = arith.divf %11, %12 : vector<16x1xf32>
    %cst_8 = arith.constant 9.99999974E-6 : f32
    %14 = vector.broadcast %cst_8 : f32 to vector<16x1xf32>
    %15 = arith.addf %13, %14 : vector<16x1xf32>
    %16 = math.rsqrt %15 : vector<16x1xf32>
    %17 = vector.broadcast %16 : vector<16x1xf32> to vector<16x128xf32>
    %18 = arith.mulf %8, %17 : vector<16x128xf32>
    %19 = vector.broadcast %1 : vector<1x128xf32> to vector<16x128xf32>
    %20 = arith.mulf %18, %19 : vector<16x128xf32>
    %21 = vector.broadcast %2 : vector<1x128xf32> to vector<16x128xf32>
    %22 = arith.addf %20, %21 : vector<16x128xf32>
    %c0_9 = arith.constant 0 : index
    %c0_10 = arith.constant 0 : index
    %23 = vector.load %arg4[%c0_9, %c0_10] : memref<16x128xf32, #tpu.memory_space<vmem>>, vector<16x128xf32>
    tpu.vector_store %arg4[%c0_9, %c0_10], %22 {strides = array<i32>} : memref<16x128xf32, #tpu.memory_space<vmem>>, vector<16x128xf32>,
    return
  }
  func.func @transform_0(%arg0: i32) -> (i32, i32) {
    %c0_i32 = arith.constant 0 : i32
    %c0_i32_0 = arith.constant 0 : i32
    return %arg0, %c0_i32 : i32, i32
  }
  func.func @transform_1(%arg0: i32) -> (i32, i32) {
    %c0_i32 = arith.constant 0 : i32
    %c0_i32_0 = arith.constant 0 : i32
    %c0_i32_1 = arith.constant 0 : i32
    return %c0_i32, %c0_i32_0 : i32, i32
  }
  func.func @transform_2(%arg0: i32) -> (i32, i32) {
    %c0_i32 = arith.constant 0 : i32
    %c0_i32_0 = arith.constant 0 : i32
    %c0_i32_1 = arith.constant 0 : i32
    return %c0_i32, %c0_i32_0 : i32, i32
  }
  func.func @transform_3(%arg0: i32) -> (i32, i32) {
    %c0_i32 = arith.constant 0 : i32
    %c0_i32_0 = arith.constant 0 : i32
    return %arg0, %c0_i32 : i32, i32
  }
}

</mosaic_0001>

<llo_original>
// kernel: transformer_forward.7
$region0: #{transformer_forward.7}
  #allocation0 [shape = 'u32[]', space=smem, size = 0x4, offset = 0x4, fixed_abs, tag = 'smem constant byte address 0x4 - core index']
  #allocation1 [shape = 'u32[144,128]{1,0:T(1,128)}', space=vmem, size = 0x12000, scoped, tag = 'internal scratch']
  %s0 = inlined_call_operand.vmem [shape: f32[2,8,128], index: 0, kind: input, shape index: {}]
  %s1 = inlined_call_operand.vmem [shape: f32[1,128], index: 1, kind: input, shape index: {}]
  %s2 = inlined_call_operand.vmem [shape: f32[1,128], index: 2, kind: input, shape index: {}]
  %s3 = inlined_call_operand.hbm [shape: bf16[128,384], index: 3, kind: input, shape index: {}]
  %s4 = inlined_call_operand.vmem [shape: bf16[2,4,8,32], index: 4, kind: output, shape index: {0}]
  %s5 = inlined_call_operand.vmem [shape: bf16[2,4,8,32], index: 5, kind: output, shape index: {1}]
  %s6 = inlined_call_operand.vmem [shape: bf16[2,4,8,32], index: 6, kind: output, shape index: {2}]
  %7 = xla_tuple %s4, %s5, %s6
  %s8 = sld [smem:[#allocation0]]
  $region69: #{transformer_forward.7} parent=0
    _
  %s10 = ssub.s32 1, %s8
  %s11 = scalar_select 0, %s10, %s8
  $region1: #{transformer_forward.7} parent=0
    #allocation2 [shape = 'u8[98304]{0}', space=vmem, size = 0x18000, scoped, tag = 'input window, operand 3, single buffered']
    #allocation3 [shape = 's32[2]{0}', space=sflag, size = 0x8, scoped, tag = 'scoped memory for transformer_forward.7']
    %12 = vsyncpa [#allocation3], 0
    loop: start=0, step=1, limit=4
    $region2: #{transformer_forward.7} parent=1 // loop_pre_header
      _
    $region3: #{transformer_forward.7} parent=1 // loop_header
      %s14 = sphi 0, %s18
      %p15 = scmp.ge.s32.totalorder %s14, 4
      %s21 = sphi 0, %s33
      %s22 = sphi 0, %s29
      %s23 = sphi 0, %s21
      %s24 = sphi 0, %s22
      %s25 = sphi 0, %s23
      %s26 = sphi 0, %s24
      %s38 = sphi 0, %s40
      %s41 = sphi 0, %s38
      %s42 = sphi 0, %s41
      %s58 = sphi 0, %s42
      %s62 = sphi 0, %s62
      %s64 = sphi 0, %s62
      %s65 = sphi 0, %s64
      %s79 = sphi 0, %s65
      %s83 = sphi 0, %s83
      %s85 = sphi 0, %s83
      %s86 = sphi 0, %s85
      %s100 = sphi 0, %s86
      %s104 = sphi 0, %s104
      %s106 = sphi 0, %s104
      %s107 = sphi 0, %s106
      %s121 = sphi 0, %s107
      %s129 = sphi 0, %s131
      %s132 = sphi 0, %s129
      %s133 = sphi 0, %s132
      %s149 = sphi 0, %s133
      %s157 = sphi 0, %s159
      %s160 = sphi 0, %s157
      %s161 = sphi 0, %s160
      %s177 = sphi 0, %s161
      %s185 = sphi 0, %s187
      %s188 = sphi 0, %s185
      %s189 = sphi 0, %s188
      %s205 = sphi 0, %s189
    $region4: #{transformer_forward.7} parent=1 // loop_header_branch
      %17 = sbr.rel (%p15) target = $region8
    $region5: #{transformer_forward.7} parent=1 // loop_body
      %s19 = ssub.s32 %s14, 1
      %s20 = ssub.s32 %s14, 2
      %s27 = sadd.s32 1, %s22
      %p28 = scmp.ge.s32.totalorder %s27, 1
      %s29 = scalar_select %p28, 0, %s27
      %s30 = sadd.s32 1, %s21
      %s31 = scalar_select %p28, %s30, %s21
      %p32 = scmp.ge.s32.totalorder %s31, 2
      %s33 = scalar_select %p32, 0, %s31
      %s34 = ssub.s32 %s21, %s33
      %s35 = ssub.s32 %s22, %s29
      %s36 = sor.u32 %s34, %s35
      %p37 = scmp.eq.s32.totalorder %s36, 0
      %s39 = sadd.s32 %s38, 1
      %s40 = scalar_select %p37, %s38, %s39
      %p43 = pneg %p37
      %p44 = scmp.eq.s32.totalorder %s14, 1
      %p45 = por %p43, %p44
      %p46 = scmp.ne.s32.totalorder %s38, %s41
      %p47 = scmp.eq.s32.totalorder %s14, 0
      %p48 = por %p46, %p47
      %p49 = scmp.ne.s32.totalorder %s38, %s41
      %p50 = scmp.eq.s32.totalorder %s19, 1
      %p51 = por %p49, %p50
      %p52 = scmp.ne.s32.totalorder %s41, %s42
      %p53 = scmp.eq.s32.totalorder %s19, 0
      %p54 = por %p52, %p53
      %p55 = scmp.ne.s32.totalorder %s41, %s42
      %p56 = scmp.eq.s32.totalorder %s20, 1
      %p57 = por %p55, %p56
      %p59 = scmp.ne.s32.totalorder %s42, %s58
      %p60 = scmp.eq.s32.totalorder %s20, 0
      %p61 = por %p59, %p60
      %s63 = sadd.s32 %s62, 1
      %p66 = scmp.eq.s32.totalorder %s14, 1
      %p67 = scmp.ne.s32.totalorder %s62, %s64
      %p68 = scmp.eq.s32.totalorder %s14, 0
      %p69 = por %p67, %p68
      %p70 = scmp.ne.s32.totalorder %s62, %s64
      %p71 = scmp.eq.s32.totalorder %s19, 1
      %p72 = por %p70, %p71
      %p73 = scmp.ne.s32.totalorder %s64, %s65
      %p74 = scmp.eq.s32.totalorder %s19, 0
      %p75 = por %p73, %p74
      %p76 = scmp.ne.s32.totalorder %s64, %s65
      %p77 = scmp.eq.s32.totalorder %s20, 1
      %p78 = por %p76, %p77
      %p80 = scmp.ne.s32.totalorder %s65, %s79
      %p81 = scmp.eq.s32.totalorder %s20, 0
      %p82 = por %p80, %p81
      %s84 = sadd.s32 %s83, 1
      %p87 = scmp.eq.s32.totalorder %s14, 1
      %p88 = scmp.ne.s32.totalorder %s83, %s85
      %p89 = scmp.eq.s32.totalorder %s14, 0
      %p90 = por %p88, %p89
      %p91 = scmp.ne.s32.totalorder %s83, %s85
      %p92 = scmp.eq.s32.totalorder %s19, 1
      %p93 = por %p91, %p92
      %p94 = scmp.ne.s32.totalorder %s85, %s86
      %p95 = scmp.eq.s32.totalorder %s19, 0
      %p96 = por %p94, %p95
      %p97 = scmp.ne.s32.totalorder %s85, %s86
      %p98 = scmp.eq.s32.totalorder %s20, 1
      %p99 = por %p97, %p98
      %p101 = scmp.ne.s32.totalorder %s86, %s100
      %p102 = scmp.eq.s32.totalorder %s20, 0
      %p103 = por %p101, %p102
      %s105 = sadd.s32 %s104, 1
      %p108 = scmp.eq.s32.totalorder %s14, 1
      %p109 = scmp.ne.s32.totalorder %s104, %s106
      %p110 = scmp.eq.s32.totalorder %s14, 0
      %p111 = por %p109, %p110
      %p112 = scmp.ne.s32.totalorder %s104, %s106
      %p113 = scmp.eq.s32.totalorder %s19, 1
      %p114 = por %p112, %p113
      %p115 = scmp.ne.s32.totalorder %s106, %s107
      %p116 = scmp.eq.s32.totalorder %s19, 0
      %p117 = por %p115, %p116
      %p118 = scmp.ne.s32.totalorder %s106, %s107
      %p119 = scmp.eq.s32.totalorder %s20, 1
      %p120 = por %p118, %p119
      %p122 = scmp.ne.s32.totalorder %s107, %s121
      %p123 = scmp.eq.s32.totalorder %s20, 0
      %p124 = por %p122, %p123
      %s125 = ssub.s32 %s21, %s33
      %s126 = ssub.s32 %s22, %s29
      %s127 = sor.u32 %s125, %s126
      %p128 = scmp.eq.s32.totalorder %s127, 0
      %s130 = sadd.s32 %s129, 1
      %s131 = scalar_select %p128, %s129, %s130
      %p134 = pneg %p128
      %p135 = scmp.eq.s32.totalorder %s14, 1
      %p136 = por %p134, %p135
      %p137 = scmp.ne.s32.totalorder %s129, %s132
      %p138 = scmp.eq.s32.totalorder %s14, 0
      %p139 = por %p137, %p138
      %p140 = scmp.ne.s32.totalorder %s129, %s132
      %p141 = scmp.eq.s32.totalorder %s19, 1
      %p142 = por %p140, %p141
      %p143 = scmp.ne.s32.totalorder %s132, %s133
      %p144 = scmp.eq.s32.totalorder %s19, 0
      %p145 = por %p143, %p144
      %p146 = scmp.ne.s32.totalorder %s132, %s133
      %p147 = scmp.eq.s32.totalorder %s20, 1
      %p148 = por %p146, %p147
      %p150 = scmp.ne.s32.totalorder %s133, %s149
      %p151 = scmp.eq.s32.totalorder %s20, 0
      %p152 = por %p150, %p151
      %s153 = ssub.s32 %s21, %s33
      %s154 = ssub.s32 %s22, %s29
      %s155 = sor.u32 %s153, %s154
      %p156 = scmp.eq.s32.totalorder %s155, 0
      %s158 = sadd.s32 %s157, 1
      %s159 = scalar_select %p156, %s157, %s158
      %p162 = pneg %p156
      %p163 = scmp.eq.s32.totalorder %s14, 1
      %p164 = por %p162, %p163
      %p165 = scmp.ne.s32.totalorder %s157, %s160
      %p166 = scmp.eq.s32.totalorder %s14, 0
      %p167 = por %p165, %p166
      %p168 = scmp.ne.s32.totalorder %s157, %s160
      %p169 = scmp.eq.s32.totalorder %s19, 1
      %p170 = por %p168, %p169
      %p171 = scmp.ne.s32.totalorder %s160, %s161
      %p172 = scmp.eq.s32.totalorder %s19, 0
      %p173 = por %p171, %p172
      %p174 = scmp.ne.s32.totalorder %s160, %s161
      %p175 = scmp.eq.s32.totalorder %s20, 1
      %p176 = por %p174, %p175
      %p178 = scmp.ne.s32.totalorder %s161, %s177
      %p179 = scmp.eq.s32.totalorder %s20, 0
      %p180 = por %p178, %p179
      %s181 = ssub.s32 %s21, %s33
      %s182 = ssub.s32 %s22, %s29
      %s183 = sor.u32 %s181, %s182
      %p184 = scmp.eq.s32.totalorder %s183, 0
      %s186 = sadd.s32 %s185, 1
      %s187 = scalar_select %p184, %s185, %s186
      %p190 = pneg %p184
      %p191 = scmp.eq.s32.totalorder %s14, 1
      %p192 = por %p190, %p191
      %p193 = scmp.ne.s32.totalorder %s185, %s188
      %p194 = scmp.eq.s32.totalorder %s14, 0
      %p195 = por %p193, %p194
      %p196 = scmp.ne.s32.totalorder %s185, %s188
      %p197 = scmp.eq.s32.totalorder %s19, 1
      %p198 = por %p196, %p197
      %p199 = scmp.ne.s32.totalorder %s188, %s189
      %p200 = scmp.eq.s32.totalorder %s19, 0
      %p201 = por %p199, %p200
      %p202 = scmp.ne.s32.totalorder %s188, %s189
      %p203 = scmp.eq.s32.totalorder %s20, 1
      %p204 = por %p202, %p203
      %p206 = scmp.ne.s32.totalorder %s189, %s205
      %p207 = scmp.eq.s32.totalorder %s20, 0
      %p208 = por %p206, %p207
      %p209 = scmp.le.s32.totalorder 1, %s14
      %p210 = scmp.lt.s32.totalorder %s14, 3
      %p211 = pnand %p209, %p210
      %p212 = pneg %p211
      // Predicated region
      $region9: #{transformer_forward.7} parent=5 // pred_check
        _
      $region10: #{transformer_forward.7} parent=5 // pred_check_branch
        %214 = sbr.rel (%p211) target = $region12
      $region11: #{transformer_forward.7} parent=5 // pred_region
        %s215 = ssub.s32 %s14, 1
        // Predicated region
        $region13: #{transformer_forward.7} parent=11 // pred_check
          %p216 = pneg %p75
        $region14: #{transformer_forward.7} parent=11 // pred_check_branch
          %218 = sbr.rel (%p216) target = $region16
        $region15: #{transformer_forward.7} parent=11 // pred_region
          _
        $region16: #{transformer_forward.7} parent=11 // pred_fallthru
          _
        // Predicated region
        $region17: #{transformer_forward.7} parent=11 // pred_check
          %p219 = pneg %p96
        $region18: #{transformer_forward.7} parent=11 // pred_check_branch
          %221 = sbr.rel (%p219) target = $region20
        $region19: #{transformer_forward.7} parent=11 // pred_region
          _
        $region20: #{transformer_forward.7} parent=11 // pred_fallthru
          _
        // Predicated region
        $region21: #{transformer_forward.7} parent=11 // pred_check
          %p222 = pneg %p117
        $region22: #{transformer_forward.7} parent=11 // pred_check_branch
          %224 = sbr.rel (%p222) target = $region24
        $region23: #{transformer_forward.7} parent=11 // pred_region
          %s226 = ssub.s32 3072, 3072
          %227 = vsyncadd [#allocation3], %s226
          %s228 = sshll.u32 [#allocation2], 4
          %s229 = int_to_ptr.vmem [resolvable:$true] %s228
          %234 = dma.hbm_to_vmem [thread:$0]  %s3, 3072, %s229, [#allocation3], 192, 192, 12
        $region24: #{transformer_forward.7} parent=11 // pred_fallthru
          _
      $region12: #{transformer_forward.7} parent=5 // pred_fallthru
        _
      %p235 = scmp.lt.s32.totalorder %s14, 2
      // Predicated region
      $region25: #{transformer_forward.7} parent=5 // pred_check
        %p236 = pneg %p235
      $region26: #{transformer_forward.7} parent=5 // pred_check_branch
        %238 = sbr.rel (%p236) target = $region28
      $region27: #{transformer_forward.7} parent=5 // pred_region
        // Predicated region
        $region29: #{transformer_forward.7} parent=27 // pred_check
          %p239 = pneg %p48
        $region30: #{transformer_forward.7} parent=27 // pred_check_branch
          %241 = sbr.rel (%p239) target = $region32
        $region31: #{transformer_forward.7} parent=27 // pred_region
          %p242 = scmp.lt.s32.totalorder %s21, 1
          %s243 = scalar_select %p242, %s21, 1
          %p244 = scmp.lt.s32.totalorder %s22, 0
          %s245 = scalar_select %p244, %s22, 0
          %s246 = sadd.s32 %s245, %s243
          %s247 = smul.addr %s246, 8
          %s248 = scalar_lea.vmem %s0, %s247
        $region32: #{transformer_forward.7} parent=27 // pred_fallthru
          _
      $region28: #{transformer_forward.7} parent=5 // pred_fallthru
        _
      %p249 = scmp.le.s32.totalorder 1, %s14
      %p250 = scmp.lt.s32.totalorder %s14, 3
      %p251 = pnand %p249, %p250
      %p252 = pneg %p251
      // Predicated region
      $region33: #{transformer_forward.7} parent=5 // pred_check
        _
      $region34: #{transformer_forward.7} parent=5 // pred_check_branch
        %254 = sbr.rel (%p251) target = $region36
      $region35: #{transformer_forward.7} parent=5 // pred_region
        %s255 = ssub.s32 %s14, 1
        // Predicated region
        $region37: #{transformer_forward.7} parent=35 // pred_check
          %p256 = pneg %p117
        $region38: #{transformer_forward.7} parent=35 // pred_check_branch
          %258 = sbr.rel (%p256) target = $region40
        $region39: #{transformer_forward.7} parent=35 // pred_region
          %259 = dma.done [#allocation3], 3072
        $region40: #{transformer_forward.7} parent=35 // pred_fallthru
          _
        %p260 = scmp.lt.s32.totalorder %s23, 1
        %s261 = scalar_select %p260, %s23, 1
        %p262 = scmp.lt.s32.totalorder %s24, 0
        %s263 = scalar_select %p262, %s24, 0
        %s264 = sadd.s32 %s263, %s261
        %s265 = smul.addr %s264, 8
        %s266 = scalar_lea.vmem %s0, %s265
        %p267 = pneg %p54
        %p268 = pneg %p51
        %p269 = pneg %p75
        %p270 = pneg %p72
        %p271 = pneg %p96
        %p272 = pneg %p93
        %p273 = pneg %p117
        %p274 = pneg %p114
        %p275 = pneg %p145
        %p276 = pneg %p142
        %p277 = scmp.lt.s32.totalorder %s23, 1
        %s278 = scalar_select %p277, %s23, 1
        %p279 = scmp.lt.s32.totalorder %s24, 0
        %s280 = scalar_select %p279, %s24, 0
        %s281 = smul.addr %s278, 4
        %s282 = sadd.s32 %s280, %s281
        %s283 = smul.addr %s282, 4
        %s284 = scalar_lea.vmem %s4, %s283
        %p285 = pneg %p173
        %p286 = pneg %p170
        %p287 = scmp.lt.s32.totalorder %s23, 1
        %s288 = scalar_select %p287, %s23, 1
        %p289 = scmp.lt.s32.totalorder %s24, 0
        %s290 = scalar_select %p289, %s24, 0
        %s291 = smul.addr %s288, 4
        %s292 = sadd.s32 %s290, %s291
        %s293 = smul.addr %s292, 4
        %s294 = scalar_lea.vmem %s5, %s293
        %p295 = pneg %p201
        %p296 = pneg %p198
        %p297 = scmp.lt.s32.totalorder %s23, 1
        %s298 = scalar_select %p297, %s23, 1
        %p299 = scmp.lt.s32.totalorder %s24, 0
        %s300 = scalar_select %p299, %s24, 0
        %s301 = smul.addr %s298, 4
        %s302 = sadd.s32 %s300, %s301
        %s303 = smul.addr %s302, 4
        %s304 = scalar_lea.vmem %s6, %s303
        %p305 = scmp.lt.s32.totalorder %s23, 1
        %s306 = scalar_select %p305, %s23, 1
        %p307 = scmp.lt.s32.totalorder %s24, 0
        %s308 = scalar_select %p307, %s24, 0
        %s309 = sadd.s32 %s308, %s306
        %s310 = smul.addr %s309, 8
        %s311 = scalar_lea.vmem %s0, %s310
        %p312 = scmp.lt.s32.totalorder %s23, 1
        %s313 = scalar_select %p312, %s23, 1
        %p314 = scmp.lt.s32.totalorder %s24, 0
        %s315 = scalar_select %p314, %s24, 0
        %s316 = smul.addr %s313, 4
        %s317 = sadd.s32 %s315, %s316
        %s318 = smul.addr %s317, 4
        %s319 = scalar_lea.vmem %s4, %s318
        %p320 = scmp.lt.s32.totalorder %s23, 1
        %s321 = scalar_select %p320, %s23, 1
        %p322 = scmp.lt.s32.totalorder %s24, 0
        %s323 = scalar_select %p322, %s24, 0
        %s324 = smul.addr %s321, 4
        %s325 = sadd.s32 %s323, %s324
        %s326 = smul.addr %s325, 4
        %s327 = scalar_lea.vmem %s5, %s326
        %p328 = scmp.lt.s32.totalorder %s23, 1
        %s329 = scalar_select %p328, %s23, 1
        %p330 = scmp.lt.s32.totalorder %s24, 0
        %s331 = scalar_select %p330, %s24, 0
        %s332 = smul.addr %s329, 4
        %s333 = sadd.s32 %s331, %s332
        %s334 = smul.addr %s333, 4
        %s335 = scalar_lea.vmem %s6, %s334
        %v337 = vld [vmem:[%s311] sm:$0xff]
        %v338 = vld [vmem:[%s1] sm:$0x1]
        %v339 = vld [vmem:[%s2] sm:$0x1]
        %340 = vadd.xlane.f32.xlu0 %v337
        %v341 = vpop.xlane.xlu0 %340
        %v342 = vrcp.pop 128.0
        %v343 = vmul.f32 %v341, %v342
        %v344 = vsub.f32 %v337, %v343
        %v345 = vmul.f32 %v344, %v344
        %346 = vadd.xlane.f32.xlu0 %v345
        %v347 = vpop.xlane.xlu0 %346
        %v348 = vmul.f32 %v347, %v342
        %v349 = vadd.f32 %v348, 1e-05
        %v350 = vrsqrt.pop %v349
        %v351 = vmul.f32 %v344, %v350
        %v353 = vlaneseq
        %v354 = vshrl.u32 %v353, 7
        %v355 = vsub.s32 0, %v354
        %v356 = vrot.slane %v338, %v355
        %v358 = vmul.f32 %v351, %v356
        %v360 = vlaneseq
        %v361 = vshrl.u32 %v360, 7
        %v362 = vsub.s32 0, %v361
        %v363 = vrot.slane %v339, %v362
        %v365 = vadd.f32 %v358, %v363
        %v366 = vpack.c.bf16 %v365, %v365
        %v367 = vld [vmem:[#allocation2] sm:$0xff]
        %v368 = vld [vmem:[#allocation2 + $0x8] sm:$0xf]
        %v369 = vld [vmem:[#allocation2 + $0xc] sm:$0xff]
        %v370 = vld [vmem:[#allocation2 + $0x14] sm:$0xf]
        %v371 = vld [vmem:[#allocation2 + $0x18] sm:$0xff]
        %v372 = vld [vmem:[#allocation2 + $0x20] sm:$0xf]
        %v373 = vld [vmem:[#allocation2 + $0x24] sm:$0xff]
        %v374 = vld [vmem:[#allocation2 + $0x2c] sm:$0xf]
        %v375 = vld [vmem:[#allocation2 + $0x30] sm:$0xff]
        %v376 = vld [vmem:[#allocation2 + $0x38] sm:$0xf]
        %v377 = vld [vmem:[#allocation2 + $0x3c] sm:$0xff]
        %v378 = vld [vmem:[#allocation2 + $0x44] sm:$0xf]
        %v379 = vld [vmem:[#allocation2 + $0x48] sm:$0xff]
        %v380 = vld [vmem:[#allocation2 + $0x50] sm:$0xf]
        %v381 = vld [vmem:[#allocation2 + $0x54] sm:$0xff]
        %v382 = vld [vmem:[#allocation2 + $0x5c] sm:$0xf]
        %v383 = vld [vmem:[#allocation2 + $0x60] sm:$0xff]
        %v384 = vld [vmem:[#allocation2 + $0x68] sm:$0xf]
        %v385 = vld [vmem:[#allocation2 + $0x6c] sm:$0xff]
        %v386 = vld [vmem:[#allocation2 + $0x74] sm:$0xf]
        %v387 = vld [vmem:[#allocation2 + $0x78] sm:$0xff]
        %v388 = vld [vmem:[#allocation2 + $0x80] sm:$0xf]
        %v389 = vld [vmem:[#allocation2 + $0x84] sm:$0xff]
        %v390 = vld [vmem:[#allocation2 + $0x8c] sm:$0xf]
        %v391 = vld [vmem:[#allocation2 + $0x90] sm:$0xff]
        %v392 = vld [vmem:[#allocation2 + $0x98] sm:$0xf]
        %v393 = vld [vmem:[#allocation2 + $0x9c] sm:$0xff]
        %v394 = vld [vmem:[#allocation2 + $0xa4] sm:$0xf]
        %v395 = vld [vmem:[#allocation2 + $0xa8] sm:$0xff]
        %v396 = vld [vmem:[#allocation2 + $0xb0] sm:$0xf]
        %v397 = vld [vmem:[#allocation2 + $0xb4] sm:$0xff]
        %v398 = vld [vmem:[#allocation2 + $0xbc] sm:$0xf]
        %v431 = vunpack.c.l.b16 %v367
        %v432 = vunpack.c.h.b16 %v367
        %v433 = vunpack.c.l.b16 %v368
        %v434 = vunpack.c.l.b16 %v369
        %v435 = vunpack.c.h.b16 %v369
        %v436 = vunpack.c.l.b16 %v370
        %v437 = vunpack.c.l.b16 %v371
        %v438 = vunpack.c.h.b16 %v371
        %v439 = vunpack.c.l.b16 %v372
        %v440 = vunpack.c.l.b16 %v373
        %v441 = vunpack.c.h.b16 %v373
        %v442 = vunpack.c.l.b16 %v374
        %v443 = vunpack.c.l.b16 %v375
        %v444 = vunpack.c.h.b16 %v375
        %v445 = vunpack.c.l.b16 %v376
        %v446 = vunpack.c.l.b16 %v377
        %v447 = vunpack.c.h.b16 %v377
        %v448 = vunpack.c.l.b16 %v378
        %v449 = vunpack.c.l.b16 %v379
        %v450 = vunpack.c.h.b16 %v379
        %v451 = vunpack.c.l.b16 %v380
        %v452 = vunpack.c.l.b16 %v381
        %v453 = vunpack.c.h.b16 %v381
        %v454 = vunpack.c.l.b16 %v382
        %v455 = vunpack.c.l.b16 %v383
        %v456 = vunpack.c.h.b16 %v383
        %v457 = vunpack.c.l.b16 %v384
        %v458 = vunpack.c.l.b16 %v385
        %v459 = vunpack.c.h.b16 %v385
        %v460 = vunpack.c.l.b16 %v386
        %v461 = vunpack.c.l.b16 %v387
        %v462 = vunpack.c.h.b16 %v387
        %v463 = vunpack.c.l.b16 %v388
        %v464 = vunpack.c.l.b16 %v389
        %v465 = vunpack.c.h.b16 %v389
        %v466 = vunpack.c.l.b16 %v390
        %v467 = vunpack.c.l.b16 %v391
        %v468 = vunpack.c.h.b16 %v391
        %v469 = vunpack.c.l.b16 %v392
        %v470 = vunpack.c.l.b16 %v393
        %v471 = vunpack.c.h.b16 %v393
        %v472 = vunpack.c.l.b16 %v394
        %v473 = vunpack.c.l.b16 %v395
        %v474 = vunpack.c.h.b16 %v395
        %v475 = vunpack.c.l.b16 %v396
        %v476 = vunpack.c.l.b16 %v397
        %v477 = vunpack.c.h.b16 %v397
        %v478 = vunpack.c.l.b16 %v398
        %v479 = vpack.c.b16 %v434, %v431
        %v480 = vpack.c.b16 %v435, %v432
        %v481 = vpack.c.b16 %v436, %v433
        %v482 = vpack.c.b16 %v440, %v437
        %v483 = vpack.c.b16 %v441, %v438
        %v484 = vpack.c.b16 %v442, %v439
        %v485 = vpack.c.b16 %v446, %v443
        %v486 = vpack.c.b16 %v447, %v444
        %v487 = vpack.c.b16 %v448, %v445
        %v488 = vpack.c.b16 %v452, %v449
        %v489 = vpack.c.b16 %v453, %v450
        %v490 = vpack.c.b16 %v454, %v451
        %v491 = vpack.c.b16 %v458, %v455
        %v492 = vpack.c.b16 %v459, %v456
        %v493 = vpack.c.b16 %v460, %v457
        %v494 = vpack.c.b16 %v464, %v461
        %v495 = vpack.c.b16 %v465, %v462
        %v496 = vpack.c.b16 %v466, %v463
        %v497 = vpack.c.b16 %v470, %v467
        %v498 = vpack.c.b16 %v471, %v468
        %v499 = vpack.c.b16 %v472, %v469
        %v500 = vpack.c.b16 %v476, %v473
        %v501 = vpack.c.b16 %v477, %v474
        %v502 = vpack.c.b16 %v478, %v475
        %527 = vmatprep.subr.bf16.mxu0 %v480
        %528 = vmatpush1.bf16.msra.mxu0 %v479
        %529 = vmatprep.subr.bf16.mxu0 %v483
        %530 = vmatpush1.bf16.msra.mxu0 %v482
        %531 = vmatprep.subr.bf16.mxu0 %v486
        %532 = vmatpush1.bf16.msra.mxu0 %v485
        %533 = vmatprep.subr.bf16.mxu0 %v489
        %534 = vmatpush1.bf16.msra.mxu0 %v488
        %535 = vmatprep.subr.bf16.mxu0 %v492
        %536 = vmatpush1.bf16.msra.mxu0 %v491
        %537 = vmatprep.subr.bf16.mxu0 %v495
        %538 = vmatpush1.bf16.msra.mxu0 %v494
        %539 = vmatprep.subr.bf16.mxu0 %v498
        %540 = vmatpush1.bf16.msra.mxu0 %v497
        %541 = vmatprep.subr.bf16.mxu0 %v501
        %542 = vmatpush1.bf16.msra.mxu0 %v500
        %543 = vmatprep.subr.bf16.mxu0 0
        %544 = vmatpush1.bf16.msra.mxu0 0
        %545 = vmatprep.subr.bf16.mxu0 0
        %546 = vmatpush1.bf16.msra.mxu0 0
        %547 = vmatprep.subr.bf16.mxu0 0
        %548 = vmatpush1.bf16.msra.mxu0 0
        %549 = vmatprep.subr.bf16.mxu0 0
        %550 = vmatpush1.bf16.msra.mxu0 0
        %551 = vmatprep.subr.bf16.mxu0 0
        %552 = vmatpush1.bf16.msra.mxu0 0
        %553 = vmatprep.subr.bf16.mxu0 0
        %554 = vmatpush1.bf16.msra.mxu0 0
        %555 = vmatprep.subr.bf16.mxu0 0
        %556 = vmatpush1.bf16.msra.mxu0 0
        %557 = vmatprep.subr.bf16.mxu0 0
        %558 = vmatpush1.bf16.msra.mxu0 0
        %559 = vmatprep.mubr.bf16.mxu0 0
        %560 = vmatmul.mubr.bf16.gmra.mrb[0].mxu0 %v366
        %v561 = vpop.f32.mrb[0].mxu0
        %v562 = vadd.f32 0.0, %v561
        %v563 = vpop.f32.mrb[0].mxu0
        %v564 = vadd.f32 0.0, %v563
        %v565 = vpop.f32.mrb[0].mxu0
        %v566 = vpop.f32.mrb[0].mxu0
        %567 = vdwg.mxu0
        %568 = vmatprep.subr.bf16.mxu0 0
        %569 = vmatpush1.bf16.msra.mxu0 %v481
        %570 = vmatprep.subr.bf16.mxu0 0
        %571 = vmatpush1.bf16.msra.mxu0 %v484
        %572 = vmatprep.subr.bf16.mxu0 0
        %573 = vmatpush1.bf16.msra.mxu0 %v487
        %574 = vmatprep.subr.bf16.mxu0 0
        %575 = vmatpush1.bf16.msra.mxu0 %v490
        %576 = vmatprep.subr.bf16.mxu0 0
        %577 = vmatpush1.bf16.msra.mxu0 %v493
        %578 = vmatprep.subr.bf16.mxu0 0
        %579 = vmatpush1.bf16.msra.mxu0 %v496
        %580 = vmatprep.subr.bf16.mxu0 0
        %581 = vmatpush1.bf16.msra.mxu0 %v499
        %582 = vmatprep.subr.bf16.mxu0 0
        %583 = vmatpush1.bf16.msra.mxu0 %v502
        %584 = vmatprep.subr.bf16.mxu0 0
        %585 = vmatpush1.bf16.msra.mxu0 0
        %586 = vmatprep.subr.bf16.mxu0 0
        %587 = vmatpush1.bf16.msra.mxu0 0
        %588 = vmatprep.subr.bf16.mxu0 0
        %589 = vmatpush1.bf16.msra.mxu0 0
        %590 = vmatprep.subr.bf16.mxu0 0
        %591 = vmatpush1.bf16.msra.mxu0 0
        %592 = vmatprep.subr.bf16.mxu0 0
        %593 = vmatpush1.bf16.msra.mxu0 0
        %594 = vmatprep.subr.bf16.mxu0 0
        %595 = vmatpush1.bf16.msra.mxu0 0
        %596 = vmatprep.subr.bf16.mxu0 0
        %597 = vmatpush1.bf16.msra.mxu0 0
        %598 = vmatprep.subr.bf16.mxu0 0
        %599 = vmatpush1.bf16.msra.mxu0 0
        %600 = vmatprep.mubr.bf16.mxu0 0
        %601 = vmatmul.mubr.bf16.gmra.mrb[0].mxu0 %v366
        %v602 = vpop.f32.mrb[0].mxu0
        %v603 = vadd.f32 0.0, %v602
        %v604 = vpop.f32.mrb[0].mxu0
        %v605 = vpop.f32.mrb[0].mxu0
        %v606 = vpop.f32.mrb[0].mxu0
        %607 = vdwg.mxu0
        %v608 = vmul.f32 %v562, 0.17677669
        %v609 = vpack.c.bf16 %v608, %v608
        %vm610 = vcmask 257024
        %611 = vst.msk [vmem:[%s319] sm:$0xf] %vm610, %v609
        %v612 = vpack.c.bf16 %v564, %v564
        %613 = vst.msk [vmem:[%s327] sm:$0xf] %vm610, %v612
        %v614 = vpack.c.bf16 %v603, %v603
        %615 = vst.msk [vmem:[%s335] sm:$0xf] %vm610, %v614
        %v617 = vunpack.c.l.b16 %v609
        %v618 = vpack.c.b16 %v617, %v617
        %619 = vrot.lane.b32.xlu0 %v618, 96
        %v620 = vpop.permute.xlu0 %619
        %s622 = scalar_lea.vmem %s319, 4
        %623 = vst.msk [vmem:[%s622] sm:$0xf] %vm610, %v620
        %v625 = vunpack.c.l.b16 %v612
        %v626 = vpack.c.b16 %v625, %v625
        %627 = vrot.lane.b32.xlu0 %v626, 96
        %v628 = vpop.permute.xlu0 %627
        %s630 = scalar_lea.vmem %s327, 4
        %631 = vst.msk [vmem:[%s630] sm:$0xf] %vm610, %v628
        %v633 = vunpack.c.l.b16 %v614
        %v634 = vpack.c.b16 %v633, %v633
        %635 = vrot.lane.b32.xlu0 %v634, 96
        %v636 = vpop.permute.xlu0 %635
        %s638 = scalar_lea.vmem %s335, 4
        %639 = vst.msk [vmem:[%s638] sm:$0xf] %vm610, %v636
        %640 = vrot.lane.b32.xlu0 %v618, 64
        %v641 = vpop.permute.xlu0 %640
        %s643 = scalar_lea.vmem %s319, 8
        %644 = vst.msk [vmem:[%s643] sm:$0xf] %vm610, %v641
        %645 = vrot.lane.b32.xlu0 %v626, 64
        %v646 = vpop.permute.xlu0 %645
        %s648 = scalar_lea.vmem %s327, 8
        %649 = vst.msk [vmem:[%s648] sm:$0xf] %vm610, %v646
        %650 = vrot.lane.b32.xlu0 %v634, 64
        %v651 = vpop.permute.xlu0 %650
        %s653 = scalar_lea.vmem %s335, 8
        %654 = vst.msk [vmem:[%s653] sm:$0xf] %vm610, %v651
        %655 = vrot.lane.b32.xlu0 %v618, 32
        %v656 = vpop.permute.xlu0 %655
        %s658 = scalar_lea.vmem %s319, 12
        %659 = vst.msk [vmem:[%s658] sm:$0xf] %vm610, %v656
        %660 = vrot.lane.b32.xlu0 %v626, 32
        %v661 = vpop.permute.xlu0 %660
        %s663 = scalar_lea.vmem %s327, 12
        %664 = vst.msk [vmem:[%s663] sm:$0xf] %vm610, %v661
        %665 = vrot.lane.b32.xlu0 %v634, 32
        %v666 = vpop.permute.xlu0 %665
        %s668 = scalar_lea.vmem %s335, 12
        %669 = vst.msk [vmem:[%s668] sm:$0xf] %vm610, %v666
        %p670 = scmp.lt.s32.totalorder %s23, 1
        %s671 = scalar_select %p670, %s23, 1
        %p672 = scmp.lt.s32.totalorder %s24, 0
        %s673 = scalar_select %p672, %s24, 0
        %s674 = smul.addr %s671, 4
        %s675 = sadd.s32 %s673, %s674
        %s676 = smul.addr %s675, 4
        %s677 = scalar_lea.vmem %s4, %s676
        %p678 = scmp.lt.s32.totalorder %s23, 1
        %s679 = scalar_select %p678, %s23, 1
        %p680 = scmp.lt.s32.totalorder %s24, 0
        %s681 = scalar_select %p680, %s24, 0
        %s682 = smul.addr %s679, 4
        %s683 = sadd.s32 %s681, %s682
        %s684 = smul.addr %s683, 4
        %s685 = scalar_lea.vmem %s5, %s684
        %p686 = scmp.lt.s32.totalorder %s23, 1
        %s687 = scalar_select %p686, %s23, 1
        %p688 = scmp.lt.s32.totalorder %s24, 0
        %s689 = scalar_select %p688, %s24, 0
        %s690 = smul.addr %s687, 4
        %s691 = sadd.s32 %s689, %s690
        %s692 = smul.addr %s691, 4
        %s693 = scalar_lea.vmem %s6, %s692
        // Predicated region
        $region41: #{transformer_forward.7} parent=35 // pred_check
          %p694 = pneg %p142
        $region42: #{transformer_forward.7} parent=35 // pred_check_branch
          %696 = sbr.rel (%p694) target = $region44
        $region43: #{transformer_forward.7} parent=35 // pred_region
          _
        $region44: #{transformer_forward.7} parent=35 // pred_fallthru
          _
        // Predicated region
        $region45: #{transformer_forward.7} parent=35 // pred_check
          %p697 = pneg %p170
        $region46: #{transformer_forward.7} parent=35 // pred_check_branch
          %699 = sbr.rel (%p697) target = $region48
        $region47: #{transformer_forward.7} parent=35 // pred_region
          _
        $region48: #{transformer_forward.7} parent=35 // pred_fallthru
          _
        // Predicated region
        $region49: #{transformer_forward.7} parent=35 // pred_check
          %p700 = pneg %p198
        $region50: #{transformer_forward.7} parent=35 // pred_check_branch
          %702 = sbr.rel (%p700) target = $region52
        $region51: #{transformer_forward.7} parent=35 // pred_region
          _
        $region52: #{transformer_forward.7} parent=35 // pred_fallthru
          _
      $region36: #{transformer_forward.7} parent=5 // pred_fallthru
        _
      %p703 = scmp.le.s32.totalorder 2, %s14
      // Predicated region
      $region53: #{transformer_forward.7} parent=5 // pred_check
        %p704 = pneg %p703
      $region54: #{transformer_forward.7} parent=5 // pred_check_branch
        %706 = sbr.rel (%p704) target = $region56
      $region55: #{transformer_forward.7} parent=5 // pred_region
        %s707 = ssub.s32 %s14, 2
        // Predicated region
        $region57: #{transformer_forward.7} parent=55 // pred_check
          %p708 = pneg %p148
        $region58: #{transformer_forward.7} parent=55 // pred_check_branch
          %710 = sbr.rel (%p708) target = $region60
        $region59: #{transformer_forward.7} parent=55 // pred_region
          %p711 = scmp.lt.s32.totalorder %s25, 1
          %s712 = scalar_select %p711, %s25, 1
          %p713 = scmp.lt.s32.totalorder %s26, 0
          %s714 = scalar_select %p713, %s26, 0
          %s715 = smul.addr %s712, 4
          %s716 = sadd.s32 %s714, %s715
          %s717 = smul.addr %s716, 4
          %s718 = scalar_lea.vmem %s4, %s717
        $region60: #{transformer_forward.7} parent=55 // pred_fallthru
          _
        // Predicated region
        $region61: #{transformer_forward.7} parent=55 // pred_check
          %p719 = pneg %p176
        $region62: #{transformer_forward.7} parent=55 // pred_check_branch
          %721 = sbr.rel (%p719) target = $region64
        $region63: #{transformer_forward.7} parent=55 // pred_region
          %p722 = scmp.lt.s32.totalorder %s25, 1
          %s723 = scalar_select %p722, %s25, 1
          %p724 = scmp.lt.s32.totalorder %s26, 0
          %s725 = scalar_select %p724, %s26, 0
          %s726 = smul.addr %s723, 4
          %s727 = sadd.s32 %s725, %s726
          %s728 = smul.addr %s727, 4
          %s729 = scalar_lea.vmem %s5, %s728
        $region64: #{transformer_forward.7} parent=55 // pred_fallthru
          _
        // Predicated region
        $region65: #{transformer_forward.7} parent=55 // pred_check
          %p730 = pneg %p204
        $region66: #{transformer_forward.7} parent=55 // pred_check_branch
          %732 = sbr.rel (%p730) target = $region68
        $region67: #{transformer_forward.7} parent=55 // pred_region
          %p733 = scmp.lt.s32.totalorder %s25, 1
          %s734 = scalar_select %p733, %s25, 1
          %p735 = scmp.lt.s32.totalorder %s26, 0
          %s736 = scalar_select %p735, %s26, 0
          %s737 = smul.addr %s734, 4
          %s738 = sadd.s32 %s736, %s737
          %s739 = smul.addr %s738, 4
          %s740 = scalar_lea.vmem %s6, %s739
        $region68: #{transformer_forward.7} parent=55 // pred_fallthru
          _
      $region56: #{transformer_forward.7} parent=5 // pred_fallthru
        _
    $region6: #{transformer_forward.7} parent=1 // loop_footer
      %s18 = sadd.s32 1, %s14
    $region7: #{transformer_forward.7} parent=1 // loop_footer_branch
      %13 = sbr.rel target = $region3
    $region8: #{transformer_forward.7} parent=1 // loop_exit
      _
    %741 = vsyncpa [#allocation3], 1
    %s742 = scalar_lea.sflag [#allocation3], 1
    %743 = vsyncpa %s742, 1

// kernel: transformer_forward.10
$region0: #{transformer_forward.10}
  #allocation0 [shape = 'u32[]', space=smem, size = 0x4, offset = 0x4, fixed_abs, tag = 'smem constant byte address 0x4 - core index']
  #allocation1 [shape = 'u32[144,128]{1,0:T(1,128)}', space=vmem, size = 0x12000, scoped, tag = 'internal scratch']
  %s0 = inlined_call_operand.vmem [shape: f32[2,8,128], index: 0, kind: input, shape index: {}]
  %s1 = inlined_call_operand.vmem [shape: f32[1,128], index: 1, kind: input, shape index: {}]
  %s2 = inlined_call_operand.vmem [shape: f32[1,128], index: 2, kind: input, shape index: {}]
  %s3 = inlined_call_operand.vmem [shape: bf16[128,384], index: 3, kind: input, shape index: {}]
  %s4 = inlined_call_operand.vmem [shape: bf16[2,4,8,32], index: 4, kind: output, shape index: {0}]
  %s5 = inlined_call_operand.vmem [shape: bf16[2,4,8,32], index: 5, kind: output, shape index: {1}]
  %s6 = inlined_call_operand.vmem [shape: bf16[2,4,8,32], index: 6, kind: output, shape index: {2}]
  %7 = xla_tuple %s4, %s5, %s6
  %s8 = sld [smem:[#allocation0]]
  $region65: #{transformer_forward.10} parent=0
    _
  %s10 = ssub.s32 1, %s8
  %s11 = scalar_select 0, %s10, %s8
  loop: start=0, step=1, limit=4
  $region2: #{transformer_forward.10} parent=0 // loop_pre_header
    _
  $region3: #{transformer_forward.10} parent=0 // loop_header
    %s13 = sphi 0, %s17
    %p14 = scmp.ge.s32.totalorder %s13, 4
    %s20 = sphi 0, %s32
    %s21 = sphi 0, %s28
    %s22 = sphi 0, %s20
    %s23 = sphi 0, %s21
    %s24 = sphi 0, %s22
    %s25 = sphi 0, %s23
    %s37 = sphi 0, %s39
    %s40 = sphi 0, %s37
    %s41 = sphi 0, %s40
    %s57 = sphi 0, %s41
    %s61 = sphi 0, %s61
    %s63 = sphi 0, %s61
    %s64 = sphi 0, %s63
    %s78 = sphi 0, %s64
    %s82 = sphi 0, %s82
    %s84 = sphi 0, %s82
    %s85 = sphi 0, %s84
    %s99 = sphi 0, %s85
    %s103 = sphi 0, %s103
    %s105 = sphi 0, %s103
    %s106 = sphi 0, %s105
    %s120 = sphi 0, %s106
    %s128 = sphi 0, %s130
    %s131 = sphi 0, %s128
    %s132 = sphi 0, %s131
    %s148 = sphi 0, %s132
    %s156 = sphi 0, %s158
    %s159 = sphi 0, %s156
    %s160 = sphi 0, %s159
    %s176 = sphi 0, %s160
    %s184 = sphi 0, %s186
    %s187 = sphi 0, %s184
    %s188 = sphi 0, %s187
    %s204 = sphi 0, %s188
  $region4: #{transformer_forward.10} parent=0 // loop_header_branch
    %16 = sbr.rel (%p14) target = $region8
  $region5: #{transformer_forward.10} parent=0 // loop_body
    %s18 = ssub.s32 %s13, 1
    %s19 = ssub.s32 %s13, 2
    %s26 = sadd.s32 1, %s21
    %p27 = scmp.ge.s32.totalorder %s26, 1
    %s28 = scalar_select %p27, 0, %s26
    %s29 = sadd.s32 1, %s20
    %s30 = scalar_select %p27, %s29, %s20
    %p31 = scmp.ge.s32.totalorder %s30, 2
    %s32 = scalar_select %p31, 0, %s30
    %s33 = ssub.s32 %s20, %s32
    %s34 = ssub.s32 %s21, %s28
    %s35 = sor.u32 %s33, %s34
    %p36 = scmp.eq.s32.totalorder %s35, 0
    %s38 = sadd.s32 %s37, 1
    %s39 = scalar_select %p36, %s37, %s38
    %p42 = pneg %p36
    %p43 = scmp.eq.s32.totalorder %s13, 1
    %p44 = por %p42, %p43
    %p45 = scmp.ne.s32.totalorder %s37, %s40
    %p46 = scmp.eq.s32.totalorder %s13, 0
    %p47 = por %p45, %p46
    %p48 = scmp.ne.s32.totalorder %s37, %s40
    %p49 = scmp.eq.s32.totalorder %s18, 1
    %p50 = por %p48, %p49
    %p51 = scmp.ne.s32.totalorder %s40, %s41
    %p52 = scmp.eq.s32.totalorder %s18, 0
    %p53 = por %p51, %p52
    %p54 = scmp.ne.s32.totalorder %s40, %s41
    %p55 = scmp.eq.s32.totalorder %s19, 1
    %p56 = por %p54, %p55
    %p58 = scmp.ne.s32.totalorder %s41, %s57
    %p59 = scmp.eq.s32.totalorder %s19, 0
    %p60 = por %p58, %p59
    %s62 = sadd.s32 %s61, 1
    %p65 = scmp.eq.s32.totalorder %s13, 1
    %p66 = scmp.ne.s32.totalorder %s61, %s63
    %p67 = scmp.eq.s32.totalorder %s13, 0
    %p68 = por %p66, %p67
    %p69 = scmp.ne.s32.totalorder %s61, %s63
    %p70 = scmp.eq.s32.totalorder %s18, 1
    %p71 = por %p69, %p70
    %p72 = scmp.ne.s32.totalorder %s63, %s64
    %p73 = scmp.eq.s32.totalorder %s18, 0
    %p74 = por %p72, %p73
    %p75 = scmp.ne.s32.totalorder %s63, %s64
    %p76 = scmp.eq.s32.totalorder %s19, 1
    %p77 = por %p75, %p76
    %p79 = scmp.ne.s32.totalorder %s64, %s78
    %p80 = scmp.eq.s32.totalorder %s19, 0
    %p81 = por %p79, %p80
    %s83 = sadd.s32 %s82, 1
    %p86 = scmp.eq.s32.totalorder %s13, 1
    %p87 = scmp.ne.s32.totalorder %s82, %s84
    %p88 = scmp.eq.s32.totalorder %s13, 0
    %p89 = por %p87, %p88
    %p90 = scmp.ne.s32.totalorder %s82, %s84
    %p91 = scmp.eq.s32.totalorder %s18, 1
    %p92 = por %p90, %p91
    %p93 = scmp.ne.s32.totalorder %s84, %s85
    %p94 = scmp.eq.s32.totalorder %s18, 0
    %p95 = por %p93, %p94
    %p96 = scmp.ne.s32.totalorder %s84, %s85
    %p97 = scmp.eq.s32.totalorder %s19, 1
    %p98 = por %p96, %p97
    %p100 = scmp.ne.s32.totalorder %s85, %s99
    %p101 = scmp.eq.s32.totalorder %s19, 0
    %p102 = por %p100, %p101
    %s104 = sadd.s32 %s103, 1
    %p107 = scmp.eq.s32.totalorder %s13, 1
    %p108 = scmp.ne.s32.totalorder %s103, %s105
    %p109 = scmp.eq.s32.totalorder %s13, 0
    %p110 = por %p108, %p109
    %p111 = scmp.ne.s32.totalorder %s103, %s105
    %p112 = scmp.eq.s32.totalorder %s18, 1
    %p113 = por %p111, %p112
    %p114 = scmp.ne.s32.totalorder %s105, %s106
    %p115 = scmp.eq.s32.totalorder %s18, 0
    %p116 = por %p114, %p115
    %p117 = scmp.ne.s32.totalorder %s105, %s106
    %p118 = scmp.eq.s32.totalorder %s19, 1
    %p119 = por %p117, %p118
    %p121 = scmp.ne.s32.totalorder %s106, %s120
    %p122 = scmp.eq.s32.totalorder %s19, 0
    %p123 = por %p121, %p122
    %s124 = ssub.s32 %s20, %s32
    %s125 = ssub.s32 %s21, %s28
    %s126 = sor.u32 %s124, %s125
    %p127 = scmp.eq.s32.totalorder %s126, 0
    %s129 = sadd.s32 %s128, 1
    %s130 = scalar_select %p127, %s128, %s129
    %p133 = pneg %p127
    %p134 = scmp.eq.s32.totalorder %s13, 1
    %p135 = por %p133, %p134
    %p136 = scmp.ne.s32.totalorder %s128, %s131
    %p137 = scmp.eq.s32.totalorder %s13, 0
    %p138 = por %p136, %p137
    %p139 = scmp.ne.s32.totalorder %s128, %s131
    %p140 = scmp.eq.s32.totalorder %s18, 1
    %p141 = por %p139, %p140
    %p142 = scmp.ne.s32.totalorder %s131, %s132
    %p143 = scmp.eq.s32.totalorder %s18, 0
    %p144 = por %p142, %p143
    %p145 = scmp.ne.s32.totalorder %s131, %s132
    %p146 = scmp.eq.s32.totalorder %s19, 1
    %p147 = por %p145, %p146
    %p149 = scmp.ne.s32.totalorder %s132, %s148
    %p150 = scmp.eq.s32.totalorder %s19, 0
    %p151 = por %p149, %p150
    %s152 = ssub.s32 %s20, %s32
    %s153 = ssub.s32 %s21, %s28
    %s154 = sor.u32 %s152, %s153
    %p155 = scmp.eq.s32.totalorder %s154, 0
    %s157 = sadd.s32 %s156, 1
    %s158 = scalar_select %p155, %s156, %s157
    %p161 = pneg %p155
    %p162 = scmp.eq.s32.totalorder %s13, 1
    %p163 = por %p161, %p162
    %p164 = scmp.ne.s32.totalorder %s156, %s159
    %p165 = scmp.eq.s32.totalorder %s13, 0
    %p166 = por %p164, %p165
    %p167 = scmp.ne.s32.totalorder %s156, %s159
    %p168 = scmp.eq.s32.totalorder %s18, 1
    %p169 = por %p167, %p168
    %p170 = scmp.ne.s32.totalorder %s159, %s160
    %p171 = scmp.eq.s32.totalorder %s18, 0
    %p172 = por %p170, %p171
    %p173 = scmp.ne.s32.totalorder %s159, %s160
    %p174 = scmp.eq.s32.totalorder %s19, 1
    %p175 = por %p173, %p174
    %p177 = scmp.ne.s32.totalorder %s160, %s176
    %p178 = scmp.eq.s32.totalorder %s19, 0
    %p179 = por %p177, %p178
    %s180 = ssub.s32 %s20, %s32
    %s181 = ssub.s32 %s21, %s28
    %s182 = sor.u32 %s180, %s181
    %p183 = scmp.eq.s32.totalorder %s182, 0
    %s185 = sadd.s32 %s184, 1
    %s186 = scalar_select %p183, %s184, %s185
    %p189 = pneg %p183
    %p190 = scmp.eq.s32.totalorder %s13, 1
    %p191 = por %p189, %p190
    %p192 = scmp.ne.s32.totalorder %s184, %s187
    %p193 = scmp.eq.s32.totalorder %s13, 0
    %p194 = por %p192, %p193
    %p195 = scmp.ne.s32.totalorder %s184, %s187
    %p196 = scmp.eq.s32.totalorder %s18, 1
    %p197 = por %p195, %p196
    %p198 = scmp.ne.s32.totalorder %s187, %s188
    %p199 = scmp.eq.s32.totalorder %s18, 0
    %p200 = por %p198, %p199
    %p201 = scmp.ne.s32.totalorder %s187, %s188
    %p202 = scmp.eq.s32.totalorder %s19, 1
    %p203 = por %p201, %p202
    %p205 = scmp.ne.s32.totalorder %s188, %s204
    %p206 = scmp.eq.s32.totalorder %s19, 0
    %p207 = por %p205, %p206
    %p208 = scmp.le.s32.totalorder 1, %s13
    %p209 = scmp.lt.s32.totalorder %s13, 3
    %p210 = pnand %p208, %p209
    %p211 = pneg %p210
    // Predicated region
    $region9: #{transformer_forward.10} parent=5 // pred_check
      _
    $region10: #{transformer_forward.10} parent=5 // pred_check_branch
      %213 = sbr.rel (%p210) target = $region12
    $region11: #{transformer_forward.10} parent=5 // pred_region
      %s214 = ssub.s32 %s13, 1
      // Predicated region
      $region13: #{transformer_forward.10} parent=11 // pred_check
        %p215 = pneg %p74
      $region14: #{transformer_forward.10} parent=11 // pred_check_branch
        %217 = sbr.rel (%p215) target = $region16
      $region15: #{transformer_forward.10} parent=11 // pred_region
        _
      $region16: #{transformer_forward.10} parent=11 // pred_fallthru
        _
      // Predicated region
      $region17: #{transformer_forward.10} parent=11 // pred_check
        %p218 = pneg %p95
      $region18: #{transformer_forward.10} parent=11 // pred_check_branch
        %220 = sbr.rel (%p218) target = $region20
      $region19: #{transformer_forward.10} parent=11 // pred_region
        _
      $region20: #{transformer_forward.10} parent=11 // pred_fallthru
        _
      // Predicated region
      $region21: #{transformer_forward.10} parent=11 // pred_check
        %p221 = pneg %p116
      $region22: #{transformer_forward.10} parent=11 // pred_check_branch
        %223 = sbr.rel (%p221) target = $region24
      $region23: #{transformer_forward.10} parent=11 // pred_region
        _
      $region24: #{transformer_forward.10} parent=11 // pred_fallthru
        _
    $region12: #{transformer_forward.10} parent=5 // pred_fallthru
      _
    %p224 = scmp.lt.s32.totalorder %s13, 2
    // Predicated region
    $region25: #{transformer_forward.10} parent=5 // pred_check
      %p225 = pneg %p224
    $region26: #{transformer_forward.10} parent=5 // pred_check_branch
      %227 = sbr.rel (%p225) target = $region28
    $region27: #{transformer_forward.10} parent=5 // pred_region
      // Predicated region
      $region29: #{transformer_forward.10} parent=27 // pred_check
        %p228 = pneg %p47
      $region30: #{transformer_forward.10} parent=27 // pred_check_branch
        %230 = sbr.rel (%p228) target = $region32
      $region31: #{transformer_forward.10} parent=27 // pred_region
        %p231 = scmp.lt.s32.totalorder %s20, 1
        %s232 = scalar_select %p231, %s20, 1
        %p233 = scmp.lt.s32.totalorder %s21, 0
        %s234 = scalar_select %p233, %s21, 0
        %s235 = sadd.s32 %s234, %s232
        %s236 = smul.addr %s235, 8
        %s237 = scalar_lea.vmem %s0, %s236
      $region32: #{transformer_forward.10} parent=27 // pred_fallthru
        _
    $region28: #{transformer_forward.10} parent=5 // pred_fallthru
      _
    %p238 = scmp.le.s32.totalorder 1, %s13
    %p239 = scmp.lt.s32.totalorder %s13, 3
    %p240 = pnand %p238, %p239
    %p241 = pneg %p240
    // Predicated region
    $region33: #{transformer_forward.10} parent=5 // pred_check
      _
    $region34: #{transformer_forward.10} parent=5 // pred_check_branch
      %243 = sbr.rel (%p240) target = $region36
    $region35: #{transformer_forward.10} parent=5 // pred_region
      %s244 = ssub.s32 %s13, 1
      %p245 = scmp.lt.s32.totalorder %s22, 1
      %s246 = scalar_select %p245, %s22, 1
      %p247 = scmp.lt.s32.totalorder %s23, 0
      %s248 = scalar_select %p247, %s23, 0
      %s249 = sadd.s32 %s248, %s246
      %s250 = smul.addr %s249, 8
      %s251 = scalar_lea.vmem %s0, %s250
      %p252 = pneg %p53
      %p253 = pneg %p50
      %p254 = pneg %p74
      %p255 = pneg %p71
      %p256 = pneg %p95
      %p257 = pneg %p92
      %p258 = pneg %p116
      %p259 = pneg %p113
      %p260 = pneg %p144
      %p261 = pneg %p141
      %p262 = scmp.lt.s32.totalorder %s22, 1
      %s263 = scalar_select %p262, %s22, 1
      %p264 = scmp.lt.s32.totalorder %s23, 0
      %s265 = scalar_select %p264, %s23, 0
      %s266 = smul.addr %s263, 4
      %s267 = sadd.s32 %s265, %s266
      %s268 = smul.addr %s267, 4
      %s269 = scalar_lea.vmem %s4, %s268
      %p270 = pneg %p172
      %p271 = pneg %p169
      %p272 = scmp.lt.s32.totalorder %s22, 1
      %s273 = scalar_select %p272, %s22, 1
      %p274 = scmp.lt.s32.totalorder %s23, 0
      %s275 = scalar_select %p274, %s23, 0
      %s276 = smul.addr %s273, 4
      %s277 = sadd.s32 %s275, %s276
      %s278 = smul.addr %s277, 4
      %s279 = scalar_lea.vmem %s5, %s278
      %p280 = pneg %p200
      %p281 = pneg %p197
      %p282 = scmp.lt.s32.totalorder %s22, 1
      %s283 = scalar_select %p282, %s22, 1
      %p284 = scmp.lt.s32.totalorder %s23, 0
      %s285 = scalar_select %p284, %s23, 0
      %s286 = smul.addr %s283, 4
      %s287 = sadd.s32 %s285, %s286
      %s288 = smul.addr %s287, 4
      %s289 = scalar_lea.vmem %s6, %s288
      %p290 = scmp.lt.s32.totalorder %s22, 1
      %s291 = scalar_select %p290, %s22, 1
      %p292 = scmp.lt.s32.totalorder %s23, 0
      %s293 = scalar_select %p292, %s23, 0
      %s294 = sadd.s32 %s293, %s291
      %s295 = smul.addr %s294, 8
      %s296 = scalar_lea.vmem %s0, %s295
      %p297 = scmp.lt.s32.totalorder %s22, 1
      %s298 = scalar_select %p297, %s22, 1
      %p299 = scmp.lt.s32.totalorder %s23, 0
      %s300 = scalar_select %p299, %s23, 0
      %s301 = smul.addr %s298, 4
      %s302 = sadd.s32 %s300, %s301
      %s303 = smul.addr %s302, 4
      %s304 = scalar_lea.vmem %s4, %s303
      %p305 = scmp.lt.s32.totalorder %s22, 1
      %s306 = scalar_select %p305, %s22, 1
      %p307 = scmp.lt.s32.totalorder %s23, 0
      %s308 = scalar_select %p307, %s23, 0
      %s309 = smul.addr %s306, 4
      %s310 = sadd.s32 %s308, %s309
      %s311 = smul.addr %s310, 4
      %s312 = scalar_lea.vmem %s5, %s311
      %p313 = scmp.lt.s32.totalorder %s22, 1
      %s314 = scalar_select %p313, %s22, 1
      %p315 = scmp.lt.s32.totalorder %s23, 0
      %s316 = scalar_select %p315, %s23, 0
      %s317 = smul.addr %s314, 4
      %s318 = sadd.s32 %s316, %s317
      %s319 = smul.addr %s318, 4
      %s320 = scalar_lea.vmem %s6, %s319
      %v322 = vld [vmem:[%s296] sm:$0xff]
      %v323 = vld [vmem:[%s1] sm:$0x1]
      %v324 = vld [vmem:[%s2] sm:$0x1]
      %325 = vadd.xlane.f32.xlu0 %v322
      %v326 = vpop.xlane.xlu0 %325
      %v327 = vrcp.pop 128.0
      %v328 = vmul.f32 %v326, %v327
      %v329 = vsub.f32 %v322, %v328
      %v330 = vmul.f32 %v329, %v329
      %331 = vadd.xlane.f32.xlu0 %v330
      %v332 = vpop.xlane.xlu0 %331
      %v333 = vmul.f32 %v332, %v327
      %v334 = vadd.f32 %v333, 1e-05
      %v335 = vrsqrt.pop %v334
      %v336 = vmul.f32 %v329, %v335
      %v338 = vlaneseq
      %v339 = vshrl.u32 %v338, 7
      %v340 = vsub.s32 0, %v339
      %v341 = vrot.slane %v323, %v340
      %v343 = vmul.f32 %v336, %v341
      %v345 = vlaneseq
      %v346 = vshrl.u32 %v345, 7
      %v347 = vsub.s32 0, %v346
      %v348 = vrot.slane %v324, %v347
      %v350 = vadd.f32 %v343, %v348
      %v351 = vpack.c.bf16 %v350, %v350
      %v352 = vld [vmem:[%s3] sm:$0xff]
      %v353 = vld [vmem:[%s3 + $0x8] sm:$0xf]
      %v354 = vld [vmem:[%s3 + $0xc] sm:$0xff]
      %v355 = vld [vmem:[%s3 + $0x14] sm:$0xf]
      %v356 = vld [vmem:[%s3 + $0x18] sm:$0xff]
      %v357 = vld [vmem:[%s3 + $0x20] sm:$0xf]
      %v358 = vld [vmem:[%s3 + $0x24] sm:$0xff]
      %v359 = vld [vmem:[%s3 + $0x2c] sm:$0xf]
      %v360 = vld [vmem:[%s3 + $0x30] sm:$0xff]
      %v361 = vld [vmem:[%s3 + $0x38] sm:$0xf]
      %v362 = vld [vmem:[%s3 + $0x3c] sm:$0xff]
      %v363 = vld [vmem:[%s3 + $0x44] sm:$0xf]
      %v364 = vld [vmem:[%s3 + $0x48] sm:$0xff]
      %v365 = vld [vmem:[%s3 + $0x50] sm:$0xf]
      %v366 = vld [vmem:[%s3 + $0x54] sm:$0xff]
      %v367 = vld [vmem:[%s3 + $0x5c] sm:$0xf]
      %v368 = vld [vmem:[%s3 + $0x60] sm:$0xff]
      %v369 = vld [vmem:[%s3 + $0x68] sm:$0xf]
      %v370 = vld [vmem:[%s3 + $0x6c] sm:$0xff]
      %v371 = vld [vmem:[%s3 + $0x74] sm:$0xf]
      %v372 = vld [vmem:[%s3 + $0x78] sm:$0xff]
      %v373 = vld [vmem:[%s3 + $0x80] sm:$0xf]
      %v374 = vld [vmem:[%s3 + $0x84] sm:$0xff]
      %v375 = vld [vmem:[%s3 + $0x8c] sm:$0xf]
      %v376 = vld [vmem:[%s3 + $0x90] sm:$0xff]
      %v377 = vld [vmem:[%s3 + $0x98] sm:$0xf]
      %v378 = vld [vmem:[%s3 + $0x9c] sm:$0xff]
      %v379 = vld [vmem:[%s3 + $0xa4] sm:$0xf]
      %v380 = vld [vmem:[%s3 + $0xa8] sm:$0xff]
      %v381 = vld [vmem:[%s3 + $0xb0] sm:$0xf]
      %v382 = vld [vmem:[%s3 + $0xb4] sm:$0xff]
      %v383 = vld [vmem:[%s3 + $0xbc] sm:$0xf]
      %v416 = vunpack.c.l.b16 %v352
      %v417 = vunpack.c.h.b16 %v352
      %v418 = vunpack.c.l.b16 %v353
      %v419 = vunpack.c.l.b16 %v354
      %v420 = vunpack.c.h.b16 %v354
      %v421 = vunpack.c.l.b16 %v355
      %v422 = vunpack.c.l.b16 %v356
      %v423 = vunpack.c.h.b16 %v356
      %v424 = vunpack.c.l.b16 %v357
      %v425 = vunpack.c.l.b16 %v358
      %v426 = vunpack.c.h.b16 %v358
      %v427 = vunpack.c.l.b16 %v359
      %v428 = vunpack.c.l.b16 %v360
      %v429 = vunpack.c.h.b16 %v360
      %v430 = vunpack.c.l.b16 %v361
      %v431 = vunpack.c.l.b16 %v362
      %v432 = vunpack.c.h.b16 %v362
      %v433 = vunpack.c.l.b16 %v363
      %v434 = vunpack.c.l.b16 %v364
      %v435 = vunpack.c.h.b16 %v364
      %v436 = vunpack.c.l.b16 %v365
      %v437 = vunpack.c.l.b16 %v366
      %v438 = vunpack.c.h.b16 %v366
      %v439 = vunpack.c.l.b16 %v367
      %v440 = vunpack.c.l.b16 %v368
      %v441 = vunpack.c.h.b16 %v368
      %v442 = vunpack.c.l.b16 %v369
      %v443 = vunpack.c.l.b16 %v370
      %v444 = vunpack.c.h.b16 %v370
      %v445 = vunpack.c.l.b16 %v371
      %v446 = vunpack.c.l.b16 %v372
      %v447 = vunpack.c.h.b16 %v372
      %v448 = vunpack.c.l.b16 %v373
      %v449 = vunpack.c.l.b16 %v374
      %v450 = vunpack.c.h.b16 %v374
      %v451 = vunpack.c.l.b16 %v375
      %v452 = vunpack.c.l.b16 %v376
      %v453 = vunpack.c.h.b16 %v376
      %v454 = vunpack.c.l.b16 %v377
      %v455 = vunpack.c.l.b16 %v378
      %v456 = vunpack.c.h.b16 %v378
      %v457 = vunpack.c.l.b16 %v379
      %v458 = vunpack.c.l.b16 %v380
      %v459 = vunpack.c.h.b16 %v380
      %v460 = vunpack.c.l.b16 %v381
      %v461 = vunpack.c.l.b16 %v382
      %v462 = vunpack.c.h.b16 %v382
      %v463 = vunpack.c.l.b16 %v383
      %v464 = vpack.c.b16 %v419, %v416
      %v465 = vpack.c.b16 %v420, %v417
      %v466 = vpack.c.b16 %v421, %v418
      %v467 = vpack.c.b16 %v425, %v422
      %v468 = vpack.c.b16 %v426, %v423
      %v469 = vpack.c.b16 %v427, %v424
      %v470 = vpack.c.b16 %v431, %v428
      %v471 = vpack.c.b16 %v432, %v429
      %v472 = vpack.c.b16 %v433, %v430
      %v473 = vpack.c.b16 %v437, %v434
      %v474 = vpack.c.b16 %v438, %v435
      %v475 = vpack.c.b16 %v439, %v436
      %v476 = vpack.c.b16 %v443, %v440
      %v477 = vpack.c.b16 %v444, %v441
      %v478 = vpack.c.b16 %v445, %v442
      %v479 = vpack.c.b16 %v449, %v446
      %v480 = vpack.c.b16 %v450, %v447
      %v481 = vpack.c.b16 %v451, %v448
      %v482 = vpack.c.b16 %v455, %v452
      %v483 = vpack.c.b16 %v456, %v453
      %v484 = vpack.c.b16 %v457, %v454
      %v485 = vpack.c.b16 %v461, %v458
      %v486 = vpack.c.b16 %v462, %v459
      %v487 = vpack.c.b16 %v463, %v460
      %512 = vmatprep.subr.bf16.mxu0 %v465
      %513 = vmatpush1.bf16.msra.mxu0 %v464
      %514 = vmatprep.subr.bf16.mxu0 %v468
      %515 = vmatpush1.bf16.msra.mxu0 %v467
      %516 = vmatprep.subr.bf16.mxu0 %v471
      %517 = vmatpush1.bf16.msra.mxu0 %v470
      %518 = vmatprep.subr.bf16.mxu0 %v474
      %519 = vmatpush1.bf16.msra.mxu0 %v473
      %520 = vmatprep.subr.bf16.mxu0 %v477
      %521 = vmatpush1.bf16.msra.mxu0 %v476
      %522 = vmatprep.subr.bf16.mxu0 %v480
      %523 = vmatpush1.bf16.msra.mxu0 %v479
      %524 = vmatprep.subr.bf16.mxu0 %v483
      %525 = vmatpush1.bf16.msra.mxu0 %v482
      %526 = vmatprep.subr.bf16.mxu0 %v486
      %527 = vmatpush1.bf16.msra.mxu0 %v485
      %528 = vmatprep.subr.bf16.mxu0 0
      %529 = vmatpush1.bf16.msra.mxu0 0
      %530 = vmatprep.subr.bf16.mxu0 0
      %531 = vmatpush1.bf16.msra.mxu0 0
      %532 = vmatprep.subr.bf16.mxu0 0
      %533 = vmatpush1.bf16.msra.mxu0 0
      %534 = vmatprep.subr.bf16.mxu0 0
      %535 = vmatpush1.bf16.msra.mxu0 0
      %536 = vmatprep.subr.bf16.mxu0 0
      %537 = vmatpush1.bf16.msra.mxu0 0
      %538 = vmatprep.subr.bf16.mxu0 0
      %539 = vmatpush1.bf16.msra.mxu0 0
      %540 = vmatprep.subr.bf16.mxu0 0
      %541 = vmatpush1.bf16.msra.mxu0 0
      %542 = vmatprep.subr.bf16.mxu0 0
      %543 = vmatpush1.bf16.msra.mxu0 0
      %544 = vmatprep.mubr.bf16.mxu0 0
      %545 = vmatmul.mubr.bf16.gmra.mrb[0].mxu0 %v351
      %v546 = vpop.f32.mrb[0].mxu0
      %v547 = vadd.f32 0.0, %v546
      %v548 = vpop.f32.mrb[0].mxu0
      %v549 = vadd.f32 0.0, %v548
      %v550 = vpop.f32.mrb[0].mxu0
      %v551 = vpop.f32.mrb[0].mxu0
      %552 = vdwg.mxu0
      %553 = vmatprep.subr.bf16.mxu0 0
      %554 = vmatpush1.bf16.msra.mxu0 %v466
      %555 = vmatprep.subr.bf16.mxu0 0
      %556 = vmatpush1.bf16.msra.mxu0 %v469
      %557 = vmatprep.subr.bf16.mxu0 0
      %558 = vmatpush1.bf16.msra.mxu0 %v472
      %559 = vmatprep.subr.bf16.mxu0 0
      %560 = vmatpush1.bf16.msra.mxu0 %v475
      %561 = vmatprep.subr.bf16.mxu0 0
      %562 = vmatpush1.bf16.msra.mxu0 %v478
      %563 = vmatprep.subr.bf16.mxu0 0
      %564 = vmatpush1.bf16.msra.mxu0 %v481
      %565 = vmatprep.subr.bf16.mxu0 0
      %566 = vmatpush1.bf16.msra.mxu0 %v484
      %567 = vmatprep.subr.bf16.mxu0 0
      %568 = vmatpush1.bf16.msra.mxu0 %v487
      %569 = vmatprep.subr.bf16.mxu0 0
      %570 = vmatpush1.bf16.msra.mxu0 0
      %571 = vmatprep.subr.bf16.mxu0 0
      %572 = vmatpush1.bf16.msra.mxu0 0
      %573 = vmatprep.subr.bf16.mxu0 0
      %574 = vmatpush1.bf16.msra.mxu0 0
      %575 = vmatprep.subr.bf16.mxu0 0
      %576 = vmatpush1.bf16.msra.mxu0 0
      %577 = vmatprep.subr.bf16.mxu0 0
      %578 = vmatpush1.bf16.msra.mxu0 0
      %579 = vmatprep.subr.bf16.mxu0 0
      %580 = vmatpush1.bf16.msra.mxu0 0
      %581 = vmatprep.subr.bf16.mxu0 0
      %582 = vmatpush1.bf16.msra.mxu0 0
      %583 = vmatprep.subr.bf16.mxu0 0
      %584 = vmatpush1.bf16.msra.mxu0 0
      %585 = vmatprep.mubr.bf16.mxu0 0
      %586 = vmatmul.mubr.bf16.gmra.mrb[0].mxu0 %v351
      %v587 = vpop.f32.mrb[0].mxu0
      %v588 = vadd.f32 0.0, %v587
      %v589 = vpop.f32.mrb[0].mxu0
      %v590 = vpop.f32.mrb[0].mxu0
      %v591 = vpop.f32.mrb[0].mxu0
      %592 = vdwg.mxu0
      %v593 = vmul.f32 %v547, 0.17677669
      %v594 = vpack.c.bf16 %v593, %v593
      %vm595 = vcmask 257024
      %596 = vst.msk [vmem:[%s304] sm:$0xf] %vm595, %v594
      %v597 = vpack.c.bf16 %v549, %v549
      %598 = vst.msk [vmem:[%s312] sm:$0xf] %vm595, %v597
      %v599 = vpack.c.bf16 %v588, %v588
      %600 = vst.msk [vmem:[%s320] sm:$0xf] %vm595, %v599
      %v602 = vunpack.c.l.b16 %v594
      %v603 = vpack.c.b16 %v602, %v602
      %604 = vrot.lane.b32.xlu0 %v603, 96
      %v605 = vpop.permute.xlu0 %604
      %s607 = scalar_lea.vmem %s304, 4
      %608 = vst.msk [vmem:[%s607] sm:$0xf] %vm595, %v605
      %v610 = vunpack.c.l.b16 %v597
      %v611 = vpack.c.b16 %v610, %v610
      %612 = vrot.lane.b32.xlu0 %v611, 96
      %v613 = vpop.permute.xlu0 %612
      %s615 = scalar_lea.vmem %s312, 4
      %616 = vst.msk [vmem:[%s615] sm:$0xf] %vm595, %v613
      %v618 = vunpack.c.l.b16 %v599
      %v619 = vpack.c.b16 %v618, %v618
      %620 = vrot.lane.b32.xlu0 %v619, 96
      %v621 = vpop.permute.xlu0 %620
      %s623 = scalar_lea.vmem %s320, 4
      %624 = vst.msk [vmem:[%s623] sm:$0xf] %vm595, %v621
      %625 = vrot.lane.b32.xlu0 %v603, 64
      %v626 = vpop.permute.xlu0 %625
      %s628 = scalar_lea.vmem %s304, 8
      %629 = vst.msk [vmem:[%s628] sm:$0xf] %vm595, %v626
      %630 = vrot.lane.b32.xlu0 %v611, 64
      %v631 = vpop.permute.xlu0 %630
      %s633 = scalar_lea.vmem %s312, 8
      %634 = vst.msk [vmem:[%s633] sm:$0xf] %vm595, %v631
      %635 = vrot.lane.b32.xlu0 %v619, 64
      %v636 = vpop.permute.xlu0 %635
      %s638 = scalar_lea.vmem %s320, 8
      %639 = vst.msk [vmem:[%s638] sm:$0xf] %vm595, %v636
      %640 = vrot.lane.b32.xlu0 %v603, 32
      %v641 = vpop.permute.xlu0 %640
      %s643 = scalar_lea.vmem %s304, 12
      %644 = vst.msk [vmem:[%s643] sm:$0xf] %vm595, %v641
      %645 = vrot.lane.b32.xlu0 %v611, 32
      %v646 = vpop.permute.xlu0 %645
      %s648 = scalar_lea.vmem %s312, 12
      %649 = vst.msk [vmem:[%s648] sm:$0xf] %vm595, %v646
      %650 = vrot.lane.b32.xlu0 %v619, 32
      %v651 = vpop.permute.xlu0 %650
      %s653 = scalar_lea.vmem %s320, 12
      %654 = vst.msk [vmem:[%s653] sm:$0xf] %vm595, %v651
      %p655 = scmp.lt.s32.totalorder %s22, 1
      %s656 = scalar_select %p655, %s22, 1
      %p657 = scmp.lt.s32.totalorder %s23, 0
      %s658 = scalar_select %p657, %s23, 0
      %s659 = smul.addr %s656, 4
      %s660 = sadd.s32 %s658, %s659
      %s661 = smul.addr %s660, 4
      %s662 = scalar_lea.vmem %s4, %s661
      %p663 = scmp.lt.s32.totalorder %s22, 1
      %s664 = scalar_select %p663, %s22, 1
      %p665 = scmp.lt.s32.totalorder %s23, 0
      %s666 = scalar_select %p665, %s23, 0
      %s667 = smul.addr %s664, 4
      %s668 = sadd.s32 %s666, %s667
      %s669 = smul.addr %s668, 4
      %s670 = scalar_lea.vmem %s5, %s669
      %p671 = scmp.lt.s32.totalorder %s22, 1
      %s672 = scalar_select %p671, %s22, 1
      %p673 = scmp.lt.s32.totalorder %s23, 0
      %s674 = scalar_select %p673, %s23, 0
      %s675 = smul.addr %s672, 4
      %s676 = sadd.s32 %s674, %s675
      %s677 = smul.addr %s676, 4
      %s678 = scalar_lea.vmem %s6, %s677
      // Predicated region
      $region37: #{transformer_forward.10} parent=35 // pred_check
        %p679 = pneg %p141
      $region38: #{transformer_forward.10} parent=35 // pred_check_branch
        %681 = sbr.rel (%p679) target = $region40
      $region39: #{transformer_forward.10} parent=35 // pred_region
        _
      $region40: #{transformer_forward.10} parent=35 // pred_fallthru
        _
      // Predicated region
      $region41: #{transformer_forward.10} parent=35 // pred_check
        %p682 = pneg %p169
      $region42: #{transformer_forward.10} parent=35 // pred_check_branch
        %684 = sbr.rel (%p682) target = $region44
      $region43: #{transformer_forward.10} parent=35 // pred_region
        _
      $region44: #{transformer_forward.10} parent=35 // pred_fallthru
        _
      // Predicated region
      $region45: #{transformer_forward.10} parent=35 // pred_check
        %p685 = pneg %p197
      $region46: #{transformer_forward.10} parent=35 // pred_check_branch
        %687 = sbr.rel (%p685) target = $region48
      $region47: #{transformer_forward.10} parent=35 // pred_region
        _
      $region48: #{transformer_forward.10} parent=35 // pred_fallthru
        _
    $region36: #{transformer_forward.10} parent=5 // pred_fallthru
      _
    %p688 = scmp.le.s32.totalorder 2, %s13
    // Predicated region
    $region49: #{transformer_forward.10} parent=5 // pred_check
      %p689 = pneg %p688
    $region50: #{transformer_forward.10} parent=5 // pred_check_branch
      %691 = sbr.rel (%p689) target = $region52
    $region51: #{transformer_forward.10} parent=5 // pred_region
      %s692 = ssub.s32 %s13, 2
      // Predicated region
      $region53: #{transformer_forward.10} parent=51 // pred_check
        %p693 = pneg %p147
      $region54: #{transformer_forward.10} parent=51 // pred_check_branch
        %695 = sbr.rel (%p693) target = $region56
      $region55: #{transformer_forward.10} parent=51 // pred_region
        %p696 = scmp.lt.s32.totalorder %s24, 1
        %s697 = scalar_select %p696, %s24, 1
        %p698 = scmp.lt.s32.totalorder %s25, 0
        %s699 = scalar_select %p698, %s25, 0
        %s700 = smul.addr %s697, 4
        %s701 = sadd.s32 %s699, %s700
        %s702 = smul.addr %s701, 4
        %s703 = scalar_lea.vmem %s4, %s702
      $region56: #{transformer_forward.10} parent=51 // pred_fallthru
        _
      // Predicated region
      $region57: #{transformer_forward.10} parent=51 // pred_check
        %p704 = pneg %p175
      $region58: #{transformer_forward.10} parent=51 // pred_check_branch
        %706 = sbr.rel (%p704) target = $region60
      $region59: #{transformer_forward.10} parent=51 // pred_region
        %p707 = scmp.lt.s32.totalorder %s24, 1
        %s708 = scalar_select %p707, %s24, 1
        %p709 = scmp.lt.s32.totalorder %s25, 0
        %s710 = scalar_select %p709, %s25, 0
        %s711 = smul.addr %s708, 4
        %s712 = sadd.s32 %s710, %s711
        %s713 = smul.addr %s712, 4
        %s714 = scalar_lea.vmem %s5, %s713
      $region60: #{transformer_forward.10} parent=51 // pred_fallthru
        _
      // Predicated region
      $region61: #{transformer_forward.10} parent=51 // pred_check
        %p715 = pneg %p203
      $region62: #{transformer_forward.10} parent=51 // pred_check_branch
        %717 = sbr.rel (%p715) target = $region64
      $region63: #{transformer_forward.10} parent=51 // pred_region
        %p718 = scmp.lt.s32.totalorder %s24, 1
        %s719 = scalar_select %p718, %s24, 1
        %p720 = scmp.lt.s32.totalorder %s25, 0
        %s721 = scalar_select %p720, %s25, 0
        %s722 = smul.addr %s719, 4
        %s723 = sadd.s32 %s721, %s722
        %s724 = smul.addr %s723, 4
        %s725 = scalar_lea.vmem %s6, %s724
      $region64: #{transformer_forward.10} parent=51 // pred_fallthru
        _
    $region52: #{transformer_forward.10} parent=5 // pred_fallthru
      _
  $region6: #{transformer_forward.10} parent=0 // loop_footer
    %s17 = sadd.s32 1, %s13
  $region7: #{transformer_forward.10} parent=0 // loop_footer_branch
    %12 = sbr.rel target = $region3
  $region8: #{transformer_forward.10} parent=0 // loop_exit
    _

// kernel: transformer_forward.9
$region0: #{transformer_forward.9}
  #allocation0 [shape = 'u32[]', space=smem, size = 0x4, offset = 0x4, fixed_abs, tag = 'smem constant byte address 0x4 - core index']
  #allocation1 [shape = 'u32[144,128]{1,0:T(1,128)}', space=vmem, size = 0x12000, scoped, tag = 'internal scratch']
  #allocation2 [shape = 'bf16[16,128]{1,0:T(16,128)(2,1)}', space=vmem, size = 0x1000, scoped, tag = 'scratch operand']
  #allocation3 [shape = 'f32[16,128]{1,0:T(8,128)}', space=vmem, size = 0x2000, scoped, tag = 'scratch operand']
  %s0 = inlined_call_operand.vmem [shape: f32[16,128], index: 0, kind: input, shape index: {}]
  %s1 = inlined_call_operand.vmem [shape: f32[1,128], index: 1, kind: input, shape index: {}]
  %s2 = inlined_call_operand.vmem [shape: f32[1,128], index: 2, kind: input, shape index: {}]
  %s3 = inlined_call_operand.vmem [shape: bf16[128,256], index: 3, kind: input, shape index: {}]
  %s4 = inlined_call_operand.vmem [shape: f32[1,256], index: 4, kind: input, shape index: {}]
  %s5 = inlined_call_operand.vmem [shape: bf16[256,128], index: 5, kind: input, shape index: {}]
  %s6 = inlined_call_operand.vmem [shape: f32[1,128], index: 6, kind: input, shape index: {}]
  %s7 = inlined_call_operand.vmem [shape: f32[16,128], index: 7, kind: output, shape index: {}]
  %s8 = sld [smem:[#allocation0]]
  $region46: #{transformer_forward.9} parent=0
    _
  %s10 = ssub.s32 1, %s8
  %s11 = scalar_select 0, %s10, %s8
  // Predicated region
  $region2: #{transformer_forward.9} parent=0 // pred_check
    _
  $region3: #{transformer_forward.9} parent=0 // pred_check_branch
    %13 = sbr.rel (0) target = $region5
  $region4: #{transformer_forward.9} parent=0 // pred_region
    _
  $region5: #{transformer_forward.9} parent=0 // pred_fallthru
    _
  // Predicated region
  $region6: #{transformer_forward.9} parent=0 // pred_check
    _
  $region7: #{transformer_forward.9} parent=0 // pred_check_branch
    %15 = sbr.rel (0) target = $region9
  $region8: #{transformer_forward.9} parent=0 // pred_region
    _
  $region9: #{transformer_forward.9} parent=0 // pred_fallthru
    _
  // Predicated region
  $region10: #{transformer_forward.9} parent=0 // pred_check
    _
  $region11: #{transformer_forward.9} parent=0 // pred_check_branch
    %17 = sbr.rel (0) target = $region13
  $region12: #{transformer_forward.9} parent=0 // pred_region
    _
  $region13: #{transformer_forward.9} parent=0 // pred_fallthru
    _
  // Predicated region
  $region14: #{transformer_forward.9} parent=0 // pred_check
    _
  $region15: #{transformer_forward.9} parent=0 // pred_check_branch
    %19 = sbr.rel (0) target = $region17
  $region16: #{transformer_forward.9} parent=0 // pred_region
    _
  $region17: #{transformer_forward.9} parent=0 // pred_fallthru
    _
  // Predicated region
  $region18: #{transformer_forward.9} parent=0 // pred_check
    _
  $region19: #{transformer_forward.9} parent=0 // pred_check_branch
    %21 = sbr.rel (0) target = $region21
  $region20: #{transformer_forward.9} parent=0 // pred_region
    _
  $region21: #{transformer_forward.9} parent=0 // pred_fallthru
    _
  // Predicated region
  $region22: #{transformer_forward.9} parent=0 // pred_check
    _
  $region23: #{transformer_forward.9} parent=0 // pred_check_branch
    %23 = sbr.rel (0) target = $region25
  $region24: #{transformer_forward.9} parent=0 // pred_region
    _
  $region25: #{transformer_forward.9} parent=0 // pred_fallthru
    _
  // Predicated region
  $region26: #{transformer_forward.9} parent=0 // pred_check
    _
  $region27: #{transformer_forward.9} parent=0 // pred_check_branch
    %25 = sbr.rel (0) target = $region29
  $region28: #{transformer_forward.9} parent=0 // pred_region
    _
  $region29: #{transformer_forward.9} parent=0 // pred_fallthru
    _
  %p27 = scmp.eq.s32.totalorder 0, 0
  // Predicated region
  $region30: #{transformer_forward.9} parent=0 // pred_check
    %p28 = pneg %p27
  $region31: #{transformer_forward.9} parent=0 // pred_check_branch
    %30 = sbr.rel (%p28) target = $region33
  $region32: #{transformer_forward.9} parent=0 // pred_region
    %v31 = vld [vmem:[%s0] sm:$0xff]
    %v32 = vld [vmem:[%s0 + $0x8] sm:$0xff]
    %v33 = vld [vmem:[%s1] sm:$0x1]
    %v34 = vld [vmem:[%s2] sm:$0x1]
    %35 = vadd.xlane.f32.xlu0 %v31
    %v36 = vpop.xlane.xlu0 %35
    %37 = vadd.xlane.f32.xlu0 %v32
    %v38 = vpop.xlane.xlu0 %37
    %v39 = vrcp.pop 128.0
    %v40 = vmul.f32 %v36, %v39
    %v41 = vmul.f32 %v38, %v39
    %v42 = vsub.f32 %v31, %v40
    %v43 = vsub.f32 %v32, %v41
    %v44 = vmul.f32 %v42, %v42
    %v45 = vmul.f32 %v43, %v43
    %46 = vadd.xlane.f32.xlu0 %v44
    %v47 = vpop.xlane.xlu0 %46
    %48 = vadd.xlane.f32.xlu0 %v45
    %v49 = vpop.xlane.xlu0 %48
    %v50 = vmul.f32 %v47, %v39
    %v51 = vmul.f32 %v49, %v39
    %v52 = vadd.f32 %v50, 1e-05
    %v53 = vadd.f32 %v51, 1e-05
    %v54 = vrsqrt.pop %v52
    %v55 = vrsqrt.pop %v53
    %v56 = vmul.f32 %v42, %v54
    %v57 = vmul.f32 %v43, %v55
    %v59 = vlaneseq
    %v60 = vshrl.u32 %v59, 7
    %v61 = vsub.s32 0, %v60
    %v62 = vrot.slane %v33, %v61
    %v64 = vmul.f32 %v56, %v62
    %v65 = vmul.f32 %v57, %v62
    %v67 = vlaneseq
    %v68 = vshrl.u32 %v67, 7
    %v69 = vsub.s32 0, %v68
    %v70 = vrot.slane %v34, %v69
    %v72 = vadd.f32 %v64, %v70
    %v73 = vadd.f32 %v65, %v70
    %v74 = vpack.c.bf16 %v73, %v72
    %75 = vst [vmem:[#allocation2] sm:$0xff] %v74
    %76 = vst [vmem:[#allocation3] sm:$0xff] 0.0
    %77 = vst [vmem:[#allocation3 + $0x8] sm:$0xff] 0.0
  $region33: #{transformer_forward.9} parent=0 // pred_fallthru
    _
  %v78 = vld [vmem:[#allocation2] sm:$0xff]
  %v79 = vld [vmem:[%s3] sm:$0xff]
  %v80 = vld [vmem:[%s3 + $0x8] sm:$0xff]
  %v81 = vld [vmem:[%s3 + $0x10] sm:$0xff]
  %v82 = vld [vmem:[%s3 + $0x18] sm:$0xff]
  %v83 = vld [vmem:[%s3 + $0x20] sm:$0xff]
  %v84 = vld [vmem:[%s3 + $0x28] sm:$0xff]
  %v85 = vld [vmem:[%s3 + $0x30] sm:$0xff]
  %v86 = vld [vmem:[%s3 + $0x38] sm:$0xff]
  %v87 = vld [vmem:[%s3 + $0x40] sm:$0xff]
  %v88 = vld [vmem:[%s3 + $0x48] sm:$0xff]
  %v89 = vld [vmem:[%s3 + $0x50] sm:$0xff]
  %v90 = vld [vmem:[%s3 + $0x58] sm:$0xff]
  %v91 = vld [vmem:[%s3 + $0x60] sm:$0xff]
  %v92 = vld [vmem:[%s3 + $0x68] sm:$0xff]
  %v93 = vld [vmem:[%s3 + $0x70] sm:$0xff]
  %v94 = vld [vmem:[%s3 + $0x78] sm:$0xff]
  %v95 = vld [vmem:[%s4] sm:$0x3]
  %v97 = vlaneseq
  %v98 = vshrl.u32 %v97, 7
  %v99 = vsub.s32 0, %v98
  %v100 = vrot.slane %v95, %v99
  %v101 = vlaneseq
  %v102 = vshrl.u32 %v101, 7
  %v103 = vsub.s32 1, %v102
  %v104 = vrot.slane %v95, %v103
  %v123 = vunpack.c.l.b16 %v79
  %v124 = vunpack.c.h.b16 %v79
  %v125 = vunpack.c.l.b16 %v80
  %v126 = vunpack.c.h.b16 %v80
  %v127 = vunpack.c.l.b16 %v81
  %v128 = vunpack.c.h.b16 %v81
  %v129 = vunpack.c.l.b16 %v82
  %v130 = vunpack.c.h.b16 %v82
  %v131 = vunpack.c.l.b16 %v83
  %v132 = vunpack.c.h.b16 %v83
  %v133 = vunpack.c.l.b16 %v84
  %v134 = vunpack.c.h.b16 %v84
  %v135 = vunpack.c.l.b16 %v85
  %v136 = vunpack.c.h.b16 %v85
  %v137 = vunpack.c.l.b16 %v86
  %v138 = vunpack.c.h.b16 %v86
  %v139 = vunpack.c.l.b16 %v87
  %v140 = vunpack.c.h.b16 %v87
  %v141 = vunpack.c.l.b16 %v88
  %v142 = vunpack.c.h.b16 %v88
  %v143 = vunpack.c.l.b16 %v89
  %v144 = vunpack.c.h.b16 %v89
  %v145 = vunpack.c.l.b16 %v90
  %v146 = vunpack.c.h.b16 %v90
  %v147 = vunpack.c.l.b16 %v91
  %v148 = vunpack.c.h.b16 %v91
  %v149 = vunpack.c.l.b16 %v92
  %v150 = vunpack.c.h.b16 %v92
  %v151 = vunpack.c.l.b16 %v93
  %v152 = vunpack.c.h.b16 %v93
  %v153 = vunpack.c.l.b16 %v94
  %v154 = vunpack.c.h.b16 %v94
  %v155 = vpack.c.b16 %v125, %v123
  %v156 = vpack.c.b16 %v126, %v124
  %v157 = vpack.c.b16 %v129, %v127
  %v158 = vpack.c.b16 %v130, %v128
  %v159 = vpack.c.b16 %v133, %v131
  %v160 = vpack.c.b16 %v134, %v132
  %v161 = vpack.c.b16 %v137, %v135
  %v162 = vpack.c.b16 %v138, %v136
  %v163 = vpack.c.b16 %v141, %v139
  %v164 = vpack.c.b16 %v142, %v140
  %v165 = vpack.c.b16 %v145, %v143
  %v166 = vpack.c.b16 %v146, %v144
  %v167 = vpack.c.b16 %v149, %v147
  %v168 = vpack.c.b16 %v150, %v148
  %v169 = vpack.c.b16 %v153, %v151
  %v170 = vpack.c.b16 %v154, %v152
  %187 = vmatprep.subr.bf16.mxu0 %v156
  %188 = vmatpush1.bf16.msra.mxu0 %v155
  %189 = vmatprep.subr.bf16.mxu0 %v158
  %190 = vmatpush1.bf16.msra.mxu0 %v157
  %191 = vmatprep.subr.bf16.mxu0 %v160
  %192 = vmatpush1.bf16.msra.mxu0 %v159
  %193 = vmatprep.subr.bf16.mxu0 %v162
  %194 = vmatpush1.bf16.msra.mxu0 %v161
  %195 = vmatprep.subr.bf16.mxu0 %v164
  %196 = vmatpush1.bf16.msra.mxu0 %v163
  %197 = vmatprep.subr.bf16.mxu0 %v166
  %198 = vmatpush1.bf16.msra.mxu0 %v165
  %199 = vmatprep.subr.bf16.mxu0 %v168
  %200 = vmatpush1.bf16.msra.mxu0 %v167
  %201 = vmatprep.subr.bf16.mxu0 %v170
  %202 = vmatpush1.bf16.msra.mxu0 %v169
  %203 = vmatprep.subr.bf16.mxu0 0
  %204 = vmatpush1.bf16.msra.mxu0 0
  %205 = vmatprep.subr.bf16.mxu0 0
  %206 = vmatpush1.bf16.msra.mxu0 0
  %207 = vmatprep.subr.bf16.mxu0 0
  %208 = vmatpush1.bf16.msra.mxu0 0
  %209 = vmatprep.subr.bf16.mxu0 0
  %210 = vmatpush1.bf16.msra.mxu0 0
  %211 = vmatprep.subr.bf16.mxu0 0
  %212 = vmatpush1.bf16.msra.mxu0 0
  %213 = vmatprep.subr.bf16.mxu0 0
  %214 = vmatpush1.bf16.msra.mxu0 0
  %215 = vmatprep.subr.bf16.mxu0 0
  %216 = vmatpush1.bf16.msra.mxu0 0
  %217 = vmatprep.subr.bf16.mxu0 0
  %218 = vmatpush1.bf16.msra.mxu0 0
  %219 = vmatprep.mubr.bf16.mxu0 0
  %220 = vmatmul.mubr.bf16.gmra.mrb[0].mxu0 %v78
  %v221 = vpop.f32.mrb[0].mxu0
  %v222 = vadd.f32 %v100, %v221
  %v223 = vpop.f32.mrb[0].mxu0
  %v224 = vadd.f32 %v104, %v223
  %v225 = vpop.f32.mrb[0].mxu0
  %v226 = vadd.f32 %v100, %v225
  %v227 = vpop.f32.mrb[0].mxu0
  %v228 = vadd.f32 %v104, %v227
  %229 = vdwg.mxu0
  %v230 = vmul.f32 %v222, 0.5
  %v231 = vmul.f32 %v224, 0.5
  %v232 = vmul.f32 %v226, 0.5
  %v233 = vmul.f32 %v228, 0.5
  %v234 = vmul.f32 %v222, 0.70710677
  %v235 = vmul.f32 %v224, 0.70710677
  %v236 = vmul.f32 %v226, 0.70710677
  %v237 = vmul.f32 %v228, 0.70710677
  %v238 = verf.f32.pop %v234
  %v239 = verf.f32.pop %v235
  %v240 = verf.f32.pop %v236
  %v241 = verf.f32.pop %v237
  %v242 = vadd.f32 %v238, 1.0
  %v243 = vadd.f32 %v239, 1.0
  %v244 = vadd.f32 %v240, 1.0
  %v245 = vadd.f32 %v241, 1.0
  %v246 = vmul.f32 %v230, %v242
  %v247 = vmul.f32 %v231, %v243
  %v248 = vmul.f32 %v232, %v244
  %v249 = vmul.f32 %v233, %v245
  %v250 = vld [vmem:[#allocation3] sm:$0xff]
  %v251 = vld [vmem:[#allocation3 + $0x8] sm:$0xff]
  %v252 = vpack.c.bf16 %v248, %v246
  %v253 = vpack.c.bf16 %v249, %v247
  %v254 = vld [vmem:[%s5] sm:$0xf]
  %v255 = vld [vmem:[%s5 + $0x4] sm:$0xf]
  %v256 = vld [vmem:[%s5 + $0x8] sm:$0xf]
  %v257 = vld [vmem:[%s5 + $0xc] sm:$0xf]
  %v258 = vld [vmem:[%s5 + $0x10] sm:$0xf]
  %v259 = vld [vmem:[%s5 + $0x14] sm:$0xf]
  %v260 = vld [vmem:[%s5 + $0x18] sm:$0xf]
  %v261 = vld [vmem:[%s5 + $0x1c] sm:$0xf]
  %v262 = vld [vmem:[%s5 + $0x20] sm:$0xf]
  %v263 = vld [vmem:[%s5 + $0x24] sm:$0xf]
  %v264 = vld [vmem:[%s5 + $0x28] sm:$0xf]
  %v265 = vld [vmem:[%s5 + $0x2c] sm:$0xf]
  %v266 = vld [vmem:[%s5 + $0x30] sm:$0xf]
  %v267 = vld [vmem:[%s5 + $0x34] sm:$0xf]
  %v268 = vld [vmem:[%s5 + $0x38] sm:$0xf]
  %v269 = vld [vmem:[%s5 + $0x3c] sm:$0xf]
  %v270 = vld [vmem:[%s5 + $0x40] sm:$0xf]
  %v271 = vld [vmem:[%s5 + $0x44] sm:$0xf]
  %v272 = vld [vmem:[%s5 + $0x48] sm:$0xf]
  %v273 = vld [vmem:[%s5 + $0x4c] sm:$0xf]
  %v274 = vld [vmem:[%s5 + $0x50] sm:$0xf]
  %v275 = vld [vmem:[%s5 + $0x54] sm:$0xf]
  %v276 = vld [vmem:[%s5 + $0x58] sm:$0xf]
  %v277 = vld [vmem:[%s5 + $0x5c] sm:$0xf]
  %v278 = vld [vmem:[%s5 + $0x60] sm:$0xf]
  %v279 = vld [vmem:[%s5 + $0x64] sm:$0xf]
  %v280 = vld [vmem:[%s5 + $0x68] sm:$0xf]
  %v281 = vld [vmem:[%s5 + $0x6c] sm:$0xf]
  %v282 = vld [vmem:[%s5 + $0x70] sm:$0xf]
  %v283 = vld [vmem:[%s5 + $0x74] sm:$0xf]
  %v284 = vld [vmem:[%s5 + $0x78] sm:$0xf]
  %v285 = vld [vmem:[%s5 + $0x7c] sm:$0xf]
  %v318 = vunpack.c.l.b16 %v254
  %v319 = vunpack.c.l.b16 %v255
  %v320 = vunpack.c.l.b16 %v256
  %v321 = vunpack.c.l.b16 %v257
  %v322 = vunpack.c.l.b16 %v258
  %v323 = vunpack.c.l.b16 %v259
  %v324 = vunpack.c.l.b16 %v260
  %v325 = vunpack.c.l.b16 %v261
  %v326 = vunpack.c.l.b16 %v262
  %v327 = vunpack.c.l.b16 %v263
  %v328 = vunpack.c.l.b16 %v264
  %v329 = vunpack.c.l.b16 %v265
  %v330 = vunpack.c.l.b16 %v266
  %v331 = vunpack.c.l.b16 %v267
  %v332 = vunpack.c.l.b16 %v268
  %v333 = vunpack.c.l.b16 %v269
  %v334 = vunpack.c.l.b16 %v270
  %v335 = vunpack.c.l.b16 %v271
  %v336 = vunpack.c.l.b16 %v272
  %v337 = vunpack.c.l.b16 %v273
  %v338 = vunpack.c.l.b16 %v274
  %v339 = vunpack.c.l.b16 %v275
  %v340 = vunpack.c.l.b16 %v276
  %v341 = vunpack.c.l.b16 %v277
  %v342 = vunpack.c.l.b16 %v278
  %v343 = vunpack.c.l.b16 %v279
  %v344 = vunpack.c.l.b16 %v280
  %v345 = vunpack.c.l.b16 %v281
  %v346 = vunpack.c.l.b16 %v282
  %v347 = vunpack.c.l.b16 %v283
  %v348 = vunpack.c.l.b16 %v284
  %v349 = vunpack.c.l.b16 %v285
  %v350 = vpack.c.b16 %v319, %v318
  %v351 = vpack.c.b16 %v321, %v320
  %v352 = vpack.c.b16 %v323, %v322
  %v353 = vpack.c.b16 %v325, %v324
  %v354 = vpack.c.b16 %v327, %v326
  %v355 = vpack.c.b16 %v329, %v328
  %v356 = vpack.c.b16 %v331, %v330
  %v357 = vpack.c.b16 %v333, %v332
  %v358 = vpack.c.b16 %v335, %v334
  %v359 = vpack.c.b16 %v337, %v336
  %v360 = vpack.c.b16 %v339, %v338
  %v361 = vpack.c.b16 %v341, %v340
  %v362 = vpack.c.b16 %v343, %v342
  %v363 = vpack.c.b16 %v345, %v344
  %v364 = vpack.c.b16 %v347, %v346
  %v365 = vpack.c.b16 %v349, %v348
  %382 = vmatprep.subr.bf16.mxu0 0
  %383 = vmatpush1.bf16.msra.mxu0 %v350
  %384 = vmatprep.subr.bf16.mxu0 0
  %385 = vmatpush1.bf16.msra.mxu0 %v351
  %386 = vmatprep.subr.bf16.mxu0 0
  %387 = vmatpush1.bf16.msra.mxu0 %v352
  %388 = vmatprep.subr.bf16.mxu0 0
  %389 = vmatpush1.bf16.msra.mxu0 %v353
  %390 = vmatprep.subr.bf16.mxu0 0
  %391 = vmatpush1.bf16.msra.mxu0 %v354
  %392 = vmatprep.subr.bf16.mxu0 0
  %393 = vmatpush1.bf16.msra.mxu0 %v355
  %394 = vmatprep.subr.bf16.mxu0 0
  %395 = vmatpush1.bf16.msra.mxu0 %v356
  %396 = vmatprep.subr.bf16.mxu0 0
  %397 = vmatpush1.bf16.msra.mxu0 %v357
  %398 = vmatprep.subr.bf16.mxu0 0
  %399 = vmatpush1.bf16.msra.mxu0 %v358
  %400 = vmatprep.subr.bf16.mxu0 0
  %401 = vmatpush1.bf16.msra.mxu0 %v359
  %402 = vmatprep.subr.bf16.mxu0 0
  %403 = vmatpush1.bf16.msra.mxu0 %v360
  %404 = vmatprep.subr.bf16.mxu0 0
  %405 = vmatpush1.bf16.msra.mxu0 %v361
  %406 = vmatprep.subr.bf16.mxu0 0
  %407 = vmatpush1.bf16.msra.mxu0 %v362
  %408 = vmatprep.subr.bf16.mxu0 0
  %409 = vmatpush1.bf16.msra.mxu0 %v363
  %410 = vmatprep.subr.bf16.mxu0 0
  %411 = vmatpush1.bf16.msra.mxu0 %v364
  %412 = vmatprep.subr.bf16.mxu0 0
  %413 = vmatpush1.bf16.msra.mxu0 %v365
  %414 = vmatprep.mubr.bf16.mxu0 %v253
  %415 = vmatmul.mubr.bf16.gmra.mrb[0].mxu0 %v252
  %v416 = vpop.f32.mrb[0].mxu0
  %v417 = vadd.f32 0.0, %v416
  %v418 = vpop.f32.mrb[0].mxu0
  %v419 = vpop.f32.mrb[0].mxu0
  %v420 = vadd.f32 0.0, %v419
  %v421 = vpop.f32.mrb[0].mxu0
  %422 = vdwg.mxu0
  %v423 = vadd.f32 %v250, %v417
  %v424 = vadd.f32 %v251, %v420
  %425 = vst [vmem:[#allocation3] sm:$0xff] %v423
  %426 = vst [vmem:[#allocation3 + $0x8] sm:$0xff] %v424
  // Predicated region
  $region34: #{transformer_forward.9} parent=0 // pred_check
    %p427 = pneg %p27
  $region35: #{transformer_forward.9} parent=0 // pred_check_branch
    %429 = sbr.rel (%p427) target = $region37
  $region36: #{transformer_forward.9} parent=0 // pred_region
    %v430 = vld [vmem:[#allocation3] sm:$0xff]
    %v431 = vld [vmem:[#allocation3 + $0x8] sm:$0xff]
    %v432 = vld [vmem:[%s6] sm:$0x1]
    %v434 = vlaneseq
    %v435 = vshrl.u32 %v434, 7
    %v436 = vsub.s32 0, %v435
    %v437 = vrot.slane %v432, %v436
    %v439 = vadd.f32 %v430, %v437
    %v440 = vadd.f32 %v431, %v437
    %v441 = vld [vmem:[%s0] sm:$0xff]
    %v442 = vld [vmem:[%s0 + $0x8] sm:$0xff]
    %v443 = vadd.f32 %v439, %v441
    %v444 = vadd.f32 %v440, %v442
    %445 = vst [vmem:[%s7] sm:$0xff] %v443
    %446 = vst [vmem:[%s7 + $0x8] sm:$0xff] %v444
  $region37: #{transformer_forward.9} parent=0 // pred_fallthru
    _
  // Predicated region
  $region38: #{transformer_forward.9} parent=0 // pred_check
    _
  $region39: #{transformer_forward.9} parent=0 // pred_check_branch
    %448 = sbr.rel (0) target = $region41
  $region40: #{transformer_forward.9} parent=0 // pred_region
    _
  $region41: #{transformer_forward.9} parent=0 // pred_fallthru
    _
  // Predicated region
  $region42: #{transformer_forward.9} parent=0 // pred_check
    _
  $region43: #{transformer_forward.9} parent=0 // pred_check_branch
    %450 = sbr.rel (0) target = $region45
  $region44: #{transformer_forward.9} parent=0 // pred_region
    _
  $region45: #{transformer_forward.9} parent=0 // pred_fallthru
    _

// kernel: transformer_forward.8
$region0: #{transformer_forward.8}
  #allocation0 [shape = 'u32[]', space=smem, size = 0x4, offset = 0x4, fixed_abs, tag = 'smem constant byte address 0x4 - core index']
  #allocation1 [shape = 'u32[144,128]{1,0:T(1,128)}', space=vmem, size = 0x12000, scoped, tag = 'internal scratch']
  #allocation2 [shape = 'f32[4,8,1]{2,1,0:T(8,128)}', space=vmem, size = 0x4000, scoped, tag = 'scratch operand']
  #allocation3 [shape = 'f32[4,8,1]{2,1,0:T(8,128)}', space=vmem, size = 0x4000, scoped, tag = 'scratch operand']
  #allocation4 [shape = 'f32[4,8,32]{2,1,0:T(8,128)}', space=vmem, size = 0x4000, scoped, tag = 'scratch operand']
  #allocation5 [shape = 'bf16[8,128]{1,0:T(8,128)(2,1)}', space=vmem, size = 0x800, scoped, tag = 'scratch operand']
  %s0 = inlined_call_operand.vmem [shape: bf16[2,4,8,32], index: 0, kind: input, shape index: {}]
  %s1 = inlined_call_operand.vmem [shape: bf16[2,4,8,32], index: 1, kind: input, shape index: {}]
  %s2 = inlined_call_operand.vmem [shape: bf16[2,4,8,32], index: 2, kind: input, shape index: {}]
  %s3 = inlined_call_operand.vmem [shape: f32[2,8,128], index: 3, kind: input, shape index: {}]
  %s4 = inlined_call_operand.vmem [shape: bf16[128,128], index: 4, kind: input, shape index: {}]
  %s5 = inlined_call_operand.vmem [shape: f32[2,8,128], index: 5, kind: output, shape index: {}]
  %s6 = sld [smem:[#allocation0]]
  $region61: #{transformer_forward.8} parent=0
    _
  %s8 = ssub.s32 1, %s6
  %s9 = scalar_select 0, %s8, %s6
  loop: start=0, step=1, limit=4
  $region2: #{transformer_forward.8} parent=0 // loop_pre_header
    _
  $region3: #{transformer_forward.8} parent=0 // loop_header
    %s11 = sphi 0, %s15
    %p12 = scmp.ge.s32.totalorder %s11, 4
    %s18 = sphi 0, %s37
    %s19 = sphi 0, %s33
    %s20 = sphi 0, %s29
    %s21 = sphi 0, %s18
    %s22 = sphi 0, %s19
    %s23 = sphi 0, %s20
    %s24 = sphi 0, %s21
    %s25 = sphi 0, %s22
    %s26 = sphi 0, %s23
    %s42 = sphi 0, %s44
    %s45 = sphi 0, %s42
    %s46 = sphi 0, %s45
    %s62 = sphi 0, %s46
    %s70 = sphi 0, %s72
    %s73 = sphi 0, %s70
    %s74 = sphi 0, %s73
    %s90 = sphi 0, %s74
    %s98 = sphi 0, %s100
    %s101 = sphi 0, %s98
    %s102 = sphi 0, %s101
    %s118 = sphi 0, %s102
    %s126 = sphi 0, %s128
    %s129 = sphi 0, %s126
    %s130 = sphi 0, %s129
    %s146 = sphi 0, %s130
    %s150 = sphi 0, %s150
    %s152 = sphi 0, %s150
    %s153 = sphi 0, %s152
    %s167 = sphi 0, %s153
    %s175 = sphi 0, %s177
    %s178 = sphi 0, %s175
    %s179 = sphi 0, %s178
    %s195 = sphi 0, %s179
  $region4: #{transformer_forward.8} parent=0 // loop_header_branch
    %14 = sbr.rel (%p12) target = $region8
  $region5: #{transformer_forward.8} parent=0 // loop_body
    %s16 = ssub.s32 %s11, 1
    %s17 = ssub.s32 %s11, 2
    %s27 = sadd.s32 1, %s20
    %p28 = scmp.ge.s32.totalorder %s27, 1
    %s29 = scalar_select %p28, 0, %s27
    %s30 = sadd.s32 1, %s19
    %s31 = scalar_select %p28, %s30, %s19
    %p32 = scmp.ge.s32.totalorder %s31, 1
    %s33 = scalar_select %p32, 0, %s31
    %s34 = sadd.s32 1, %s18
    %s35 = scalar_select %p32, %s34, %s18
    %p36 = scmp.ge.s32.totalorder %s35, 2
    %s37 = scalar_select %p36, 0, %s35
    %s38 = ssub.s32 %s18, %s37
    %s39 = ssub.s32 %s19, %s33
    %s40 = sor.u32 %s38, %s39
    %p41 = scmp.eq.s32.totalorder %s40, 0
    %s43 = sadd.s32 %s42, 1
    %s44 = scalar_select %p41, %s42, %s43
    %p47 = pneg %p41
    %p48 = scmp.eq.s32.totalorder %s11, 1
    %p49 = por %p47, %p48
    %p50 = scmp.ne.s32.totalorder %s42, %s45
    %p51 = scmp.eq.s32.totalorder %s11, 0
    %p52 = por %p50, %p51
    %p53 = scmp.ne.s32.totalorder %s42, %s45
    %p54 = scmp.eq.s32.totalorder %s16, 1
    %p55 = por %p53, %p54
    %p56 = scmp.ne.s32.totalorder %s45, %s46
    %p57 = scmp.eq.s32.totalorder %s16, 0
    %p58 = por %p56, %p57
    %p59 = scmp.ne.s32.totalorder %s45, %s46
    %p60 = scmp.eq.s32.totalorder %s17, 1
    %p61 = por %p59, %p60
    %p63 = scmp.ne.s32.totalorder %s46, %s62
    %p64 = scmp.eq.s32.totalorder %s17, 0
    %p65 = por %p63, %p64
    %s66 = ssub.s32 %s18, %s37
    %s67 = ssub.s32 %s20, %s29
    %s68 = sor.u32 %s66, %s67
    %p69 = scmp.eq.s32.totalorder %s68, 0
    %s71 = sadd.s32 %s70, 1
    %s72 = scalar_select %p69, %s70, %s71
    %p75 = pneg %p69
    %p76 = scmp.eq.s32.totalorder %s11, 1
    %p77 = por %p75, %p76
    %p78 = scmp.ne.s32.totalorder %s70, %s73
    %p79 = scmp.eq.s32.totalorder %s11, 0
    %p80 = por %p78, %p79
    %p81 = scmp.ne.s32.totalorder %s70, %s73
    %p82 = scmp.eq.s32.totalorder %s16, 1
    %p83 = por %p81, %p82
    %p84 = scmp.ne.s32.totalorder %s73, %s74
    %p85 = scmp.eq.s32.totalorder %s16, 0
    %p86 = por %p84, %p85
    %p87 = scmp.ne.s32.totalorder %s73, %s74
    %p88 = scmp.eq.s32.totalorder %s17, 1
    %p89 = por %p87, %p88
    %p91 = scmp.ne.s32.totalorder %s74, %s90
    %p92 = scmp.eq.s32.totalorder %s17, 0
    %p93 = por %p91, %p92
    %s94 = ssub.s32 %s18, %s37
    %s95 = ssub.s32 %s20, %s29
    %s96 = sor.u32 %s94, %s95
    %p97 = scmp.eq.s32.totalorder %s96, 0
    %s99 = sadd.s32 %s98, 1
    %s100 = scalar_select %p97, %s98, %s99
    %p103 = pneg %p97
    %p104 = scmp.eq.s32.totalorder %s11, 1
    %p105 = por %p103, %p104
    %p106 = scmp.ne.s32.totalorder %s98, %s101
    %p107 = scmp.eq.s32.totalorder %s11, 0
    %p108 = por %p106, %p107
    %p109 = scmp.ne.s32.totalorder %s98, %s101
    %p110 = scmp.eq.s32.totalorder %s16, 1
    %p111 = por %p109, %p110
    %p112 = scmp.ne.s32.totalorder %s101, %s102
    %p113 = scmp.eq.s32.totalorder %s16, 0
    %p114 = por %p112, %p113
    %p115 = scmp.ne.s32.totalorder %s101, %s102
    %p116 = scmp.eq.s32.totalorder %s17, 1
    %p117 = por %p115, %p116
    %p119 = scmp.ne.s32.totalorder %s102, %s118
    %p120 = scmp.eq.s32.totalorder %s17, 0
    %p121 = por %p119, %p120
    %s122 = ssub.s32 %s18, %s37
    %s123 = ssub.s32 %s19, %s33
    %s124 = sor.u32 %s122, %s123
    %p125 = scmp.eq.s32.totalorder %s124, 0
    %s127 = sadd.s32 %s126, 1
    %s128 = scalar_select %p125, %s126, %s127
    %p131 = pneg %p125
    %p132 = scmp.eq.s32.totalorder %s11, 1
    %p133 = por %p131, %p132
    %p134 = scmp.ne.s32.totalorder %s126, %s129
    %p135 = scmp.eq.s32.totalorder %s11, 0
    %p136 = por %p134, %p135
    %p137 = scmp.ne.s32.totalorder %s126, %s129
    %p138 = scmp.eq.s32.totalorder %s16, 1
    %p139 = por %p137, %p138
    %p140 = scmp.ne.s32.totalorder %s129, %s130
    %p141 = scmp.eq.s32.totalorder %s16, 0
    %p142 = por %p140, %p141
    %p143 = scmp.ne.s32.totalorder %s129, %s130
    %p144 = scmp.eq.s32.totalorder %s17, 1
    %p145 = por %p143, %p144
    %p147 = scmp.ne.s32.totalorder %s130, %s146
    %p148 = scmp.eq.s32.totalorder %s17, 0
    %p149 = por %p147, %p148
    %s151 = sadd.s32 %s150, 1
    %p154 = scmp.eq.s32.totalorder %s11, 1
    %p155 = scmp.ne.s32.totalorder %s150, %s152
    %p156 = scmp.eq.s32.totalorder %s11, 0
    %p157 = por %p155, %p156
    %p158 = scmp.ne.s32.totalorder %s150, %s152
    %p159 = scmp.eq.s32.totalorder %s16, 1
    %p160 = por %p158, %p159
    %p161 = scmp.ne.s32.totalorder %s152, %s153
    %p162 = scmp.eq.s32.totalorder %s16, 0
    %p163 = por %p161, %p162
    %p164 = scmp.ne.s32.totalorder %s152, %s153
    %p165 = scmp.eq.s32.totalorder %s17, 1
    %p166 = por %p164, %p165
    %p168 = scmp.ne.s32.totalorder %s153, %s167
    %p169 = scmp.eq.s32.totalorder %s17, 0
    %p170 = por %p168, %p169
    %s171 = ssub.s32 %s18, %s37
    %s172 = ssub.s32 %s19, %s33
    %s173 = sor.u32 %s171, %s172
    %p174 = scmp.eq.s32.totalorder %s173, 0
    %s176 = sadd.s32 %s175, 1
    %s177 = scalar_select %p174, %s175, %s176
    %p180 = pneg %p174
    %p181 = scmp.eq.s32.totalorder %s11, 1
    %p182 = por %p180, %p181
    %p183 = scmp.ne.s32.totalorder %s175, %s178
    %p184 = scmp.eq.s32.totalorder %s11, 0
    %p185 = por %p183, %p184
    %p186 = scmp.ne.s32.totalorder %s175, %s178
    %p187 = scmp.eq.s32.totalorder %s16, 1
    %p188 = por %p186, %p187
    %p189 = scmp.ne.s32.totalorder %s178, %s179
    %p190 = scmp.eq.s32.totalorder %s16, 0
    %p191 = por %p189, %p190
    %p192 = scmp.ne.s32.totalorder %s178, %s179
    %p193 = scmp.eq.s32.totalorder %s17, 1
    %p194 = por %p192, %p193
    %p196 = scmp.ne.s32.totalorder %s179, %s195
    %p197 = scmp.eq.s32.totalorder %s17, 0
    %p198 = por %p196, %p197
    %p199 = scmp.le.s32.totalorder 1, %s11
    %p200 = scmp.lt.s32.totalorder %s11, 3
    %p201 = pnand %p199, %p200
    %p202 = pneg %p201
    // Predicated region
    $region9: #{transformer_forward.8} parent=5 // pred_check
      _
    $region10: #{transformer_forward.8} parent=5 // pred_check_branch
      %204 = sbr.rel (%p201) target = $region12
    $region11: #{transformer_forward.8} parent=5 // pred_region
      %s205 = ssub.s32 %s11, 1
      // Predicated region
      $region13: #{transformer_forward.8} parent=11 // pred_check
        %p206 = pneg %p163
      $region14: #{transformer_forward.8} parent=11 // pred_check_branch
        %208 = sbr.rel (%p206) target = $region16
      $region15: #{transformer_forward.8} parent=11 // pred_region
        _
      $region16: #{transformer_forward.8} parent=11 // pred_fallthru
        _
    $region12: #{transformer_forward.8} parent=5 // pred_fallthru
      _
    %p209 = scmp.lt.s32.totalorder %s11, 2
    // Predicated region
    $region17: #{transformer_forward.8} parent=5 // pred_check
      %p210 = pneg %p209
    $region18: #{transformer_forward.8} parent=5 // pred_check_branch
      %212 = sbr.rel (%p210) target = $region20
    $region19: #{transformer_forward.8} parent=5 // pred_region
      // Predicated region
      $region21: #{transformer_forward.8} parent=19 // pred_check
        %p213 = pneg %p52
      $region22: #{transformer_forward.8} parent=19 // pred_check_branch
        %215 = sbr.rel (%p213) target = $region24
      $region23: #{transformer_forward.8} parent=19 // pred_region
        %p216 = scmp.lt.s32.totalorder %s18, 1
        %s217 = scalar_select %p216, %s18, 1
        %p218 = scmp.lt.s32.totalorder %s19, 0
        %s219 = scalar_select %p218, %s19, 0
        %s220 = smul.addr %s217, 4
        %s221 = sadd.s32 %s219, %s220
        %s222 = smul.addr %s221, 4
        %s223 = scalar_lea.vmem %s0, %s222
      $region24: #{transformer_forward.8} parent=19 // pred_fallthru
        _
      // Predicated region
      $region25: #{transformer_forward.8} parent=19 // pred_check
        %p224 = pneg %p80
      $region26: #{transformer_forward.8} parent=19 // pred_check_branch
        %226 = sbr.rel (%p224) target = $region28
      $region27: #{transformer_forward.8} parent=19 // pred_region
        %p227 = scmp.lt.s32.totalorder %s18, 1
        %s228 = scalar_select %p227, %s18, 1
        %p229 = scmp.lt.s32.totalorder %s20, 0
        %s230 = scalar_select %p229, %s20, 0
        %s231 = smul.addr %s228, 4
        %s232 = sadd.s32 %s230, %s231
        %s233 = smul.addr %s232, 4
        %s234 = scalar_lea.vmem %s1, %s233
      $region28: #{transformer_forward.8} parent=19 // pred_fallthru
        _
      // Predicated region
      $region29: #{transformer_forward.8} parent=19 // pred_check
        %p235 = pneg %p108
      $region30: #{transformer_forward.8} parent=19 // pred_check_branch
        %237 = sbr.rel (%p235) target = $region32
      $region31: #{transformer_forward.8} parent=19 // pred_region
        %p238 = scmp.lt.s32.totalorder %s18, 1
        %s239 = scalar_select %p238, %s18, 1
        %p240 = scmp.lt.s32.totalorder %s20, 0
        %s241 = scalar_select %p240, %s20, 0
        %s242 = smul.addr %s239, 4
        %s243 = sadd.s32 %s241, %s242
        %s244 = smul.addr %s243, 4
        %s245 = scalar_lea.vmem %s2, %s244
      $region32: #{transformer_forward.8} parent=19 // pred_fallthru
        _
      // Predicated region
      $region33: #{transformer_forward.8} parent=19 // pred_check
        %p246 = pneg %p136
      $region34: #{transformer_forward.8} parent=19 // pred_check_branch
        %248 = sbr.rel (%p246) target = $region36
      $region35: #{transformer_forward.8} parent=19 // pred_region
        %p249 = scmp.lt.s32.totalorder %s18, 1
        %s250 = scalar_select %p249, %s18, 1
        %p251 = scmp.lt.s32.totalorder %s19, 0
        %s252 = scalar_select %p251, %s19, 0
        %s253 = sadd.s32 %s252, %s250
        %s254 = smul.addr %s253, 8
        %s255 = scalar_lea.vmem %s3, %s254
      $region36: #{transformer_forward.8} parent=19 // pred_fallthru
        _
    $region20: #{transformer_forward.8} parent=5 // pred_fallthru
      _
    %p256 = scmp.le.s32.totalorder 1, %s11
    %p257 = scmp.lt.s32.totalorder %s11, 3
    %p258 = pnand %p256, %p257
    %p259 = pneg %p258
    // Predicated region
    $region37: #{transformer_forward.8} parent=5 // pred_check
      _
    $region38: #{transformer_forward.8} parent=5 // pred_check_branch
      %261 = sbr.rel (%p258) target = $region40
    $region39: #{transformer_forward.8} parent=5 // pred_region
      %s262 = ssub.s32 %s11, 1
      %p263 = scmp.lt.s32.totalorder %s21, 1
      %s264 = scalar_select %p263, %s21, 1
      %p265 = scmp.lt.s32.totalorder %s22, 0
      %s266 = scalar_select %p265, %s22, 0
      %s267 = smul.addr %s264, 4
      %s268 = sadd.s32 %s266, %s267
      %s269 = smul.addr %s268, 4
      %s270 = scalar_lea.vmem %s0, %s269
      %p271 = pneg %p58
      %p272 = pneg %p55
      %p273 = scmp.lt.s32.totalorder %s21, 1
      %s274 = scalar_select %p273, %s21, 1
      %p275 = scmp.lt.s32.totalorder %s23, 0
      %s276 = scalar_select %p275, %s23, 0
      %s277 = smul.addr %s274, 4
      %s278 = sadd.s32 %s276, %s277
      %s279 = smul.addr %s278, 4
      %s280 = scalar_lea.vmem %s1, %s279
      %p281 = pneg %p86
      %p282 = pneg %p83
      %p283 = scmp.lt.s32.totalorder %s21, 1
      %s284 = scalar_select %p283, %s21, 1
      %p285 = scmp.lt.s32.totalorder %s23, 0
      %s286 = scalar_select %p285, %s23, 0
      %s287 = smul.addr %s284, 4
      %s288 = sadd.s32 %s286, %s287
      %s289 = smul.addr %s288, 4
      %s290 = scalar_lea.vmem %s2, %s289
      %p291 = pneg %p114
      %p292 = pneg %p111
      %p293 = scmp.lt.s32.totalorder %s21, 1
      %s294 = scalar_select %p293, %s21, 1
      %p295 = scmp.lt.s32.totalorder %s22, 0
      %s296 = scalar_select %p295, %s22, 0
      %s297 = sadd.s32 %s296, %s294
      %s298 = smul.addr %s297, 8
      %s299 = scalar_lea.vmem %s3, %s298
      %p300 = pneg %p142
      %p301 = pneg %p139
      %p302 = pneg %p163
      %p303 = pneg %p160
      %p304 = pneg %p191
      %p305 = pneg %p188
      %p306 = scmp.lt.s32.totalorder %s21, 1
      %s307 = scalar_select %p306, %s21, 1
      %p308 = scmp.lt.s32.totalorder %s22, 0
      %s309 = scalar_select %p308, %s22, 0
      %s310 = sadd.s32 %s309, %s307
      %s311 = smul.addr %s310, 8
      %s312 = scalar_lea.vmem %s5, %s311
      %p313 = scmp.lt.s32.totalorder %s21, 1
      %s314 = scalar_select %p313, %s21, 1
      %p315 = scmp.lt.s32.totalorder %s22, 0
      %s316 = scalar_select %p315, %s22, 0
      %s317 = smul.addr %s314, 4
      %s318 = sadd.s32 %s316, %s317
      %s319 = smul.addr %s318, 4
      %s320 = scalar_lea.vmem %s0, %s319
      %p321 = scmp.lt.s32.totalorder %s21, 1
      %s322 = scalar_select %p321, %s21, 1
      %p323 = scmp.lt.s32.totalorder %s23, 0
      %s324 = scalar_select %p323, %s23, 0
      %s325 = smul.addr %s322, 4
      %s326 = sadd.s32 %s324, %s325
      %s327 = smul.addr %s326, 4
      %s328 = scalar_lea.vmem %s1, %s327
      %p329 = scmp.lt.s32.totalorder %s21, 1
      %s330 = scalar_select %p329, %s21, 1
      %p331 = scmp.lt.s32.totalorder %s23, 0
      %s332 = scalar_select %p331, %s23, 0
      %s333 = smul.addr %s330, 4
      %s334 = sadd.s32 %s332, %s333
      %s335 = smul.addr %s334, 4
      %s336 = scalar_lea.vmem %s2, %s335
      %p337 = scmp.lt.s32.totalorder %s21, 1
      %s338 = scalar_select %p337, %s21, 1
      %p339 = scmp.lt.s32.totalorder %s22, 0
      %s340 = scalar_select %p339, %s22, 0
      %s341 = sadd.s32 %s340, %s338
      %s342 = smul.addr %s341, 8
      %s343 = scalar_lea.vmem %s3, %s342
      %p344 = scmp.lt.s32.totalorder %s21, 1
      %s345 = scalar_select %p344, %s21, 1
      %p346 = scmp.lt.s32.totalorder %s22, 0
      %s347 = scalar_select %p346, %s22, 0
      %s348 = sadd.s32 %s347, %s345
      %s349 = smul.addr %s348, 8
      %s350 = scalar_lea.vmem %s5, %s349
      %p352 = scmp.eq.s32.totalorder %s23, 0
      // Predicated region
      $region41: #{transformer_forward.8} parent=39 // pred_check
        %p353 = pneg %p352
      $region42: #{transformer_forward.8} parent=39 // pred_check_branch
        %355 = sbr.rel (%p353) target = $region44
      $region43: #{transformer_forward.8} parent=39 // pred_region
        %vm356 = vcmask 7168
        %357 = vst.msk [vmem:[#allocation2] sm:$0xff] %vm356, -inf
        %358 = vst.msk [vmem:[#allocation2 + $0x8] sm:$0xff] %vm356, -inf
        %359 = vst.msk [vmem:[#allocation2 + $0x10] sm:$0xff] %vm356, -inf
        %360 = vst.msk [vmem:[#allocation2 + $0x18] sm:$0xff] %vm356, -inf
        %361 = vst.msk [vmem:[#allocation3] sm:$0xff] %vm356, 0.0
        %362 = vst.msk [vmem:[#allocation3 + $0x8] sm:$0xff] %vm356, 0.0
        %363 = vst.msk [vmem:[#allocation3 + $0x10] sm:$0xff] %vm356, 0.0
        %364 = vst.msk [vmem:[#allocation3 + $0x18] sm:$0xff] %vm356, 0.0
        %vm365 = vcmask 261120
        %366 = vst.msk [vmem:[#allocation4] sm:$0xff] %vm365, 0.0
        %367 = vst.msk [vmem:[#allocation4 + $0x8] sm:$0xff] %vm365, 0.0
        %368 = vst.msk [vmem:[#allocation4 + $0x10] sm:$0xff] %vm365, 0.0
        %369 = vst.msk [vmem:[#allocation4 + $0x18] sm:$0xff] %vm365, 0.0
      $region44: #{transformer_forward.8} parent=39 // pred_fallthru
        _
      %v370 = vld [vmem:[%s320] sm:$0xf]
      %v371 = vld [vmem:[%s320 + $0x4] sm:$0xf]
      %v372 = vld [vmem:[%s320 + $0x8] sm:$0xf]
      %v373 = vld [vmem:[%s320 + $0xc] sm:$0xf]
      %v374 = vld [vmem:[%s328] sm:$0xf]
      %v375 = vld [vmem:[%s328 + $0x4] sm:$0xf]
      %v376 = vld [vmem:[%s328 + $0x8] sm:$0xf]
      %v377 = vld [vmem:[%s328 + $0xc] sm:$0xf]
      %vm378 = vcmask 261120
      %v380 = vsel %vm378, %v370, 0
      %v383 = vsel %vm378, %v374, 0
      %385 = vmatprep.subr.bf16.mxu0 0
      %386 = vmatpush1.bf16.xpose.msra.mxu0 %v383
      %387 = vmatprep.subr.bf16.mxu0 0
      %388 = vmatpush1.bf16.xpose.msra.mxu0 0
      %389 = vmatprep.subr.bf16.mxu0 0
      %390 = vmatpush1.bf16.xpose.msra.mxu0 0
      %391 = vmatprep.subr.bf16.mxu0 0
      %392 = vmatpush1.bf16.xpose.msra.mxu0 0
      %393 = vmatprep.subr.bf16.mxu0 0
      %394 = vmatpush1.bf16.xpose.msra.mxu0 0
      %395 = vmatprep.subr.bf16.mxu0 0
      %396 = vmatpush1.bf16.xpose.msra.mxu0 0
      %397 = vmatprep.subr.bf16.mxu0 0
      %398 = vmatpush1.bf16.xpose.msra.mxu0 0
      %399 = vmatprep.subr.bf16.mxu0 0
      %400 = vmatpush1.bf16.xpose.msra.mxu0 0
      %401 = vmatprep.subr.bf16.mxu0 0
      %402 = vmatpush1.bf16.xpose.msra.mxu0 0
      %403 = vmatprep.subr.bf16.mxu0 0
      %404 = vmatpush1.bf16.xpose.msra.mxu0 0
      %405 = vmatprep.subr.bf16.mxu0 0
      %406 = vmatpush1.bf16.xpose.msra.mxu0 0
      %407 = vmatprep.subr.bf16.mxu0 0
      %408 = vmatpush1.bf16.xpose.msra.mxu0 0
      %409 = vmatprep.subr.bf16.mxu0 0
      %410 = vmatpush1.bf16.xpose.msra.mxu0 0
      %411 = vmatprep.subr.bf16.mxu0 0
      %412 = vmatpush1.bf16.xpose.msra.mxu0 0
      %413 = vmatprep.subr.bf16.mxu0 0
      %414 = vmatpush1.bf16.xpose.msra.mxu0 0
      %415 = vmatprep.subr.bf16.mxu0 0
      %416 = vmatpush1.bf16.xpose.msra.mxu0 0
      %417 = vmatprep.mubr.bf16.mxu0 0
      %418 = vmatmul.mubr.bf16.gmra.mrb[0].mxu0 %v380
      %v419 = vpop.f32.mrb[0].mxu0
      %v420 = vadd.f32 0.0, %v419
      %v421 = vpop.f32.mrb[0].mxu0
      %v422 = vpop.f32.mrb[0].mxu0
      %v423 = vpop.f32.mrb[0].mxu0
      %424 = vdwg.mxu0
      %v426 = vsel %vm378, %v371, 0
      %v429 = vsel %vm378, %v375, 0
      %431 = vmatprep.subr.bf16.mxu0 0
      %432 = vmatpush1.bf16.xpose.msra.mxu0 %v429
      %433 = vmatprep.subr.bf16.mxu0 0
      %434 = vmatpush1.bf16.xpose.msra.mxu0 0
      %435 = vmatprep.subr.bf16.mxu0 0
      %436 = vmatpush1.bf16.xpose.msra.mxu0 0
      %437 = vmatprep.subr.bf16.mxu0 0
      %438 = vmatpush1.bf16.xpose.msra.mxu0 0
      %439 = vmatprep.subr.bf16.mxu0 0
      %440 = vmatpush1.bf16.xpose.msra.mxu0 0
      %441 = vmatprep.subr.bf16.mxu0 0
      %442 = vmatpush1.bf16.xpose.msra.mxu0 0
      %443 = vmatprep.subr.bf16.mxu0 0
      %444 = vmatpush1.bf16.xpose.msra.mxu0 0
      %445 = vmatprep.subr.bf16.mxu0 0
      %446 = vmatpush1.bf16.xpose.msra.mxu0 0
      %447 = vmatprep.subr.bf16.mxu0 0
      %448 = vmatpush1.bf16.xpose.msra.mxu0 0
      %449 = vmatprep.subr.bf16.mxu0 0
      %450 = vmatpush1.bf16.xpose.msra.mxu0 0
      %451 = vmatprep.subr.bf16.mxu0 0
      %452 = vmatpush1.bf16.xpose.msra.mxu0 0
      %453 = vmatprep.subr.bf16.mxu0 0
      %454 = vmatpush1.bf16.xpose.msra.mxu0 0
      %455 = vmatprep.subr.bf16.mxu0 0
      %456 = vmatpush1.bf16.xpose.msra.mxu0 0
      %457 = vmatprep.subr.bf16.mxu0 0
      %458 = vmatpush1.bf16.xpose.msra.mxu0 0
      %459 = vmatprep.subr.bf16.mxu0 0
      %460 = vmatpush1.bf16.xpose.msra.mxu0 0
      %461 = vmatprep.subr.bf16.mxu0 0
      %462 = vmatpush1.bf16.xpose.msra.mxu0 0
      %463 = vmatprep.mubr.bf16.mxu0 0
      %464 = vmatmul.mubr.bf16.gmra.mrb[0].mxu0 %v426
      %v465 = vpop.f32.mrb[0].mxu0
      %v466 = vadd.f32 0.0, %v465
      %v467 = vpop.f32.mrb[0].mxu0
      %v468 = vpop.f32.mrb[0].mxu0
      %v469 = vpop.f32.mrb[0].mxu0
      %470 = vdwg.mxu0
      %v472 = vsel %vm378, %v372, 0
      %v475 = vsel %vm378, %v376, 0
      %477 = vmatprep.subr.bf16.mxu0 0
      %478 = vmatpush1.bf16.xpose.msra.mxu0 %v475
      %479 = vmatprep.subr.bf16.mxu0 0
      %480 = vmatpush1.bf16.xpose.msra.mxu0 0
      %481 = vmatprep.subr.bf16.mxu0 0
      %482 = vmatpush1.bf16.xpose.msra.mxu0 0
      %483 = vmatprep.subr.bf16.mxu0 0
      %484 = vmatpush1.bf16.xpose.msra.mxu0 0
      %485 = vmatprep.subr.bf16.mxu0 0
      %486 = vmatpush1.bf16.xpose.msra.mxu0 0
      %487 = vmatprep.subr.bf16.mxu0 0
      %488 = vmatpush1.bf16.xpose.msra.mxu0 0
      %489 = vmatprep.subr.bf16.mxu0 0
      %490 = vmatpush1.bf16.xpose.msra.mxu0 0
      %491 = vmatprep.subr.bf16.mxu0 0
      %492 = vmatpush1.bf16.xpose.msra.mxu0 0
      %493 = vmatprep.subr.bf16.mxu0 0
      %494 = vmatpush1.bf16.xpose.msra.mxu0 0
      %495 = vmatprep.subr.bf16.mxu0 0
      %496 = vmatpush1.bf16.xpose.msra.mxu0 0
      %497 = vmatprep.subr.bf16.mxu0 0
      %498 = vmatpush1.bf16.xpose.msra.mxu0 0
      %499 = vmatprep.subr.bf16.mxu0 0
      %500 = vmatpush1.bf16.xpose.msra.mxu0 0
      %501 = vmatprep.subr.bf16.mxu0 0
      %502 = vmatpush1.bf16.xpose.msra.mxu0 0
      %503 = vmatprep.subr.bf16.mxu0 0
      %504 = vmatpush1.bf16.xpose.msra.mxu0 0
      %505 = vmatprep.subr.bf16.mxu0 0
      %506 = vmatpush1.bf16.xpose.msra.mxu0 0
      %507 = vmatprep.subr.bf16.mxu0 0
      %508 = vmatpush1.bf16.xpose.msra.mxu0 0
      %509 = vmatprep.mubr.bf16.mxu0 0
      %510 = vmatmul.mubr.bf16.gmra.mrb[0].mxu0 %v472
      %v511 = vpop.f32.mrb[0].mxu0
      %v512 = vadd.f32 0.0, %v511
      %v513 = vpop.f32.mrb[0].mxu0
      %v514 = vpop.f32.mrb[0].mxu0
      %v515 = vpop.f32.mrb[0].mxu0
      %516 = vdwg.mxu0
      %v518 = vsel %vm378, %v373, 0
      %v521 = vsel %vm378, %v377, 0
      %523 = vmatprep.subr.bf16.mxu0 0
      %524 = vmatpush1.bf16.xpose.msra.mxu0 %v521
      %525 = vmatprep.subr.bf16.mxu0 0
      %526 = vmatpush1.bf16.xpose.msra.mxu0 0
      %527 = vmatprep.subr.bf16.mxu0 0
      %528 = vmatpush1.bf16.xpose.msra.mxu0 0
      %529 = vmatprep.subr.bf16.mxu0 0
      %530 = vmatpush1.bf16.xpose.msra.mxu0 0
      %531 = vmatprep.subr.bf16.mxu0 0
      %532 = vmatpush1.bf16.xpose.msra.mxu0 0
      %533 = vmatprep.subr.bf16.mxu0 0
      %534 = vmatpush1.bf16.xpose.msra.mxu0 0
      %535 = vmatprep.subr.bf16.mxu0 0
      %536 = vmatpush1.bf16.xpose.msra.mxu0 0
      %537 = vmatprep.subr.bf16.mxu0 0
      %538 = vmatpush1.bf16.xpose.msra.mxu0 0
      %539 = vmatprep.subr.bf16.mxu0 0
      %540 = vmatpush1.bf16.xpose.msra.mxu0 0
      %541 = vmatprep.subr.bf16.mxu0 0
      %542 = vmatpush1.bf16.xpose.msra.mxu0 0
      %543 = vmatprep.subr.bf16.mxu0 0
      %544 = vmatpush1.bf16.xpose.msra.mxu0 0
      %545 = vmatprep.subr.bf16.mxu0 0
      %546 = vmatpush1.bf16.xpose.msra.mxu0 0
      %547 = vmatprep.subr.bf16.mxu0 0
      %548 = vmatpush1.bf16.xpose.msra.mxu0 0
      %549 = vmatprep.subr.bf16.mxu0 0
      %550 = vmatpush1.bf16.xpose.msra.mxu0 0
      %551 = vmatprep.subr.bf16.mxu0 0
      %552 = vmatpush1.bf16.xpose.msra.mxu0 0
      %553 = vmatprep.subr.bf16.mxu0 0
      %554 = vmatpush1.bf16.xpose.msra.mxu0 0
      %555 = vmatprep.mubr.bf16.mxu0 0
      %556 = vmatmul.mubr.bf16.gmra.mrb[0].mxu0 %v518
      %v557 = vpop.f32.mrb[0].mxu0
      %v558 = vadd.f32 0.0, %v557
      %v559 = vpop.f32.mrb[0].mxu0
      %v560 = vpop.f32.mrb[0].mxu0
      %v561 = vpop.f32.mrb[0].mxu0
      %562 = vdwg.mxu0
      %v563 = vld [vmem:[#allocation2] sm:$0xff]
      %v564 = vld [vmem:[#allocation2 + $0x8] sm:$0xff]
      %v565 = vld [vmem:[#allocation2 + $0x10] sm:$0xff]
      %v566 = vld [vmem:[#allocation2 + $0x18] sm:$0xff]
      %vm567 = vcmask 64512
      %v568 = vsel %vm567, %v420, -inf
      %569 = vmax.xlane.f32.xlu0 %v568
      %v570 = vpop.xlane.xlu0 %569
      %v571 = vsel %vm567, %v466, -inf
      %572 = vmax.xlane.f32.xlu0 %v571
      %v573 = vpop.xlane.xlu0 %572
      %v574 = vsel %vm567, %v512, -inf
      %575 = vmax.xlane.f32.xlu0 %v574
      %v576 = vpop.xlane.xlu0 %575
      %v577 = vsel %vm567, %v558, -inf
      %578 = vmax.xlane.f32.xlu0 %v577
      %v579 = vpop.xlane.xlu0 %578
      %v580 = vmax.f32 %v563, %v570
      %v581 = vmax.f32 %v564, %v573
      %v582 = vmax.f32 %v565, %v576
      %v583 = vmax.f32 %v566, %v579
      %v584 = vsub.f32 %v563, %v580
      %v585 = vsub.f32 %v564, %v581
      %v586 = vsub.f32 %v565, %v582
      %v587 = vsub.f32 %v566, %v583
      %v588 = vmul.f32 %v584, 1.442695
      %v589 = vpow.pop %v588
      %v590 = vmul.f32 %v585, 1.442695
      %v591 = vpow.pop %v590
      %v592 = vmul.f32 %v586, 1.442695
      %v593 = vpow.pop %v592
      %v594 = vmul.f32 %v587, 1.442695
      %v595 = vpow.pop %v594
      %597 = vset.pattern.permute.xlu0 0
      %598 = vperm.xlu0 %597, %v580
      %v599 = vpop.permute.xlu0 %598
      %602 = vset.pattern.permute.xlu0 0
      %603 = vperm.xlu0 %602, %v581
      %v604 = vpop.permute.xlu0 %603
      %607 = vset.pattern.permute.xlu0 0
      %608 = vperm.xlu0 %607, %v582
      %v609 = vpop.permute.xlu0 %608
      %612 = vset.pattern.permute.xlu0 0
      %613 = vperm.xlu0 %612, %v583
      %v614 = vpop.permute.xlu0 %613
      %v616 = vsub.f32 %v420, %v599
      %v617 = vsub.f32 %v466, %v604
      %v618 = vsub.f32 %v512, %v609
      %v619 = vsub.f32 %v558, %v614
      %v620 = vmul.f32 %v616, 1.442695
      %v621 = vpow.pop %v620
      %v622 = vmul.f32 %v617, 1.442695
      %v623 = vpow.pop %v622
      %v624 = vmul.f32 %v618, 1.442695
      %v625 = vpow.pop %v624
      %v626 = vmul.f32 %v619, 1.442695
      %v627 = vpow.pop %v626
      %v628 = vld [vmem:[#allocation3] sm:$0xff]
      %v629 = vld [vmem:[#allocation3 + $0x8] sm:$0xff]
      %v630 = vld [vmem:[#allocation3 + $0x10] sm:$0xff]
      %v631 = vld [vmem:[#allocation3 + $0x18] sm:$0xff]
      %v632 = vmul.f32 %v589, %v628
      %v633 = vmul.f32 %v591, %v629
      %v634 = vmul.f32 %v593, %v630
      %v635 = vmul.f32 %v595, %v631
      %v636 = vsel %vm567, %v621, 0.0
      %637 = vadd.xlane.f32.xlu0 %v636
      %v638 = vpop.xlane.xlu0 %637
      %v639 = vsel %vm567, %v623, 0.0
      %640 = vadd.xlane.f32.xlu0 %v639
      %v641 = vpop.xlane.xlu0 %640
      %v642 = vsel %vm567, %v625, 0.0
      %643 = vadd.xlane.f32.xlu0 %v642
      %v644 = vpop.xlane.xlu0 %643
      %v645 = vsel %vm567, %v627, 0.0
      %646 = vadd.xlane.f32.xlu0 %v645
      %v647 = vpop.xlane.xlu0 %646
      %v648 = vadd.f32 %v632, %v638
      %v649 = vadd.f32 %v633, %v641
      %v650 = vadd.f32 %v634, %v644
      %v651 = vadd.f32 %v635, %v647
      %vm652 = vcmask 7168
      %653 = vst.msk [vmem:[#allocation3] sm:$0xff] %vm652, %v648
      %654 = vst.msk [vmem:[#allocation3 + $0x8] sm:$0xff] %vm652, %v649
      %655 = vst.msk [vmem:[#allocation3 + $0x10] sm:$0xff] %vm652, %v650
      %656 = vst.msk [vmem:[#allocation3 + $0x18] sm:$0xff] %vm652, %v651
      %v657 = vld [vmem:[#allocation4] sm:$0xff]
      %v658 = vld [vmem:[#allocation4 + $0x8] sm:$0xff]
      %v659 = vld [vmem:[#allocation4 + $0x10] sm:$0xff]
      %v660 = vld [vmem:[#allocation4 + $0x18] sm:$0xff]
      %662 = vset.pattern.permute.xlu0 0
      %663 = vperm.xlu0 %662, %v589
      %v664 = vpop.permute.xlu0 %663
      %667 = vset.pattern.permute.xlu0 0
      %668 = vperm.xlu0 %667, %v591
      %v669 = vpop.permute.xlu0 %668
      %672 = vset.pattern.permute.xlu0 0
      %673 = vperm.xlu0 %672, %v593
      %v674 = vpop.permute.xlu0 %673
      %677 = vset.pattern.permute.xlu0 0
      %678 = vperm.xlu0 %677, %v595
      %v679 = vpop.permute.xlu0 %678
      %v681 = vmul.f32 %v664, %v657
      %v682 = vmul.f32 %v669, %v658
      %v683 = vmul.f32 %v674, %v659
      %v684 = vmul.f32 %v679, %v660
      %v685 = vpack.c.bf16 %v621, %v621
      %v686 = vpack.c.bf16 %v623, %v623
      %v687 = vpack.c.bf16 %v625, %v625
      %v688 = vpack.c.bf16 %v627, %v627
      %v689 = vld [vmem:[%s336] sm:$0xf]
      %v690 = vld [vmem:[%s336 + $0x4] sm:$0xf]
      %v691 = vld [vmem:[%s336 + $0x8] sm:$0xf]
      %v692 = vld [vmem:[%s336 + $0xc] sm:$0xf]
      %v694 = vsel %vm567, %v685, 0
      %vm696 = vcmask 1043456
      %v698 = vsel %vm696, %v689, 0
      %700 = vmatprep.subr.bf16.mxu0 0
      %701 = vmatpush1.bf16.msra.mxu0 %v698
      %702 = vmatprep.subr.bf16.mxu0 0
      %703 = vmatpush1.bf16.msra.mxu0 0
      %704 = vmatprep.subr.bf16.mxu0 0
      %705 = vmatpush1.bf16.msra.mxu0 0
      %706 = vmatprep.subr.bf16.mxu0 0
      %707 = vmatpush1.bf16.msra.mxu0 0
      %708 = vmatprep.subr.bf16.mxu0 0
      %709 = vmatpush1.bf16.msra.mxu0 0
      %710 = vmatprep.subr.bf16.mxu0 0
      %711 = vmatpush1.bf16.msra.mxu0 0
      %712 = vmatprep.subr.bf16.mxu0 0
      %713 = vmatpush1.bf16.msra.mxu0 0
      %714 = vmatprep.subr.bf16.mxu0 0
      %715 = vmatpush1.bf16.msra.mxu0 0
      %716 = vmatprep.subr.bf16.mxu0 0
      %717 = vmatpush1.bf16.msra.mxu0 0
      %718 = vmatprep.subr.bf16.mxu0 0
      %719 = vmatpush1.bf16.msra.mxu0 0
      %720 = vmatprep.subr.bf16.mxu0 0
      %721 = vmatpush1.bf16.msra.mxu0 0
      %722 = vmatprep.subr.bf16.mxu0 0
      %723 = vmatpush1.bf16.msra.mxu0 0
      %724 = vmatprep.subr.bf16.mxu0 0
      %725 = vmatpush1.bf16.msra.mxu0 0
      %726 = vmatprep.subr.bf16.mxu0 0
      %727 = vmatpush1.bf16.msra.mxu0 0
      %728 = vmatprep.subr.bf16.mxu0 0
      %729 = vmatpush1.bf16.msra.mxu0 0
      %730 = vmatprep.subr.bf16.mxu0 0
      %731 = vmatpush1.bf16.msra.mxu0 0
      %732 = vmatprep.mubr.bf16.mxu0 0
      %733 = vmatmul.mubr.bf16.gmra.mrb[0].mxu0 %v694
      %v734 = vpop.f32.mrb[0].mxu0
      %v735 = vadd.f32 0.0, %v734
      %v736 = vpop.f32.mrb[0].mxu0
      %v737 = vpop.f32.mrb[0].mxu0
      %v738 = vpop.f32.mrb[0].mxu0
      %739 = vdwg.mxu0
      %v741 = vsel %vm567, %v686, 0
      %v744 = vsel %vm696, %v690, 0
      %746 = vmatprep.subr.bf16.mxu0 0
      %747 = vmatpush1.bf16.msra.mxu0 %v744
      %748 = vmatprep.subr.bf16.mxu0 0
      %749 = vmatpush1.bf16.msra.mxu0 0
      %750 = vmatprep.subr.bf16.mxu0 0
      %751 = vmatpush1.bf16.msra.mxu0 0
      %752 = vmatprep.subr.bf16.mxu0 0
      %753 = vmatpush1.bf16.msra.mxu0 0
      %754 = vmatprep.subr.bf16.mxu0 0
      %755 = vmatpush1.bf16.msra.mxu0 0
      %756 = vmatprep.subr.bf16.mxu0 0
      %757 = vmatpush1.bf16.msra.mxu0 0
      %758 = vmatprep.subr.bf16.mxu0 0
      %759 = vmatpush1.bf16.msra.mxu0 0
      %760 = vmatprep.subr.bf16.mxu0 0
      %761 = vmatpush1.bf16.msra.mxu0 0
      %762 = vmatprep.subr.bf16.mxu0 0
      %763 = vmatpush1.bf16.msra.mxu0 0
      %764 = vmatprep.subr.bf16.mxu0 0
      %765 = vmatpush1.bf16.msra.mxu0 0
      %766 = vmatprep.subr.bf16.mxu0 0
      %767 = vmatpush1.bf16.msra.mxu0 0
      %768 = vmatprep.subr.bf16.mxu0 0
      %769 = vmatpush1.bf16.msra.mxu0 0
      %770 = vmatprep.subr.bf16.mxu0 0
      %771 = vmatpush1.bf16.msra.mxu0 0
      %772 = vmatprep.subr.bf16.mxu0 0
      %773 = vmatpush1.bf16.msra.mxu0 0
      %774 = vmatprep.subr.bf16.mxu0 0
      %775 = vmatpush1.bf16.msra.mxu0 0
      %776 = vmatprep.subr.bf16.mxu0 0
      %777 = vmatpush1.bf16.msra.mxu0 0
      %778 = vmatprep.mubr.bf16.mxu0 0
      %779 = vmatmul.mubr.bf16.gmra.mrb[0].mxu0 %v741
      %v780 = vpop.f32.mrb[0].mxu0
      %v781 = vadd.f32 0.0, %v780
      %v782 = vpop.f32.mrb[0].mxu0
      %v783 = vpop.f32.mrb[0].mxu0
      %v784 = vpop.f32.mrb[0].mxu0
      %785 = vdwg.mxu0
      %v787 = vsel %vm567, %v687, 0
      %v790 = vsel %vm696, %v691, 0
      %792 = vmatprep.subr.bf16.mxu0 0
      %793 = vmatpush1.bf16.msra.mxu0 %v790
      %794 = vmatprep.subr.bf16.mxu0 0
      %795 = vmatpush1.bf16.msra.mxu0 0
      %796 = vmatprep.subr.bf16.mxu0 0
      %797 = vmatpush1.bf16.msra.mxu0 0
      %798 = vmatprep.subr.bf16.mxu0 0
      %799 = vmatpush1.bf16.msra.mxu0 0
      %800 = vmatprep.subr.bf16.mxu0 0
      %801 = vmatpush1.bf16.msra.mxu0 0
      %802 = vmatprep.subr.bf16.mxu0 0
      %803 = vmatpush1.bf16.msra.mxu0 0
      %804 = vmatprep.subr.bf16.mxu0 0
      %805 = vmatpush1.bf16.msra.mxu0 0
      %806 = vmatprep.subr.bf16.mxu0 0
      %807 = vmatpush1.bf16.msra.mxu0 0
      %808 = vmatprep.subr.bf16.mxu0 0
      %809 = vmatpush1.bf16.msra.mxu0 0
      %810 = vmatprep.subr.bf16.mxu0 0
      %811 = vmatpush1.bf16.msra.mxu0 0
      %812 = vmatprep.subr.bf16.mxu0 0
      %813 = vmatpush1.bf16.msra.mxu0 0
      %814 = vmatprep.subr.bf16.mxu0 0
      %815 = vmatpush1.bf16.msra.mxu0 0
      %816 = vmatprep.subr.bf16.mxu0 0
      %817 = vmatpush1.bf16.msra.mxu0 0
      %818 = vmatprep.subr.bf16.mxu0 0
      %819 = vmatpush1.bf16.msra.mxu0 0
      %820 = vmatprep.subr.bf16.mxu0 0
      %821 = vmatpush1.bf16.msra.mxu0 0
      %822 = vmatprep.subr.bf16.mxu0 0
      %823 = vmatpush1.bf16.msra.mxu0 0
      %824 = vmatprep.mubr.bf16.mxu0 0
      %825 = vmatmul.mubr.bf16.gmra.mrb[0].mxu0 %v787
      %v826 = vpop.f32.mrb[0].mxu0
      %v827 = vadd.f32 0.0, %v826
      %v828 = vpop.f32.mrb[0].mxu0
      %v829 = vpop.f32.mrb[0].mxu0
      %v830 = vpop.f32.mrb[0].mxu0
      %831 = vdwg.mxu0
      %v833 = vsel %vm567, %v688, 0
      %v836 = vsel %vm696, %v692, 0
      %838 = vmatprep.subr.bf16.mxu0 0
      %839 = vmatpush1.bf16.msra.mxu0 %v836
      %840 = vmatprep.subr.bf16.mxu0 0
      %841 = vmatpush1.bf16.msra.mxu0 0
      %842 = vmatprep.subr.bf16.mxu0 0
      %843 = vmatpush1.bf16.msra.mxu0 0
      %844 = vmatprep.subr.bf16.mxu0 0
      %845 = vmatpush1.bf16.msra.mxu0 0
      %846 = vmatprep.subr.bf16.mxu0 0
      %847 = vmatpush1.bf16.msra.mxu0 0
      %848 = vmatprep.subr.bf16.mxu0 0
      %849 = vmatpush1.bf16.msra.mxu0 0
      %850 = vmatprep.subr.bf16.mxu0 0
      %851 = vmatpush1.bf16.msra.mxu0 0
      %852 = vmatprep.subr.bf16.mxu0 0
      %853 = vmatpush1.bf16.msra.mxu0 0
      %854 = vmatprep.subr.bf16.mxu0 0
      %855 = vmatpush1.bf16.msra.mxu0 0
      %856 = vmatprep.subr.bf16.mxu0 0
      %857 = vmatpush1.bf16.msra.mxu0 0
      %858 = vmatprep.subr.bf16.mxu0 0
      %859 = vmatpush1.bf16.msra.mxu0 0
      %860 = vmatprep.subr.bf16.mxu0 0
      %861 = vmatpush1.bf16.msra.mxu0 0
      %862 = vmatprep.subr.bf16.mxu0 0
      %863 = vmatpush1.bf16.msra.mxu0 0
      %864 = vmatprep.subr.bf16.mxu0 0
      %865 = vmatpush1.bf16.msra.mxu0 0
      %866 = vmatprep.subr.bf16.mxu0 0
      %867 = vmatpush1.bf16.msra.mxu0 0
      %868 = vmatprep.subr.bf16.mxu0 0
      %869 = vmatpush1.bf16.msra.mxu0 0
      %870 = vmatprep.mubr.bf16.mxu0 0
      %871 = vmatmul.mubr.bf16.gmra.mrb[0].mxu0 %v833
      %v872 = vpop.f32.mrb[0].mxu0
      %v873 = vadd.f32 0.0, %v872
      %v874 = vpop.f32.mrb[0].mxu0
      %v875 = vpop.f32.mrb[0].mxu0
      %v876 = vpop.f32.mrb[0].mxu0
      %877 = vdwg.mxu0
      %v878 = vadd.f32 %v681, %v735
      %v879 = vadd.f32 %v682, %v781
      %v880 = vadd.f32 %v683, %v827
      %v881 = vadd.f32 %v684, %v873
      %882 = vst.msk [vmem:[#allocation4] sm:$0xff] %vm378, %v878
      %883 = vst.msk [vmem:[#allocation4 + $0x8] sm:$0xff] %vm378, %v879
      %884 = vst.msk [vmem:[#allocation4 + $0x10] sm:$0xff] %vm378, %v880
      %885 = vst.msk [vmem:[#allocation4 + $0x18] sm:$0xff] %vm378, %v881
      %886 = vst.msk [vmem:[#allocation2] sm:$0xff] %vm652, %v580
      %887 = vst.msk [vmem:[#allocation2 + $0x8] sm:$0xff] %vm652, %v581
      %888 = vst.msk [vmem:[#allocation2 + $0x10] sm:$0xff] %vm652, %v582
      %889 = vst.msk [vmem:[#allocation2 + $0x18] sm:$0xff] %vm652, %v583
      // Predicated region
      $region45: #{transformer_forward.8} parent=39 // pred_check
        %p890 = pneg %p352
      $region46: #{transformer_forward.8} parent=39 // pred_check_branch
        %892 = sbr.rel (%p890) target = $region48
      $region47: #{transformer_forward.8} parent=39 // pred_region
        %v893 = vld [vmem:[#allocation4] sm:$0xff]
        %v894 = vld [vmem:[#allocation4 + $0x8] sm:$0xff]
        %v895 = vld [vmem:[#allocation4 + $0x10] sm:$0xff]
        %v896 = vld [vmem:[#allocation4 + $0x18] sm:$0xff]
        %v897 = vld [vmem:[#allocation3] sm:$0xff]
        %v898 = vld [vmem:[#allocation3 + $0x8] sm:$0xff]
        %v899 = vld [vmem:[#allocation3 + $0x10] sm:$0xff]
        %v900 = vld [vmem:[#allocation3 + $0x18] sm:$0xff]
        %v901 = vrcp.pop %v897
        %v902 = vrcp.pop %v898
        %v903 = vrcp.pop %v899
        %v904 = vrcp.pop %v900
        %906 = vset.pattern.permute.xlu0 0
        %907 = vperm.xlu0 %906, %v901
        %v908 = vpop.permute.xlu0 %907
        %911 = vset.pattern.permute.xlu0 0
        %912 = vperm.xlu0 %911, %v902
        %v913 = vpop.permute.xlu0 %912
        %916 = vset.pattern.permute.xlu0 0
        %917 = vperm.xlu0 %916, %v903
        %v918 = vpop.permute.xlu0 %917
        %921 = vset.pattern.permute.xlu0 0
        %922 = vperm.xlu0 %921, %v904
        %v923 = vpop.permute.xlu0 %922
        %v925 = vmul.f32 %v893, %v908
        %v926 = vmul.f32 %v894, %v913
        %v927 = vmul.f32 %v895, %v918
        %v928 = vmul.f32 %v896, %v923
        %v929 = vpack.c.bf16 %v925, %v925
        %vm930 = vcmask 257024
        %931 = vst.msk [vmem:[#allocation5] sm:$0xf] %vm930, %v929
        %v932 = vpack.c.bf16 %v926, %v926
        %v934 = vunpack.c.l.b16 %v932
        %v935 = vpack.c.b16 %v934, %v934
        %936 = vrot.lane.b32.xlu0 %v935, 32
        %v937 = vpop.permute.xlu0 %936
        %vm939 = vcmask 519424
        %940 = vst.msk [vmem:[#allocation5] sm:$0xf] %vm939, %v937
        %v941 = vpack.c.bf16 %v927, %v927
        %v943 = vunpack.c.l.b16 %v941
        %v944 = vpack.c.b16 %v943, %v943
        %945 = vrot.lane.b32.xlu0 %v944, 64
        %v946 = vpop.permute.xlu0 %945
        %vm948 = vcmask 781824
        %949 = vst.msk [vmem:[#allocation5] sm:$0xf] %vm948, %v946
        %v950 = vpack.c.bf16 %v928, %v928
        %v952 = vunpack.c.l.b16 %v950
        %v953 = vpack.c.b16 %v952, %v952
        %954 = vrot.lane.b32.xlu0 %v953, 96
        %v955 = vpop.permute.xlu0 %954
        %vm957 = vcmask 1044224
        %958 = vst.msk [vmem:[#allocation5] sm:$0xf] %vm957, %v955
        %v959 = vld [vmem:[#allocation5] sm:$0xf]
        %v960 = vld [vmem:[%s4] sm:$0xf]
        %v961 = vld [vmem:[%s4 + $0x4] sm:$0xf]
        %v962 = vld [vmem:[%s4 + $0x8] sm:$0xf]
        %v963 = vld [vmem:[%s4 + $0xc] sm:$0xf]
        %v964 = vld [vmem:[%s4 + $0x10] sm:$0xf]
        %v965 = vld [vmem:[%s4 + $0x14] sm:$0xf]
        %v966 = vld [vmem:[%s4 + $0x18] sm:$0xf]
        %v967 = vld [vmem:[%s4 + $0x1c] sm:$0xf]
        %v968 = vld [vmem:[%s4 + $0x20] sm:$0xf]
        %v969 = vld [vmem:[%s4 + $0x24] sm:$0xf]
        %v970 = vld [vmem:[%s4 + $0x28] sm:$0xf]
        %v971 = vld [vmem:[%s4 + $0x2c] sm:$0xf]
        %v972 = vld [vmem:[%s4 + $0x30] sm:$0xf]
        %v973 = vld [vmem:[%s4 + $0x34] sm:$0xf]
        %v974 = vld [vmem:[%s4 + $0x38] sm:$0xf]
        %v975 = vld [vmem:[%s4 + $0x3c] sm:$0xf]
        %v976 = vld [vmem:[%s343] sm:$0xff]
        %v993 = vunpack.c.l.b16 %v960
        %v994 = vunpack.c.l.b16 %v961
        %v995 = vunpack.c.l.b16 %v962
        %v996 = vunpack.c.l.b16 %v963
        %v997 = vunpack.c.l.b16 %v964
        %v998 = vunpack.c.l.b16 %v965
        %v999 = vunpack.c.l.b16 %v966
        %v1000 = vunpack.c.l.b16 %v967
        %v1001 = vunpack.c.l.b16 %v968
        %v1002 = vunpack.c.l.b16 %v969
        %v1003 = vunpack.c.l.b16 %v970
        %v1004 = vunpack.c.l.b16 %v971
        %v1005 = vunpack.c.l.b16 %v972
        %v1006 = vunpack.c.l.b16 %v973
        %v1007 = vunpack.c.l.b16 %v974
        %v1008 = vunpack.c.l.b16 %v975
        %v1009 = vpack.c.b16 %v994, %v993
        %v1010 = vpack.c.b16 %v996, %v995
        %v1011 = vpack.c.b16 %v998, %v997
        %v1012 = vpack.c.b16 %v1000, %v999
        %v1013 = vpack.c.b16 %v1002, %v1001
        %v1014 = vpack.c.b16 %v1004, %v1003
        %v1015 = vpack.c.b16 %v1006, %v1005
        %v1016 = vpack.c.b16 %v1008, %v1007
        %1025 = vmatprep.subr.bf16.mxu0 0
        %1026 = vmatpush1.bf16.msra.mxu0 %v1009
        %1027 = vmatprep.subr.bf16.mxu0 0
        %1028 = vmatpush1.bf16.msra.mxu0 %v1010
        %1029 = vmatprep.subr.bf16.mxu0 0
        %1030 = vmatpush1.bf16.msra.mxu0 %v1011
        %1031 = vmatprep.subr.bf16.mxu0 0
        %1032 = vmatpush1.bf16.msra.mxu0 %v1012
        %1033 = vmatprep.subr.bf16.mxu0 0
        %1034 = vmatpush1.bf16.msra.mxu0 %v1013
        %1035 = vmatprep.subr.bf16.mxu0 0
        %1036 = vmatpush1.bf16.msra.mxu0 %v1014
        %1037 = vmatprep.subr.bf16.mxu0 0
        %1038 = vmatpush1.bf16.msra.mxu0 %v1015
        %1039 = vmatprep.subr.bf16.mxu0 0
        %1040 = vmatpush1.bf16.msra.mxu0 %v1016
        %1041 = vmatprep.subr.bf16.mxu0 0
        %1042 = vmatpush1.bf16.msra.mxu0 0
        %1043 = vmatprep.subr.bf16.mxu0 0
        %1044 = vmatpush1.bf16.msra.mxu0 0
        %1045 = vmatprep.subr.bf16.mxu0 0
        %1046 = vmatpush1.bf16.msra.mxu0 0
        %1047 = vmatprep.subr.bf16.mxu0 0
        %1048 = vmatpush1.bf16.msra.mxu0 0
        %1049 = vmatprep.subr.bf16.mxu0 0
        %1050 = vmatpush1.bf16.msra.mxu0 0
        %1051 = vmatprep.subr.bf16.mxu0 0
        %1052 = vmatpush1.bf16.msra.mxu0 0
        %1053 = vmatprep.subr.bf16.mxu0 0
        %1054 = vmatpush1.bf16.msra.mxu0 0
        %1055 = vmatprep.subr.bf16.mxu0 0
        %1056 = vmatpush1.bf16.msra.mxu0 0
        %1057 = vmatprep.mubr.bf16.mxu0 0
        %1058 = vmatmul.mubr.bf16.gmra.mrb[0].mxu0 %v959
        %v1059 = vpop.f32.mrb[0].mxu0
        %v1060 = vadd.f32 %v976, %v1059
        %v1061 = vpop.f32.mrb[0].mxu0
        %v1062 = vpop.f32.mrb[0].mxu0
        %v1063 = vpop.f32.mrb[0].mxu0
        %1064 = vdwg.mxu0
        %1065 = vst [vmem:[%s350] sm:$0xff] %v1060
      $region48: #{transformer_forward.8} parent=39 // pred_fallthru
        _
      %p1066 = scmp.lt.s32.totalorder %s21, 1
      %s1067 = scalar_select %p1066, %s21, 1
      %p1068 = scmp.lt.s32.totalorder %s22, 0
      %s1069 = scalar_select %p1068, %s22, 0
      %s1070 = sadd.s32 %s1069, %s1067
      %s1071 = smul.addr %s1070, 8
      %s1072 = scalar_lea.vmem %s5, %s1071
      // Predicated region
      $region49: #{transformer_forward.8} parent=39 // pred_check
        %p1073 = pneg %p188
      $region50: #{transformer_forward.8} parent=39 // pred_check_branch
        %1075 = sbr.rel (%p1073) target = $region52
      $region51: #{transformer_forward.8} parent=39 // pred_region
        _
      $region52: #{transformer_forward.8} parent=39 // pred_fallthru
        _
    $region40: #{transformer_forward.8} parent=5 // pred_fallthru
      _
    %p1076 = scmp.le.s32.totalorder 2, %s11
    // Predicated region
    $region53: #{transformer_forward.8} parent=5 // pred_check
      %p1077 = pneg %p1076
    $region54: #{transformer_forward.8} parent=5 // pred_check_branch
      %1079 = sbr.rel (%p1077) target = $region56
    $region55: #{transformer_forward.8} parent=5 // pred_region
      %s1080 = ssub.s32 %s11, 2
      // Predicated region
      $region57: #{transformer_forward.8} parent=55 // pred_check
        %p1081 = pneg %p194
      $region58: #{transformer_forward.8} parent=55 // pred_check_branch
        %1083 = sbr.rel (%p1081) target = $region60
      $region59: #{transformer_forward.8} parent=55 // pred_region
        %p1084 = scmp.lt.s32.totalorder %s24, 1
        %s1085 = scalar_select %p1084, %s24, 1
        %p1086 = scmp.lt.s32.totalorder %s25, 0
        %s1087 = scalar_select %p1086, %s25, 0
        %s1088 = sadd.s32 %s1087, %s1085
        %s1089 = smul.addr %s1088, 8
        %s1090 = scalar_lea.vmem %s5, %s1089
      $region60: #{transformer_forward.8} parent=55 // pred_fallthru
        _
    $region56: #{transformer_forward.8} parent=5 // pred_fallthru
      _
  $region6: #{transformer_forward.8} parent=0 // loop_footer
    %s15 = sadd.s32 1, %s11
  $region7: #{transformer_forward.8} parent=0 // loop_footer_branch
    %10 = sbr.rel target = $region3
  $region8: #{transformer_forward.8} parent=0 // loop_exit
    _

// kernel: transformer_forward.13
$region0: #{transformer_forward.13}
  #allocation0 [shape = 'u32[]', space=smem, size = 0x4, offset = 0x4, fixed_abs, tag = 'smem constant byte address 0x4 - core index']
  #allocation1 [shape = 'u32[144,128]{1,0:T(1,128)}', space=vmem, size = 0x12000, scoped, tag = 'internal scratch']
  %s0 = inlined_call_operand.vmem [shape: f32[16,128], index: 0, kind: input, shape index: {}]
  %s1 = inlined_call_operand.vmem [shape: f32[1,128], index: 1, kind: input, shape index: {}]
  %s2 = inlined_call_operand.vmem [shape: f32[1,128], index: 2, kind: input, shape index: {}]
  %s3 = inlined_call_operand.hbm [shape: f32[16,128], index: 3, kind: output, shape index: {}]
  %s4 = sld [smem:[#allocation0]]
  $region22: #{transformer_forward.13} parent=0
    _
  %s6 = ssub.s32 1, %s4
  %s7 = scalar_select 0, %s6, %s4
  $region1: #{transformer_forward.13} parent=0
    #allocation2 [shape = 'u8[8192]{0}', space=vmem, size = 0x2000, scoped, tag = 'output window, operand 0, single buffered']
    #allocation3 [shape = 's32[1]{0}', space=sflag, size = 0x4, scoped, tag = 'scoped memory for transformer_forward.13']
    %8 = vsyncpa [#allocation3], 0
    // Predicated region
    $region2: #{transformer_forward.13} parent=1 // pred_check
      _
    $region3: #{transformer_forward.13} parent=1 // pred_check_branch
      %10 = sbr.rel (0) target = $region5
    $region4: #{transformer_forward.13} parent=1 // pred_region
      _
    $region5: #{transformer_forward.13} parent=1 // pred_fallthru
      _
    // Predicated region
    $region6: #{transformer_forward.13} parent=1 // pred_check
      _
    $region7: #{transformer_forward.13} parent=1 // pred_check_branch
      %12 = sbr.rel (0) target = $region9
    $region8: #{transformer_forward.13} parent=1 // pred_region
      _
    $region9: #{transformer_forward.13} parent=1 // pred_fallthru
      _
    // Predicated region
    $region10: #{transformer_forward.13} parent=1 // pred_check
      _
    $region11: #{transformer_forward.13} parent=1 // pred_check_branch
      %14 = sbr.rel (0) target = $region13
    $region12: #{transformer_forward.13} parent=1 // pred_region
      _
    $region13: #{transformer_forward.13} parent=1 // pred_fallthru
      _
    %v15 = vld [vmem:[%s0] sm:$0xff]
    %v16 = vld [vmem:[%s0 + $0x8] sm:$0xff]
    %v17 = vld [vmem:[%s1] sm:$0x1]
    %v18 = vld [vmem:[%s2] sm:$0x1]
    %19 = vadd.xlane.f32.xlu0 %v15
    %v20 = vpop.xlane.xlu0 %19
    %21 = vadd.xlane.f32.xlu0 %v16
    %v22 = vpop.xlane.xlu0 %21
    %v23 = vrcp.pop 128.0
    %v24 = vmul.f32 %v20, %v23
    %v25 = vmul.f32 %v22, %v23
    %v26 = vsub.f32 %v15, %v24
    %v27 = vsub.f32 %v16, %v25
    %v28 = vmul.f32 %v26, %v26
    %v29 = vmul.f32 %v27, %v27
    %30 = vadd.xlane.f32.xlu0 %v28
    %v31 = vpop.xlane.xlu0 %30
    %32 = vadd.xlane.f32.xlu0 %v29
    %v33 = vpop.xlane.xlu0 %32
    %v34 = vmul.f32 %v31, %v23
    %v35 = vmul.f32 %v33, %v23
    %v36 = vadd.f32 %v34, 1e-05
    %v37 = vadd.f32 %v35, 1e-05
    %v38 = vrsqrt.pop %v36
    %v39 = vrsqrt.pop %v37
    %v40 = vmul.f32 %v26, %v38
    %v41 = vmul.f32 %v27, %v39
    %v43 = vlaneseq
    %v44 = vshrl.u32 %v43, 7
    %v45 = vsub.s32 0, %v44
    %v46 = vrot.slane %v17, %v45
    %v48 = vmul.f32 %v40, %v46
    %v49 = vmul.f32 %v41, %v46
    %v51 = vlaneseq
    %v52 = vshrl.u32 %v51, 7
    %v53 = vsub.s32 0, %v52
    %v54 = vrot.slane %v18, %v53
    %v56 = vadd.f32 %v48, %v54
    %v57 = vadd.f32 %v49, %v54
    %58 = vst [vmem:[#allocation2] sm:$0xff] %v56
    %59 = vst [vmem:[#allocation2 + $0x8] sm:$0xff] %v57
    // Predicated region
    $region14: #{transformer_forward.13} parent=1 // pred_check
      _
    $region15: #{transformer_forward.13} parent=1 // pred_check_branch
      %61 = sbr.rel (0) target = $region17
    $region16: #{transformer_forward.13} parent=1 // pred_region
      %s63 = ssub.s32 256, 256
      %64 = vsyncadd [#allocation3], %s63
      %s65 = sshll.u32 [#allocation2], 4
      %s66 = int_to_ptr.vmem [resolvable:$true] %s65
      %71 = dma.vmem_to_hbm [thread:$0]  %s66, 256, %s3, [#allocation3], 128, 128, 8
    $region17: #{transformer_forward.13} parent=1 // pred_fallthru
      _
    // Predicated region
    $region18: #{transformer_forward.13} parent=1 // pred_check
      _
    $region19: #{transformer_forward.13} parent=1 // pred_check_branch
      %73 = sbr.rel (0) target = $region21
    $region20: #{transformer_forward.13} parent=1 // pred_region
      %74 = dma.done [#allocation3], 256
    $region21: #{transformer_forward.13} parent=1 // pred_fallthru
      _
    %75 = vsyncpa [#allocation3], 1

</llo_original>
